<compile_context>
chip_gen: v7x
topology: tpu7x:2x2x1
jax: 0.10.0
libtpu: 0.0.40
codegen_flags: <defaults>
</compile_context>

<pallas_src>
import functools

import jax
import jax.numpy as jnp
from jax import lax
from jax.experimental import pallas as pl
from jax.experimental.pallas import tpu as pltpu

GROUPS = 32
EPS = 1e-5
VMEM_LIMIT_BYTES = 32 * 1024 * 1024  # explicit scoped-VMEM budget (safe on v5e/v6e/v7x)


# ---------------------------------------------------------------------------
# Shared in-kernel helper: GroupNorm -> SiLU -> fill im2col scratch.
#   xs      : (H*W, C) f32 activation (flat spatial, channels on lanes)
#   xp_ref  : ((H+2)*W, 3*C) f32 VMEM scratch.  Channel block kx in {0,1,2} holds the
#             padded activation shifted by (kx-1) along W, so the 3x3 conv becomes
#             3 matmuls patch(H*W, 3C) @ w[ky](3C, Cout), one per ky.
# ---------------------------------------------------------------------------
def _gn_silu_im2col(xs, gamma, beta, pool, xp_ref, W):
    HW, C = xs.shape
    # GroupNorm statistics: per-channel mean / mean-of-squares, stacked into (2, C) and
    # group-averaged with ONE block-diagonal pool matmul (all f32).
    ch_mean = jnp.mean(xs, axis=0, keepdims=True)
    ch_msq = jnp.mean(xs * xs, axis=0, keepdims=True)
    stats = jnp.concatenate([ch_mean, ch_msq], axis=0)                      # (2, C)
    g = jnp.dot(stats, pool, preferred_element_type=jnp.float32)            # (2, C)
    g_mean = g[0:1, :]
    g_var = g[1:2, :] - g_mean * g_mean   # NOTE: E[x^2]-E[x]^2 in f32 (ok at these scales)
    inv = lax.rsqrt(g_var + EPS)
    y = (xs - g_mean) * (inv * gamma) + beta
    y = y * jax.nn.sigmoid(y)                                               # SiLU (f32)

    # kx = -1 / +1 shifted copies: the shift is a +-1 row offset of the flat-spatial array,
    # the W-boundary wrap is removed by zero-masking the column that would wrap.
    w_idx = lax.broadcasted_iota(jnp.int32, (HW, 1), 0) % W
    left = jnp.where(w_idx == W - 1, 0.0, y)    # serves as the w-1 neighbour (tap kx=0)
    right = jnp.where(w_idx == 0, 0.0, y)       # serves as the w+1 neighbour (tap kx=2)

    # In-kernel zero padding + pre-shift: three offset stores, no jnp.pad, no strided slices.
    xp_ref[...] = jnp.zeros_like(xp_ref)
    xp_ref[pl.ds(W + 1, HW), pl.ds(0, C)] = left
    xp_ref[pl.ds(W, HW), pl.ds(C, C)] = y
    xp_ref[pl.ds(W - 1, HW), pl.ds(2 * C, C)] = right


def _conv3x3_from_scratch(xp_ref, w_ref, HW, W, Cout):
    # 3 bf16 MXU matmuls with K = 3*Cin; patch loads are full-lane-width, sublane-aligned
    # (row offsets 0, W, 2*W).  Accumulate in f32.
    acc = jnp.zeros((HW, Cout), jnp.float32)
    for ky in range(3):
        patch = xp_ref[pl.ds(ky * W, HW), :].astype(jnp.bfloat16)
        acc = acc + jnp.dot(patch, w_ref[ky], preferred_element_type=jnp.float32)
    return acc


# ---------------------------------------------------------------------------
# Kernel 1: GroupNorm -> SiLU -> Conv3x3 (padding=1), one batch element per grid step.
# ---------------------------------------------------------------------------
def _gn_silu_conv_kernel(x_ref, gamma_ref, beta_ref, pool_ref, w_ref, b_ref,
                         o_ref, xp_ref):
    _, H, W, Cin = x_ref.shape
    HW = H * W
    Cout = o_ref.shape[2]
    xs = x_ref[0].reshape(HW, Cin)
    _gn_silu_im2col(xs, gamma_ref[...], beta_ref[...], pool_ref[...], xp_ref, W)
    acc = _conv3x3_from_scratch(xp_ref, w_ref, HW, W, Cout)
    o_ref[0] = acc + b_ref[...]


# ---------------------------------------------------------------------------
# Kernel 2: GroupNorm -> SiLU -> Conv3x3 + skip (1x1 conv or identity) + residual add.
# ---------------------------------------------------------------------------
def _gn_silu_conv_skip_kernel(identity_skip, h_ref, x0_ref, gamma_ref, beta_ref,
                              pool_ref, w_ref, b_ref, ws_ref, bs_ref, o_ref, xp_ref):
    HW, Cmid = h_ref.shape[1], h_ref.shape[2]
    _, H, W, Cin = x0_ref.shape
    Cout = o_ref.shape[2]
    _gn_silu_im2col(h_ref[0], gamma_ref[...], beta_ref[...], pool_ref[...], xp_ref, W)
    acc = _conv3x3_from_scratch(xp_ref, w_ref, HW, W, Cout) + b_ref[...]
    x0 = x0_ref[0].reshape(HW, Cin)
    if identity_skip:
        acc = acc + x0                                   # nn.Identity skip, exact f32 add
    else:
        acc = acc + jnp.dot(x0.astype(jnp.bfloat16), ws_ref[...],
                            preferred_element_type=jnp.float32) + bs_ref[...]
    o_ref[0] = acc


# ---------------------------------------------------------------------------
# Wrappers (pallas_call plumbing + parameter repacking glue)
# ---------------------------------------------------------------------------
def _group_pool(C):
    cg = C // GROUPS
    return jnp.kron(jnp.eye(GROUPS, dtype=jnp.float32),
                    jnp.ones((cg, cg), jnp.float32)) / cg


def _repack_conv3x3_weight(w):
    # torch OIHW (Cout, Cin, 3, 3) -> (ky, kx*Cin, Cout), stored bf16 (halves weight DMA).
    cout, cin = w.shape[0], w.shape[1]
    return jnp.transpose(w, (2, 3, 1, 0)).reshape(3, 3 * cin, cout).astype(jnp.bfloat16)


def _compiler_params():
    return pltpu.CompilerParams(dimension_semantics=("parallel",),
                                vmem_limit_bytes=VMEM_LIMIT_BYTES)


def gn_silu_conv3x3(x, gamma, beta, w, b):
    """Fused GroupNorm(32) -> SiLU -> Conv3x3(pad=1).  x: (N, H, W, Cin) f32."""
    N, H, W, Cin = x.shape
    HW = H * W
    Cout = w.shape[0]
    # TODO: for large H*W*C, add a row-tile grid axis (with a 1-row halo) so blocks fit
    # v7x's 64 MiB VMEM and both TensorCores get work when N is small.
    return pl.pallas_call(
        _gn_silu_conv_kernel,
        out_shape=jax.ShapeDtypeStruct((N, HW, Cout), jnp.float32),
        grid=(N,),
        in_specs=[
            pl.BlockSpec((1, H, W, Cin), lambda n: (n, 0, 0, 0)),
            pl.BlockSpec((1, Cin), lambda n: (0, 0)),
            pl.BlockSpec((1, Cin), lambda n: (0, 0)),
            pl.BlockSpec((Cin, Cin), lambda n: (0, 0)),
            pl.BlockSpec((3, 3 * Cin, Cout), lambda n: (0, 0, 0)),
            pl.BlockSpec((1, Cout), lambda n: (0, 0)),
        ],
        out_specs=pl.BlockSpec((1, HW, Cout), lambda n: (n, 0, 0)),
        scratch_shapes=[pltpu.VMEM(((H + 2) * W, 3 * Cin), jnp.float32)],
        compiler_params=_compiler_params(),
    )(x, gamma.reshape(1, Cin), beta.reshape(1, Cin), _group_pool(Cin),
      _repack_conv3x3_weight(w), b.reshape(1, Cout))


def gn_silu_conv3x3_skip(h, x0, gamma, beta, w, b, ws=None, bs=None):
    """Fused GroupNorm(32) -> SiLU -> Conv3x3(pad=1) on h, plus skip(x0) + residual add.

    h : (N, H*W, Cmid) f32 (output of gn_silu_conv3x3), x0: (N, H, W, Cin) f32.
    ws/bs: 1x1-conv skip params (None => nn.Identity skip, requires Cin == Cout).
    """
    N, H, W, Cin = x0.shape
    HW = H * W
    Cmid = h.shape[-1]
    Cout = w.shape[0]
    identity_skip = ws is None
    if identity_skip:
        assert Cin == Cout, "identity skip requires in_channels == out_channels"
        ws_mat = jnp.zeros((Cin, Cout), jnp.bfloat16)   # unused by the kernel
        bs_vec = jnp.zeros((Cout,), jnp.float32)
    else:
        ws_mat = ws[:, :, 0, 0].T.astype(jnp.bfloat16)  # (Cin, Cout), bf16
        bs_vec = bs
    kernel = functools.partial(_gn_silu_conv_skip_kernel, identity_skip)
    return pl.pallas_call(
        kernel,
        out_shape=jax.ShapeDtypeStruct((N, HW, Cout), jnp.float32),
        grid=(N,),
        in_specs=[
            pl.BlockSpec((1, HW, Cmid), lambda n: (n, 0, 0)),
            pl.BlockSpec((1, H, W, Cin), lambda n: (n, 0, 0, 0)),
            pl.BlockSpec((1, Cmid), lambda n: (0, 0)),
            pl.BlockSpec((1, Cmid), lambda n: (0, 0)),
            pl.BlockSpec((Cmid, Cmid), lambda n: (0, 0)),
            pl.BlockSpec((3, 3 * Cmid, Cout), lambda n: (0, 0, 0)),
            pl.BlockSpec((1, Cout), lambda n: (0, 0)),
            pl.BlockSpec((Cin, Cout), lambda n: (0, 0)),
            pl.BlockSpec((1, Cout), lambda n: (0, 0)),
        ],
        out_specs=pl.BlockSpec((1, HW, Cout), lambda n: (n, 0, 0)),
        scratch_shapes=[pltpu.VMEM(((H + 2) * W, 3 * Cmid), jnp.float32)],
        compiler_params=_compiler_params(),
    )(h, x0, gamma.reshape(1, Cmid), beta.reshape(1, Cmid), _group_pool(Cmid),
      _repack_conv3x3_weight(w), b.reshape(1, Cout), ws_mat, bs_vec.reshape(1, Cout))


def residual_block_pallas(x_nchw, p):
    """x_nchw: (N, Cin, H, W) float32.  Returns (N, Cout, H, W) float32."""
    N, Cin, H, W = x_nchw.shape
    x = jnp.transpose(x_nchw, (0, 2, 3, 1))          # NCHW -> NHWC (external contract)
    h = gn_silu_conv3x3(x, p["g1"], p["b1"], p["w1"], p["c1"])          # (N, H*W, Cmid)
    out = gn_silu_conv3x3_skip(h, x, p["g2"], p["b2"], p["w2"], p["c2"],
                               p.get("ws"), p.get("cs"))                # (N, H*W, Cout)
    Cout = p["w2"].shape[0]
    return jnp.transpose(out.reshape(N, H, W, Cout), (0, 3, 1, 2))      # back to NCHW


# ---------------------------------------------------------------------------
# Pure-JAX reference (NCHW, mirrors PyTorch semantics) for validation
# ---------------------------------------------------------------------------
def residual_block_ref(x, p):
    def gn(x, gamma, beta):
        N, C, H, W = x.shape
        xr = x.reshape(N, GROUPS, -1)
        m = xr.mean(-1, keepdims=True)
        v = xr.var(-1, keepdims=True)
        xr = (xr - m) / jnp.sqrt(v + EPS)
        x = xr.reshape(N, C, H, W)
        return x * gamma[None, :, None, None] + beta[None, :, None, None]

    def silu(x):
        return x * jax.nn.sigmoid(x)

    def conv(x, w, b, pad):
        y = lax.conv_general_dilated(
            x, w, (1, 1), ((pad, pad), (pad, pad)),
            dimension_numbers=("NCHW", "OIHW", "NCHW"),
            precision=lax.Precision.HIGHEST)
        return y + b[None, :, None, None]

    h = conv(silu(gn(x, p["g1"], p["b1"])), p["w1"], p["c1"], 1)
    h = conv(silu(gn(h, p["g2"], p["b2"])), p["w2"], p["c2"], 1)
    skip = conv(x, p["ws"], p["cs"], 0) if p.get("ws") is not None else x
    return h + skip


if __name__ == "__main__":
    # Channels must be multiples of 32 for GroupNorm(32, C).
    N, Cin, Cout, H, W = 2, 32, 64, 8, 8
    keys = jax.random.split(jax.random.PRNGKey(0), 12)
    x = jax.random.normal(keys[0], (N, Cin, H, W), jnp.float32)

    p = dict(
        g1=1.0 + 0.1 * jax.random.normal(keys[1], (Cin,), jnp.float32),
        b1=0.1 * jax.random.normal(keys[2], (Cin,), jnp.float32),
        w1=0.05 * jax.random.normal(keys[3], (Cout, Cin, 3, 3), jnp.float32),
        c1=0.1 * jax.random.normal(keys[4], (Cout,), jnp.float32),
        g2=1.0 + 0.1 * jax.random.normal(keys[5], (Cout,), jnp.float32),
        b2=0.1 * jax.random.normal(keys[6], (Cout,), jnp.float32),
        w2=0.05 * jax.random.normal(keys[7], (Cout, Cout, 3, 3), jnp.float32),
        c2=0.1 * jax.random.normal(keys[8], (Cout,), jnp.float32),
        ws=0.1 * jax.random.normal(keys[9], (Cout, Cin, 1, 1), jnp.float32),
        cs=0.1 * jax.random.normal(keys[10], (Cout,), jnp.float32),
    )

    fwd = jax.jit(residual_block_pallas)
    out = jax.block_until_ready(fwd(x, p))
    ref = jax.block_until_ready(residual_block_ref(x, p))

    assert out.shape == (N, Cout, H, W), out.shape
    # bf16 MXU operands (f32 accumulation) through two stacked convs -> compare against the
    # f32 reference at a bf16-level tolerance.
    assert jnp.allclose(out, ref, atol=3e-2, rtol=3e-2), float(
        jnp.max(jnp.abs(out - ref)))
    print("KERNEL_OK")
</pallas_src>

<mosaic_0001>
module attributes {stable_mosaic.version = 11 : i64} {
  func.func @_gn_silu_conv_kernel(%arg0: i32, %arg1: memref<1x8x8x32xf32, #tpu.memory_space<vmem>>, %arg2: memref<1x32xf32, #tpu.memory_space<vmem>>, %arg3: memref<1x32xf32, #tpu.memory_space<vmem>>, %arg4: memref<32x32xf32, #tpu.memory_space<vmem>>, %arg5: memref<3x96x64xbf16, #tpu.memory_space<vmem>>, %arg6: memref<1x64xf32, #tpu.memory_space<vmem>>, %arg7: memref<1x64x64xf32, #tpu.memory_space<vmem>>, %arg8: memref<80x96xf32, #tpu.memory_space<vmem>>) attributes {dimension_semantics = [#tpu.dimension_semantics<parallel>], iteration_bounds = array<i64: 2>, scalar_prefetch = 0 : i64, scratch_operands = 1 : i64, tpu.core_type = #tpu.core_type<tc>, window_params = [{transform_indices = @transform_0, window_bounds = array<i64: 1, 8, 8, 32>}, {pipeline_mode = #tpu.pipeline_mode<synchronous>, transform_indices = @transform_1, window_bounds = array<i64: 1, 32>}, {pipeline_mode = #tpu.pipeline_mode<synchronous>, transform_indices = @transform_2, window_bounds = array<i64: 1, 32>}, {pipeline_mode = #tpu.pipeline_mode<synchronous>, transform_indices = @transform_3, window_bounds = array<i64: 32, 32>}, {pipeline_mode = #tpu.pipeline_mode<synchronous>, transform_indices = @transform_4, window_bounds = array<i64: 3, 96, 64>}, {pipeline_mode = #tpu.pipeline_mode<synchronous>, transform_indices = @transform_5, window_bounds = array<i64: 1, 64>}, {transform_indices = @transform_6, window_bounds = array<i64: 1, 64, 64>}]} {
    %c0 = arith.constant 0 : index
    %c0_0 = arith.constant 0 : index
    %c0_1 = arith.constant 0 : index
    %c0_2 = arith.constant 0 : index
    %0 = vector.load %arg1[%c0, %c0_0, %c0_1, %c0_2] : memref<1x8x8x32xf32, #tpu.memory_space<vmem>>, vector<1x8x8x32xf32>
    %1 = vector.shape_cast %0 : vector<1x8x8x32xf32> to vector<8x8x32xf32>
    %2 = vector.shape_cast %1 : vector<8x8x32xf32> to vector<64x32xf32>
    %c0_3 = arith.constant 0 : index
    %c0_4 = arith.constant 0 : index
    %3 = vector.load %arg2[%c0_3, %c0_4] : memref<1x32xf32, #tpu.memory_space<vmem>>, vector<1x32xf32>
    %c0_5 = arith.constant 0 : index
    %c0_6 = arith.constant 0 : index
    %4 = vector.load %arg3[%c0_5, %c0_6] : memref<1x32xf32, #tpu.memory_space<vmem>>, vector<1x32xf32>
    %c0_7 = arith.constant 0 : index
    %c0_8 = arith.constant 0 : index
    %5 = vector.load %arg4[%c0_7, %c0_8] : memref<32x32xf32, #tpu.memory_space<vmem>>, vector<32x32xf32>
    %cst = arith.constant dense<0.000000e+00> : vector<32xf32>
    %6 = vector.multi_reduction <add>, %2, %cst [0] : vector<64x32xf32> to vector<32xf32>
    %7 = vector.shape_cast %6 : vector<32xf32> to vector<1x32xf32>
    %cst_9 = arith.constant 6.400000e+01 : f32
    %8 = vector.broadcast %cst_9 : f32 to vector<1x32xf32>
    %9 = arith.divf %7, %8 : vector<1x32xf32>
    %10 = arith.mulf %2, %2 : vector<64x32xf32>
    %cst_10 = arith.constant dense<0.000000e+00> : vector<32xf32>
    %11 = vector.multi_reduction <add>, %10, %cst_10 [0] : vector<64x32xf32> to vector<32xf32>
    %12 = vector.shape_cast %11 : vector<32xf32> to vector<1x32xf32>
    %cst_11 = arith.constant 6.400000e+01 : f32
    %13 = vector.broadcast %cst_11 : f32 to vector<1x32xf32>
    %14 = arith.divf %12, %13 : vector<1x32xf32>
    %15 = tpu.concatenate %9, %14 in 0 : vector<1x32xf32>, vector<1x32xf32> -> vector<2x32xf32>
    %cst_12 = arith.constant dense<0.000000e+00> : vector<2x32xf32>
    %16 = tpu.matmul %15, %5, %cst_12 {dimension_numbers = #tpu.dot_dimension_numbers<[1], [0], [0], [1], [0, 0, 1, 1], [], []>} : vector<2x32xf32>, vector<32x32xf32>, vector<2x32xf32> -> vector<2x32xf32>
    %17 = vector.extract_strided_slice %16 {offsets = [0, 0], sizes = [1, 32], strides = [1, 1]} : vector<2x32xf32> to vector<1x32xf32>
    %18 = vector.extract_strided_slice %16 {offsets = [1, 0], sizes = [1, 32], strides = [1, 1]} : vector<2x32xf32> to vector<1x32xf32>
    %19 = arith.mulf %17, %17 : vector<1x32xf32>
    %20 = arith.subf %18, %19 : vector<1x32xf32>
    %cst_13 = arith.constant 9.99999974E-6 : f32
    %21 = vector.broadcast %cst_13 : f32 to vector<1x32xf32>
    %22 = arith.addf %20, %21 : vector<1x32xf32>
    %23 = math.rsqrt %22 : vector<1x32xf32>
    %24 = vector.broadcast %17 : vector<1x32xf32> to vector<64x32xf32>
    %25 = arith.subf %2, %24 : vector<64x32xf32>
    %26 = arith.mulf %23, %3 : vector<1x32xf32>
    %27 = vector.broadcast %26 : vector<1x32xf32> to vector<64x32xf32>
    %28 = arith.mulf %25, %27 : vector<64x32xf32>
    %29 = vector.broadcast %4 : vector<1x32xf32> to vector<64x32xf32>
    %30 = arith.addf %28, %29 : vector<64x32xf32>
    %31 = arith.negf %30 : vector<64x32xf32>
    %32 = math.exp %31 : vector<64x32xf32>
    %cst_14 = arith.constant 1.000000e+00 : f32
    %33 = vector.broadcast %cst_14 : f32 to vector<64x32xf32>
    %34 = arith.addf %33, %32 : vector<64x32xf32>
    %35 = arith.divf %33, %34 : vector<64x32xf32>
    %36 = arith.mulf %30, %35 : vector<64x32xf32>
    %37 = tpu.iota {dimensions = array<i32: 0>} : vector<64x1xi32>
    %c8_i32 = arith.constant 8 : i32
    %c0_i32 = arith.constant 0 : i32
    %38 = arith.cmpi eq, %c8_i32, %c0_i32 : i32
    %c1_i32 = arith.constant 1 : i32
    %39 = arith.select %38, %c1_i32, %c8_i32 : i32
    %40 = vector.broadcast %39 : i32 to vector<64x1xi32>
    %41 = arith.remsi %37, %40 : vector<64x1xi32>
    %c0_i32_15 = arith.constant 0 : i32
    %42 = vector.broadcast %c0_i32_15 : i32 to vector<64x1xi32>
    %43 = arith.cmpi ne, %41, %42 : vector<64x1xi32>
    %c0_i32_16 = arith.constant 0 : i32
    %44 = vector.broadcast %c0_i32_16 : i32 to vector<64x1xi32>
    %45 = arith.cmpi slt, %41, %44 : vector<64x1xi32>
    %c0_i32_17 = arith.constant 0 : i32
    %46 = arith.cmpi slt, %39, %c0_i32_17 : i32
    %47 = vector.broadcast %46 : i1 to vector<64x1xi1>
    %48 = vector.broadcast %47 : vector<64x1xi1> to vector<64x1xi1>
    %49 = arith.xori %45, %48 : vector<64x1xi1>
    %50 = arith.andi %49, %43 : vector<64x1xi1>
    %51 = vector.broadcast %39 : i32 to vector<64x1xi32>
    %52 = arith.addi %41, %51 : vector<64x1xi32>
    %53 = arith.select %50, %52, %41 : vector<64x1xi1>, vector<64x1xi32>
    %c7_i32 = arith.constant 7 : i32
    %54 = vector.broadcast %c7_i32 : i32 to vector<64x1xi32>
    %55 = arith.cmpi eq, %53, %54 : vector<64x1xi32>
    %cst_18 = arith.constant 0.000000e+00 : f32
    %56 = vector.shape_cast %55 : vector<64x1xi1> to vector<64x1xi1>
    %57 = vector.broadcast %56 : vector<64x1xi1> to vector<64x32xi1>
    %58 = vector.broadcast %cst_18 : f32 to vector<64x32xf32>
    %59 = arith.select %57, %58, %36 : vector<64x32xi1>, vector<64x32xf32>
    %c0_i32_19 = arith.constant 0 : i32
    %60 = vector.broadcast %c0_i32_19 : i32 to vector<64x1xi32>
    %61 = arith.cmpi eq, %53, %60 : vector<64x1xi32>
    %cst_20 = arith.constant 0.000000e+00 : f32
    %62 = vector.shape_cast %61 : vector<64x1xi1> to vector<64x1xi1>
    %63 = vector.broadcast %62 : vector<64x1xi1> to vector<64x32xi1>
    %64 = vector.broadcast %cst_20 : f32 to vector<64x32xf32>
    %65 = arith.select %63, %64, %36 : vector<64x32xi1>, vector<64x32xf32>
    %cst_21 = arith.constant 0.000000e+00 : f32
    %66 = vector.broadcast %cst_21 : f32 to vector<80x96xf32>
    %c0_22 = arith.constant 0 : index
    %c0_23 = arith.constant 0 : index
    %67 = vector.load %arg8[%c0_22, %c0_23] : memref<80x96xf32, #tpu.memory_space<vmem>>, vector<80x96xf32>
    tpu.vector_store %arg8[%c0_22, %c0_23], %66 {strides = array<i32>} : memref<80x96xf32, #tpu.memory_space<vmem>>, vector<80x96xf32>,
    %c9 = arith.constant 9 : index
    %c0_24 = arith.constant 0 : index
    %68 = vector.load %arg8[%c9, %c0_24] : memref<80x96xf32, #tpu.memory_space<vmem>>, vector<64x32xf32>
    tpu.vector_store %arg8[%c9, %c0_24], %59 {strides = array<i32>} : memref<80x96xf32, #tpu.memory_space<vmem>>, vector<64x32xf32>,
    %c8 = arith.constant 8 : index
    %c32 = arith.constant 32 : index
    %69 = vector.load %arg8[%c8, %c32] : memref<80x96xf32, #tpu.memory_space<vmem>>, vector<64x32xf32>
    tpu.vector_store %arg8[%c8, %c32], %36 {strides = array<i32>} : memref<80x96xf32, #tpu.memory_space<vmem>>, vector<64x32xf32>,
    %c7 = arith.constant 7 : index
    %c64 = arith.constant 64 : index
    %70 = vector.load %arg8[%c7, %c64] : memref<80x96xf32, #tpu.memory_space<vmem>>, vector<64x32xf32>
    tpu.vector_store %arg8[%c7, %c64], %65 {strides = array<i32>} : memref<80x96xf32, #tpu.memory_space<vmem>>, vector<64x32xf32>,
    %cst_25 = arith.constant 0.000000e+00 : f32
    %71 = vector.broadcast %cst_25 : f32 to vector<64x64xf32>
    %c0_26 = arith.constant 0 : index
    %c0_27 = arith.constant 0 : index
    %72 = vector.load %arg8[%c0_26, %c0_27] : memref<80x96xf32, #tpu.memory_space<vmem>>, vector<64x96xf32>
    %73 = arith.truncf %72 : vector<64x96xf32> to vector<64x96xbf16>
    %c0_28 = arith.constant 0 : index
    %c0_29 = arith.constant 0 : index
    %c0_30 = arith.constant 0 : index
    %74 = vector.load %arg5[%c0_28, %c0_29, %c0_30] : memref<3x96x64xbf16, #tpu.memory_space<vmem>>, vector<1x96x64xbf16>
    %75 = vector.shape_cast %74 : vector<1x96x64xbf16> to vector<96x64xbf16>
    %cst_31 = arith.constant dense<0.000000e+00> : vector<64x64xf32>
    %76 = tpu.matmul %73, %75, %cst_31 {dimension_numbers = #tpu.dot_dimension_numbers<[1], [0], [0], [1], [0, 0, 1, 1], [], []>} : vector<64x96xbf16>, vector<96x64xbf16>, vector<64x64xf32> -> vector<64x64xf32>
    %77 = arith.addf %71, %76 : vector<64x64xf32>
    %c8_32 = arith.constant 8 : index
    %c0_33 = arith.constant 0 : index
    %78 = vector.load %arg8[%c8_32, %c0_33] : memref<80x96xf32, #tpu.memory_space<vmem>>, vector<64x96xf32>
    %79 = arith.truncf %78 : vector<64x96xf32> to vector<64x96xbf16>
    %c1 = arith.constant 1 : index
    %c0_34 = arith.constant 0 : index
    %c0_35 = arith.constant 0 : index
    %80 = vector.load %arg5[%c1, %c0_34, %c0_35] : memref<3x96x64xbf16, #tpu.memory_space<vmem>>, vector<1x96x64xbf16>
    %81 = vector.shape_cast %80 : vector<1x96x64xbf16> to vector<96x64xbf16>
    %cst_36 = arith.constant dense<0.000000e+00> : vector<64x64xf32>
    %82 = tpu.matmul %79, %81, %cst_36 {dimension_numbers = #tpu.dot_dimension_numbers<[1], [0], [0], [1], [0, 0, 1, 1], [], []>} : vector<64x96xbf16>, vector<96x64xbf16>, vector<64x64xf32> -> vector<64x64xf32>
    %83 = arith.addf %77, %82 : vector<64x64xf32>
    %c16 = arith.constant 16 : index
    %c0_37 = arith.constant 0 : index
    %84 = vector.load %arg8[%c16, %c0_37] : memref<80x96xf32, #tpu.memory_space<vmem>>, vector<64x96xf32>
    %85 = arith.truncf %84 : vector<64x96xf32> to vector<64x96xbf16>
    %c2 = arith.constant 2 : index
    %c0_38 = arith.constant 0 : index
    %c0_39 = arith.constant 0 : index
    %86 = vector.load %arg5[%c2, %c0_38, %c0_39] : memref<3x96x64xbf16, #tpu.memory_space<vmem>>, vector<1x96x64xbf16>
    %87 = vector.shape_cast %86 : vector<1x96x64xbf16> to vector<96x64xbf16>
    %cst_40 = arith.constant dense<0.000000e+00> : vector<64x64xf32>
    %88 = tpu.matmul %85, %87, %cst_40 {dimension_numbers = #tpu.dot_dimension_numbers<[1], [0], [0], [1], [0, 0, 1, 1], [], []>} : vector<64x96xbf16>, vector<96x64xbf16>, vector<64x64xf32> -> vector<64x64xf32>
    %89 = arith.addf %83, %88 : vector<64x64xf32>
    %c0_41 = arith.constant 0 : index
    %c0_42 = arith.constant 0 : index
    %90 = vector.load %arg6[%c0_41, %c0_42] : memref<1x64xf32, #tpu.memory_space<vmem>>, vector<1x64xf32>
    %91 = vector.broadcast %90 : vector<1x64xf32> to vector<64x64xf32>
    %92 = arith.addf %89, %91 : vector<64x64xf32>
    %c0_43 = arith.constant 0 : index
    %c0_44 = arith.constant 0 : index
    %c0_45 = arith.constant 0 : index
    %93 = vector.load %arg7[%c0_43, %c0_44, %c0_45] : memref<1x64x64xf32, #tpu.memory_space<vmem>>, vector<1x64x64xf32>
    %94 = vector.shape_cast %93 : vector<1x64x64xf32> to vector<64x64xf32>
    %95 = vector.shape_cast %92 : vector<64x64xf32> to vector<1x64x64xf32>
    tpu.vector_store %arg7[%c0_43, %c0_44, %c0_45], %95 {strides = array<i32>} : memref<1x64x64xf32, #tpu.memory_space<vmem>>, vector<1x64x64xf32>,
    return
  }
  func.func @transform_0(%arg0: i32) -> (i32, i32, i32, i32) {
    %c0_i32 = arith.constant 0 : i32
    %c0_i32_0 = arith.constant 0 : i32
    %c0_i32_1 = arith.constant 0 : i32
    %c0_i32_2 = arith.constant 0 : i32
    return %arg0, %c0_i32, %c0_i32_0, %c0_i32_1 : i32, i32, i32, i32
  }
  func.func @transform_1(%arg0: i32) -> (i32, i32) {
    %c0_i32 = arith.constant 0 : i32
    %c0_i32_0 = arith.constant 0 : i32
    %c0_i32_1 = arith.constant 0 : i32
    return %c0_i32, %c0_i32_0 : i32, i32
  }
  func.func @transform_2(%arg0: i32) -> (i32, i32) {
    %c0_i32 = arith.constant 0 : i32
    %c0_i32_0 = arith.constant 0 : i32
    %c0_i32_1 = arith.constant 0 : i32
    return %c0_i32, %c0_i32_0 : i32, i32
  }
  func.func @transform_3(%arg0: i32) -> (i32, i32) {
    %c0_i32 = arith.constant 0 : i32
    %c0_i32_0 = arith.constant 0 : i32
    %c0_i32_1 = arith.constant 0 : i32
    return %c0_i32, %c0_i32_0 : i32, i32
  }
  func.func @transform_4(%arg0: i32) -> (i32, i32, i32) {
    %c0_i32 = arith.constant 0 : i32
    %c0_i32_0 = arith.constant 0 : i32
    %c0_i32_1 = arith.constant 0 : i32
    %c0_i32_2 = arith.constant 0 : i32
    return %c0_i32, %c0_i32_0, %c0_i32_1 : i32, i32, i32
  }
  func.func @transform_5(%arg0: i32) -> (i32, i32) {
    %c0_i32 = arith.constant 0 : i32
    %c0_i32_0 = arith.constant 0 : i32
    %c0_i32_1 = arith.constant 0 : i32
    return %c0_i32, %c0_i32_0 : i32, i32
  }
  func.func @transform_6(%arg0: i32) -> (i32, i32, i32) {
    %c0_i32 = arith.constant 0 : i32
    %c0_i32_0 = arith.constant 0 : i32
    %c0_i32_1 = arith.constant 0 : i32
    return %arg0, %c0_i32, %c0_i32_0 : i32, i32, i32
  }
}

module attributes {stable_mosaic.version = 11 : i64} {
  func.func @_gn_silu_conv_skip_kernel(%arg0: i32, %arg1: memref<1x64x64xf32, #tpu.memory_space<vmem>>, %arg2: memref<1x8x8x32xf32, #tpu.memory_space<vmem>>, %arg3: memref<1x64xf32, #tpu.memory_space<vmem>>, %arg4: memref<1x64xf32, #tpu.memory_space<vmem>>, %arg5: memref<64x64xf32, #tpu.memory_space<vmem>>, %arg6: memref<3x192x64xbf16, #tpu.memory_space<vmem>>, %arg7: memref<1x64xf32, #tpu.memory_space<vmem>>, %arg8: memref<32x64xbf16, #tpu.memory_space<vmem>>, %arg9: memref<1x64xf32, #tpu.memory_space<vmem>>, %arg10: memref<1x64x64xf32, #tpu.memory_space<vmem>>, %arg11: memref<80x192xf32, #tpu.memory_space<vmem>>) attributes {dimension_semantics = [#tpu.dimension_semantics<parallel>], iteration_bounds = array<i64: 2>, scalar_prefetch = 0 : i64, scratch_operands = 1 : i64, tpu.core_type = #tpu.core_type<tc>, window_params = [{transform_indices = @transform_0, window_bounds = array<i64: 1, 64, 64>}, {transform_indices = @transform_1, window_bounds = array<i64: 1, 8, 8, 32>}, {pipeline_mode = #tpu.pipeline_mode<synchronous>, transform_indices = @transform_2, window_bounds = array<i64: 1, 64>}, {pipeline_mode = #tpu.pipeline_mode<synchronous>, transform_indices = @transform_3, window_bounds = array<i64: 1, 64>}, {pipeline_mode = #tpu.pipeline_mode<synchronous>, transform_indices = @transform_4, window_bounds = array<i64: 64, 64>}, {pipeline_mode = #tpu.pipeline_mode<synchronous>, transform_indices = @transform_5, window_bounds = array<i64: 3, 192, 64>}, {pipeline_mode = #tpu.pipeline_mode<synchronous>, transform_indices = @transform_6, window_bounds = array<i64: 1, 64>}, {pipeline_mode = #tpu.pipeline_mode<synchronous>, transform_indices = @transform_7, window_bounds = array<i64: 32, 64>}, {pipeline_mode = #tpu.pipeline_mode<synchronous>, transform_indices = @transform_8, window_bounds = array<i64: 1, 64>}, {transform_indices = @transform_9, window_bounds = array<i64: 1, 64, 64>}]} {
    %c0 = arith.constant 0 : index
    %c0_0 = arith.constant 0 : index
    %c0_1 = arith.constant 0 : index
    %0 = vector.load %arg1[%c0, %c0_0, %c0_1] : memref<1x64x64xf32, #tpu.memory_space<vmem>>, vector<1x64x64xf32>
    %1 = vector.shape_cast %0 : vector<1x64x64xf32> to vector<64x64xf32>
    %c0_2 = arith.constant 0 : index
    %c0_3 = arith.constant 0 : index
    %2 = vector.load %arg3[%c0_2, %c0_3] : memref<1x64xf32, #tpu.memory_space<vmem>>, vector<1x64xf32>
    %c0_4 = arith.constant 0 : index
    %c0_5 = arith.constant 0 : index
    %3 = vector.load %arg4[%c0_4, %c0_5] : memref<1x64xf32, #tpu.memory_space<vmem>>, vector<1x64xf32>
    %c0_6 = arith.constant 0 : index
    %c0_7 = arith.constant 0 : index
    %4 = vector.load %arg5[%c0_6, %c0_7] : memref<64x64xf32, #tpu.memory_space<vmem>>, vector<64x64xf32>
    %cst = arith.constant dense<0.000000e+00> : vector<64xf32>
    %5 = vector.multi_reduction <add>, %1, %cst [0] : vector<64x64xf32> to vector<64xf32>
    %6 = vector.shape_cast %5 : vector<64xf32> to vector<1x64xf32>
    %cst_8 = arith.constant 6.400000e+01 : f32
    %7 = vector.broadcast %cst_8 : f32 to vector<1x64xf32>
    %8 = arith.divf %6, %7 : vector<1x64xf32>
    %9 = arith.mulf %1, %1 : vector<64x64xf32>
    %cst_9 = arith.constant dense<0.000000e+00> : vector<64xf32>
    %10 = vector.multi_reduction <add>, %9, %cst_9 [0] : vector<64x64xf32> to vector<64xf32>
    %11 = vector.shape_cast %10 : vector<64xf32> to vector<1x64xf32>
    %cst_10 = arith.constant 6.400000e+01 : f32
    %12 = vector.broadcast %cst_10 : f32 to vector<1x64xf32>
    %13 = arith.divf %11, %12 : vector<1x64xf32>
    %14 = tpu.concatenate %8, %13 in 0 : vector<1x64xf32>, vector<1x64xf32> -> vector<2x64xf32>
    %cst_11 = arith.constant dense<0.000000e+00> : vector<2x64xf32>
    %15 = tpu.matmul %14, %4, %cst_11 {dimension_numbers = #tpu.dot_dimension_numbers<[1], [0], [0], [1], [0, 0, 1, 1], [], []>} : vector<2x64xf32>, vector<64x64xf32>, vector<2x64xf32> -> vector<2x64xf32>
    %16 = vector.extract_strided_slice %15 {offsets = [0, 0], sizes = [1, 64], strides = [1, 1]} : vector<2x64xf32> to vector<1x64xf32>
    %17 = vector.extract_strided_slice %15 {offsets = [1, 0], sizes = [1, 64], strides = [1, 1]} : vector<2x64xf32> to vector<1x64xf32>
    %18 = arith.mulf %16, %16 : vector<1x64xf32>
    %19 = arith.subf %17, %18 : vector<1x64xf32>
    %cst_12 = arith.constant 9.99999974E-6 : f32
    %20 = vector.broadcast %cst_12 : f32 to vector<1x64xf32>
    %21 = arith.addf %19, %20 : vector<1x64xf32>
    %22 = math.rsqrt %21 : vector<1x64xf32>
    %23 = vector.broadcast %16 : vector<1x64xf32> to vector<64x64xf32>
    %24 = arith.subf %1, %23 : vector<64x64xf32>
    %25 = arith.mulf %22, %2 : vector<1x64xf32>
    %26 = vector.broadcast %25 : vector<1x64xf32> to vector<64x64xf32>
    %27 = arith.mulf %24, %26 : vector<64x64xf32>
    %28 = vector.broadcast %3 : vector<1x64xf32> to vector<64x64xf32>
    %29 = arith.addf %27, %28 : vector<64x64xf32>
    %30 = arith.negf %29 : vector<64x64xf32>
    %31 = math.exp %30 : vector<64x64xf32>
    %cst_13 = arith.constant 1.000000e+00 : f32
    %32 = vector.broadcast %cst_13 : f32 to vector<64x64xf32>
    %33 = arith.addf %32, %31 : vector<64x64xf32>
    %34 = arith.divf %32, %33 : vector<64x64xf32>
    %35 = arith.mulf %29, %34 : vector<64x64xf32>
    %36 = tpu.iota {dimensions = array<i32: 0>} : vector<64x1xi32>
    %c8_i32 = arith.constant 8 : i32
    %c0_i32 = arith.constant 0 : i32
    %37 = arith.cmpi eq, %c8_i32, %c0_i32 : i32
    %c1_i32 = arith.constant 1 : i32
    %38 = arith.select %37, %c1_i32, %c8_i32 : i32
    %39 = vector.broadcast %38 : i32 to vector<64x1xi32>
    %40 = arith.remsi %36, %39 : vector<64x1xi32>
    %c0_i32_14 = arith.constant 0 : i32
    %41 = vector.broadcast %c0_i32_14 : i32 to vector<64x1xi32>
    %42 = arith.cmpi ne, %40, %41 : vector<64x1xi32>
    %c0_i32_15 = arith.constant 0 : i32
    %43 = vector.broadcast %c0_i32_15 : i32 to vector<64x1xi32>
    %44 = arith.cmpi slt, %40, %43 : vector<64x1xi32>
    %c0_i32_16 = arith.constant 0 : i32
    %45 = arith.cmpi slt, %38, %c0_i32_16 : i32
    %46 = vector.broadcast %45 : i1 to vector<64x1xi1>
    %47 = vector.broadcast %46 : vector<64x1xi1> to vector<64x1xi1>
    %48 = arith.xori %44, %47 : vector<64x1xi1>
    %49 = arith.andi %48, %42 : vector<64x1xi1>
    %50 = vector.broadcast %38 : i32 to vector<64x1xi32>
    %51 = arith.addi %40, %50 : vector<64x1xi32>
    %52 = arith.select %49, %51, %40 : vector<64x1xi1>, vector<64x1xi32>
    %c7_i32 = arith.constant 7 : i32
    %53 = vector.broadcast %c7_i32 : i32 to vector<64x1xi32>
    %54 = arith.cmpi eq, %52, %53 : vector<64x1xi32>
    %cst_17 = arith.constant 0.000000e+00 : f32
    %55 = vector.shape_cast %54 : vector<64x1xi1> to vector<64x1xi1>
    %56 = vector.broadcast %55 : vector<64x1xi1> to vector<64x64xi1>
    %57 = vector.broadcast %cst_17 : f32 to vector<64x64xf32>
    %58 = arith.select %56, %57, %35 : vector<64x64xi1>, vector<64x64xf32>
    %c0_i32_18 = arith.constant 0 : i32
    %59 = vector.broadcast %c0_i32_18 : i32 to vector<64x1xi32>
    %60 = arith.cmpi eq, %52, %59 : vector<64x1xi32>
    %cst_19 = arith.constant 0.000000e+00 : f32
    %61 = vector.shape_cast %60 : vector<64x1xi1> to vector<64x1xi1>
    %62 = vector.broadcast %61 : vector<64x1xi1> to vector<64x64xi1>
    %63 = vector.broadcast %cst_19 : f32 to vector<64x64xf32>
    %64 = arith.select %62, %63, %35 : vector<64x64xi1>, vector<64x64xf32>
    %cst_20 = arith.constant 0.000000e+00 : f32
    %65 = vector.broadcast %cst_20 : f32 to vector<80x192xf32>
    %c0_21 = arith.constant 0 : index
    %c0_22 = arith.constant 0 : index
    %66 = vector.load %arg11[%c0_21, %c0_22] : memref<80x192xf32, #tpu.memory_space<vmem>>, vector<80x192xf32>
    tpu.vector_store %arg11[%c0_21, %c0_22], %65 {strides = array<i32>} : memref<80x192xf32, #tpu.memory_space<vmem>>, vector<80x192xf32>,
    %c9 = arith.constant 9 : index
    %c0_23 = arith.constant 0 : index
    %67 = vector.load %arg11[%c9, %c0_23] : memref<80x192xf32, #tpu.memory_space<vmem>>, vector<64x64xf32>
    tpu.vector_store %arg11[%c9, %c0_23], %58 {strides = array<i32>} : memref<80x192xf32, #tpu.memory_space<vmem>>, vector<64x64xf32>,
    %c8 = arith.constant 8 : index
    %c64 = arith.constant 64 : index
    %68 = vector.load %arg11[%c8, %c64] : memref<80x192xf32, #tpu.memory_space<vmem>>, vector<64x64xf32>
    tpu.vector_store %arg11[%c8, %c64], %35 {strides = array<i32>} : memref<80x192xf32, #tpu.memory_space<vmem>>, vector<64x64xf32>,
    %c7 = arith.constant 7 : index
    %c128 = arith.constant 128 : index
    %69 = vector.load %arg11[%c7, %c128] : memref<80x192xf32, #tpu.memory_space<vmem>>, vector<64x64xf32>
    tpu.vector_store %arg11[%c7, %c128], %64 {strides = array<i32>} : memref<80x192xf32, #tpu.memory_space<vmem>>, vector<64x64xf32>,
    %cst_24 = arith.constant 0.000000e+00 : f32
    %70 = vector.broadcast %cst_24 : f32 to vector<64x64xf32>
    %c0_25 = arith.constant 0 : index
    %c0_26 = arith.constant 0 : index
    %71 = vector.load %arg11[%c0_25, %c0_26] : memref<80x192xf32, #tpu.memory_space<vmem>>, vector<64x192xf32>
    %72 = arith.truncf %71 : vector<64x192xf32> to vector<64x192xbf16>
    %c0_27 = arith.constant 0 : index
    %c0_28 = arith.constant 0 : index
    %c0_29 = arith.constant 0 : index
    %73 = vector.load %arg6[%c0_27, %c0_28, %c0_29] : memref<3x192x64xbf16, #tpu.memory_space<vmem>>, vector<1x192x64xbf16>
    %74 = vector.shape_cast %73 : vector<1x192x64xbf16> to vector<192x64xbf16>
    %cst_30 = arith.constant dense<0.000000e+00> : vector<64x64xf32>
    %75 = tpu.matmul %72, %74, %cst_30 {dimension_numbers = #tpu.dot_dimension_numbers<[1], [0], [0], [1], [0, 0, 1, 1], [], []>} : vector<64x192xbf16>, vector<192x64xbf16>, vector<64x64xf32> -> vector<64x64xf32>
    %76 = arith.addf %70, %75 : vector<64x64xf32>
    %c8_31 = arith.constant 8 : index
    %c0_32 = arith.constant 0 : index
    %77 = vector.load %arg11[%c8_31, %c0_32] : memref<80x192xf32, #tpu.memory_space<vmem>>, vector<64x192xf32>
    %78 = arith.truncf %77 : vector<64x192xf32> to vector<64x192xbf16>
    %c1 = arith.constant 1 : index
    %c0_33 = arith.constant 0 : index
    %c0_34 = arith.constant 0 : index
    %79 = vector.load %arg6[%c1, %c0_33, %c0_34] : memref<3x192x64xbf16, #tpu.memory_space<vmem>>, vector<1x192x64xbf16>
    %80 = vector.shape_cast %79 : vector<1x192x64xbf16> to vector<192x64xbf16>
    %cst_35 = arith.constant dense<0.000000e+00> : vector<64x64xf32>
    %81 = tpu.matmul %78, %80, %cst_35 {dimension_numbers = #tpu.dot_dimension_numbers<[1], [0], [0], [1], [0, 0, 1, 1], [], []>} : vector<64x192xbf16>, vector<192x64xbf16>, vector<64x64xf32> -> vector<64x64xf32>
    %82 = arith.addf %76, %81 : vector<64x64xf32>
    %c16 = arith.constant 16 : index
    %c0_36 = arith.constant 0 : index
    %83 = vector.load %arg11[%c16, %c0_36] : memref<80x192xf32, #tpu.memory_space<vmem>>, vector<64x192xf32>
    %84 = arith.truncf %83 : vector<64x192xf32> to vector<64x192xbf16>
    %c2 = arith.constant 2 : index
    %c0_37 = arith.constant 0 : index
    %c0_38 = arith.constant 0 : index
    %85 = vector.load %arg6[%c2, %c0_37, %c0_38] : memref<3x192x64xbf16, #tpu.memory_space<vmem>>, vector<1x192x64xbf16>
    %86 = vector.shape_cast %85 : vector<1x192x64xbf16> to vector<192x64xbf16>
    %cst_39 = arith.constant dense<0.000000e+00> : vector<64x64xf32>
    %87 = tpu.matmul %84, %86, %cst_39 {dimension_numbers = #tpu.dot_dimension_numbers<[1], [0], [0], [1], [0, 0, 1, 1], [], []>} : vector<64x192xbf16>, vector<192x64xbf16>, vector<64x64xf32> -> vector<64x64xf32>
    %88 = arith.addf %82, %87 : vector<64x64xf32>
    %c0_40 = arith.constant 0 : index
    %c0_41 = arith.constant 0 : index
    %89 = vector.load %arg7[%c0_40, %c0_41] : memref<1x64xf32, #tpu.memory_space<vmem>>, vector<1x64xf32>
    %90 = vector.broadcast %89 : vector<1x64xf32> to vector<64x64xf32>
    %91 = arith.addf %88, %90 : vector<64x64xf32>
    %c0_42 = arith.constant 0 : index
    %c0_43 = arith.constant 0 : index
    %c0_44 = arith.constant 0 : index
    %c0_45 = arith.constant 0 : index
    %92 = vector.load %arg2[%c0_42, %c0_43, %c0_44, %c0_45] : memref<1x8x8x32xf32, #tpu.memory_space<vmem>>, vector<1x8x8x32xf32>
    %93 = vector.shape_cast %92 : vector<1x8x8x32xf32> to vector<8x8x32xf32>
    %94 = vector.shape_cast %93 : vector<8x8x32xf32> to vector<64x32xf32>
    %95 = arith.truncf %94 : vector<64x32xf32> to vector<64x32xbf16>
    %c0_46 = arith.constant 0 : index
    %c0_47 = arith.constant 0 : index
    %96 = vector.load %arg8[%c0_46, %c0_47] : memref<32x64xbf16, #tpu.memory_space<vmem>>, vector<32x64xbf16>
    %cst_48 = arith.constant dense<0.000000e+00> : vector<64x64xf32>
    %97 = tpu.matmul %95, %96, %cst_48 {dimension_numbers = #tpu.dot_dimension_numbers<[1], [0], [0], [1], [0, 0, 1, 1], [], []>} : vector<64x32xbf16>, vector<32x64xbf16>, vector<64x64xf32> -> vector<64x64xf32>
    %98 = arith.addf %91, %97 : vector<64x64xf32>
    %c0_49 = arith.constant 0 : index
    %c0_50 = arith.constant 0 : index
    %99 = vector.load %arg9[%c0_49, %c0_50] : memref<1x64xf32, #tpu.memory_space<vmem>>, vector<1x64xf32>
    %100 = vector.broadcast %99 : vector<1x64xf32> to vector<64x64xf32>
    %101 = arith.addf %98, %100 : vector<64x64xf32>
    %c0_51 = arith.constant 0 : index
    %c0_52 = arith.constant 0 : index
    %c0_53 = arith.constant 0 : index
    %102 = vector.load %arg10[%c0_51, %c0_52, %c0_53] : memref<1x64x64xf32, #tpu.memory_space<vmem>>, vector<1x64x64xf32>
    %103 = vector.shape_cast %102 : vector<1x64x64xf32> to vector<64x64xf32>
    %104 = vector.shape_cast %101 : vector<64x64xf32> to vector<1x64x64xf32>
    tpu.vector_store %arg10[%c0_51, %c0_52, %c0_53], %104 {strides = array<i32>} : memref<1x64x64xf32, #tpu.memory_space<vmem>>, vector<1x64x64xf32>,
    return
  }
  func.func @transform_0(%arg0: i32) -> (i32, i32, i32) {
    %c0_i32 = arith.constant 0 : i32
    %c0_i32_0 = arith.constant 0 : i32
    %c0_i32_1 = arith.constant 0 : i32
    return %arg0, %c0_i32, %c0_i32_0 : i32, i32, i32
  }
  func.func @transform_1(%arg0: i32) -> (i32, i32, i32, i32) {
    %c0_i32 = arith.constant 0 : i32
    %c0_i32_0 = arith.constant 0 : i32
    %c0_i32_1 = arith.constant 0 : i32
    %c0_i32_2 = arith.constant 0 : i32
    return %arg0, %c0_i32, %c0_i32_0, %c0_i32_1 : i32, i32, i32, i32
  }
  func.func @transform_2(%arg0: i32) -> (i32, i32) {
    %c0_i32 = arith.constant 0 : i32
    %c0_i32_0 = arith.constant 0 : i32
    %c0_i32_1 = arith.constant 0 : i32
    return %c0_i32, %c0_i32_0 : i32, i32
  }
  func.func @transform_3(%arg0: i32) -> (i32, i32) {
    %c0_i32 = arith.constant 0 : i32
    %c0_i32_0 = arith.constant 0 : i32
    %c0_i32_1 = arith.constant 0 : i32
    return %c0_i32, %c0_i32_0 : i32, i32
  }
  func.func @transform_4(%arg0: i32) -> (i32, i32) {
    %c0_i32 = arith.constant 0 : i32
    %c0_i32_0 = arith.constant 0 : i32
    %c0_i32_1 = arith.constant 0 : i32
    return %c0_i32, %c0_i32_0 : i32, i32
  }
  func.func @transform_5(%arg0: i32) -> (i32, i32, i32) {
    %c0_i32 = arith.constant 0 : i32
    %c0_i32_0 = arith.constant 0 : i32
    %c0_i32_1 = arith.constant 0 : i32
    %c0_i32_2 = arith.constant 0 : i32
    return %c0_i32, %c0_i32_0, %c0_i32_1 : i32, i32, i32
  }
  func.func @transform_6(%arg0: i32) -> (i32, i32) {
    %c0_i32 = arith.constant 0 : i32
    %c0_i32_0 = arith.constant 0 : i32
    %c0_i32_1 = arith.constant 0 : i32
    return %c0_i32, %c0_i32_0 : i32, i32
  }
  func.func @transform_7(%arg0: i32) -> (i32, i32) {
    %c0_i32 = arith.constant 0 : i32
    %c0_i32_0 = arith.constant 0 : i32
    %c0_i32_1 = arith.constant 0 : i32
    return %c0_i32, %c0_i32_0 : i32, i32
  }
  func.func @transform_8(%arg0: i32) -> (i32, i32) {
    %c0_i32 = arith.constant 0 : i32
    %c0_i32_0 = arith.constant 0 : i32
    %c0_i32_1 = arith.constant 0 : i32
    return %c0_i32, %c0_i32_0 : i32, i32
  }
  func.func @transform_9(%arg0: i32) -> (i32, i32, i32) {
    %c0_i32 = arith.constant 0 : i32
    %c0_i32_0 = arith.constant 0 : i32
    %c0_i32_1 = arith.constant 0 : i32
    return %arg0, %c0_i32, %c0_i32_0 : i32, i32, i32
  }
}

</mosaic_0001>

<llo_original>
// kernel: residual_block_pallas.2
$region0: #{residual_block_pallas.2}
  #allocation0 [shape = 'u32[]', space=smem, size = 0x4, offset = 0x4, fixed_abs, tag = 'smem constant byte address 0x4 - core index']
  #allocation1 [shape = 'u32[144,128]{1,0:T(1,128)}', space=vmem, size = 0x12000, scoped, tag = 'internal scratch']
  #allocation2 [shape = 'f32[80,96]{1,0:T(8,128)}', space=vmem, size = 0xa000, scoped, tag = 'scratch operand']
  %s0 = inlined_call_operand.vmem [shape: f32[2,8,8,32], index: 0, kind: input, shape index: {}]
  %s1 = inlined_call_operand.vmem [shape: f32[1,32], index: 1, kind: input, shape index: {}]
  %s2 = inlined_call_operand.vmem [shape: f32[1,32], index: 2, kind: input, shape index: {}]
  %s3 = inlined_call_operand.vmem [shape: f32[32,32], index: 3, kind: input, shape index: {}]
  %s4 = inlined_call_operand.vmem [shape: bf16[3,96,64], index: 4, kind: input, shape index: {}]
  %s5 = inlined_call_operand.vmem [shape: f32[1,64], index: 5, kind: input, shape index: {}]
  %s6 = inlined_call_operand.vmem [shape: f32[2,64,64], index: 6, kind: output, shape index: {}]
  %s7 = sld [smem:[#allocation0]]
  $region57: #{residual_block_pallas.2} parent=0
    _
  %s9 = ssub.s32 1, %s7
  %s10 = scalar_select 0, %s9, %s7
  loop: start=0, step=1, limit=4
  $region2: #{residual_block_pallas.2} parent=0 // loop_pre_header
    _
  $region3: #{residual_block_pallas.2} parent=0 // loop_header
    %s12 = sphi 0, %s16
    %p13 = scmp.ge.s32.totalorder %s12, 4
    %s22 = sphi 0, %s24
    %s25 = sphi 0, %s22
    %s26 = sphi 0, %s25
    %s42 = sphi 0, %s26
    %s46 = sphi 0, %s46
    %s48 = sphi 0, %s46
    %s49 = sphi 0, %s48
    %s63 = sphi 0, %s49
    %s67 = sphi 0, %s67
    %s69 = sphi 0, %s67
    %s70 = sphi 0, %s69
    %s84 = sphi 0, %s70
    %s88 = sphi 0, %s88
    %s90 = sphi 0, %s88
    %s91 = sphi 0, %s90
    %s105 = sphi 0, %s91
    %s109 = sphi 0, %s109
    %s111 = sphi 0, %s109
    %s112 = sphi 0, %s111
    %s126 = sphi 0, %s112
    %s130 = sphi 0, %s130
    %s132 = sphi 0, %s130
    %s133 = sphi 0, %s132
    %s147 = sphi 0, %s133
    %s153 = sphi 0, %s155
    %s156 = sphi 0, %s153
    %s157 = sphi 0, %s156
    %s173 = sphi 0, %s157
  $region4: #{residual_block_pallas.2} parent=0 // loop_header_branch
    %15 = sbr.rel (%p13) target = $region8
  $region5: #{residual_block_pallas.2} parent=0 // loop_body
    %s17 = ssub.s32 %s12, 1
    %s18 = ssub.s32 %s12, 2
    %s19 = sadd.s32 %s12, 1
    %s20 = ssub.s32 %s12, %s19
    %p21 = scmp.eq.s32.totalorder %s20, 0
    %s23 = sadd.s32 %s22, 1
    %s24 = scalar_select %p21, %s22, %s23
    %p27 = pneg %p21
    %p28 = scmp.eq.s32.totalorder %s12, 1
    %p29 = por %p27, %p28
    %p30 = scmp.ne.s32.totalorder %s22, %s25
    %p31 = scmp.eq.s32.totalorder %s12, 0
    %p32 = por %p30, %p31
    %p33 = scmp.ne.s32.totalorder %s22, %s25
    %p34 = scmp.eq.s32.totalorder %s17, 1
    %p35 = por %p33, %p34
    %p36 = scmp.ne.s32.totalorder %s25, %s26
    %p37 = scmp.eq.s32.totalorder %s17, 0
    %p38 = por %p36, %p37
    %p39 = scmp.ne.s32.totalorder %s25, %s26
    %p40 = scmp.eq.s32.totalorder %s18, 1
    %p41 = por %p39, %p40
    %p43 = scmp.ne.s32.totalorder %s26, %s42
    %p44 = scmp.eq.s32.totalorder %s18, 0
    %p45 = por %p43, %p44
    %s47 = sadd.s32 %s46, 1
    %p50 = scmp.eq.s32.totalorder %s12, 1
    %p51 = scmp.ne.s32.totalorder %s46, %s48
    %p52 = scmp.eq.s32.totalorder %s12, 0
    %p53 = por %p51, %p52
    %p54 = scmp.ne.s32.totalorder %s46, %s48
    %p55 = scmp.eq.s32.totalorder %s17, 1
    %p56 = por %p54, %p55
    %p57 = scmp.ne.s32.totalorder %s48, %s49
    %p58 = scmp.eq.s32.totalorder %s17, 0
    %p59 = por %p57, %p58
    %p60 = scmp.ne.s32.totalorder %s48, %s49
    %p61 = scmp.eq.s32.totalorder %s18, 1
    %p62 = por %p60, %p61
    %p64 = scmp.ne.s32.totalorder %s49, %s63
    %p65 = scmp.eq.s32.totalorder %s18, 0
    %p66 = por %p64, %p65
    %s68 = sadd.s32 %s67, 1
    %p71 = scmp.eq.s32.totalorder %s12, 1
    %p72 = scmp.ne.s32.totalorder %s67, %s69
    %p73 = scmp.eq.s32.totalorder %s12, 0
    %p74 = por %p72, %p73
    %p75 = scmp.ne.s32.totalorder %s67, %s69
    %p76 = scmp.eq.s32.totalorder %s17, 1
    %p77 = por %p75, %p76
    %p78 = scmp.ne.s32.totalorder %s69, %s70
    %p79 = scmp.eq.s32.totalorder %s17, 0
    %p80 = por %p78, %p79
    %p81 = scmp.ne.s32.totalorder %s69, %s70
    %p82 = scmp.eq.s32.totalorder %s18, 1
    %p83 = por %p81, %p82
    %p85 = scmp.ne.s32.totalorder %s70, %s84
    %p86 = scmp.eq.s32.totalorder %s18, 0
    %p87 = por %p85, %p86
    %s89 = sadd.s32 %s88, 1
    %p92 = scmp.eq.s32.totalorder %s12, 1
    %p93 = scmp.ne.s32.totalorder %s88, %s90
    %p94 = scmp.eq.s32.totalorder %s12, 0
    %p95 = por %p93, %p94
    %p96 = scmp.ne.s32.totalorder %s88, %s90
    %p97 = scmp.eq.s32.totalorder %s17, 1
    %p98 = por %p96, %p97
    %p99 = scmp.ne.s32.totalorder %s90, %s91
    %p100 = scmp.eq.s32.totalorder %s17, 0
    %p101 = por %p99, %p100
    %p102 = scmp.ne.s32.totalorder %s90, %s91
    %p103 = scmp.eq.s32.totalorder %s18, 1
    %p104 = por %p102, %p103
    %p106 = scmp.ne.s32.totalorder %s91, %s105
    %p107 = scmp.eq.s32.totalorder %s18, 0
    %p108 = por %p106, %p107
    %s110 = sadd.s32 %s109, 1
    %p113 = scmp.eq.s32.totalorder %s12, 1
    %p114 = scmp.ne.s32.totalorder %s109, %s111
    %p115 = scmp.eq.s32.totalorder %s12, 0
    %p116 = por %p114, %p115
    %p117 = scmp.ne.s32.totalorder %s109, %s111
    %p118 = scmp.eq.s32.totalorder %s17, 1
    %p119 = por %p117, %p118
    %p120 = scmp.ne.s32.totalorder %s111, %s112
    %p121 = scmp.eq.s32.totalorder %s17, 0
    %p122 = por %p120, %p121
    %p123 = scmp.ne.s32.totalorder %s111, %s112
    %p124 = scmp.eq.s32.totalorder %s18, 1
    %p125 = por %p123, %p124
    %p127 = scmp.ne.s32.totalorder %s112, %s126
    %p128 = scmp.eq.s32.totalorder %s18, 0
    %p129 = por %p127, %p128
    %s131 = sadd.s32 %s130, 1
    %p134 = scmp.eq.s32.totalorder %s12, 1
    %p135 = scmp.ne.s32.totalorder %s130, %s132
    %p136 = scmp.eq.s32.totalorder %s12, 0
    %p137 = por %p135, %p136
    %p138 = scmp.ne.s32.totalorder %s130, %s132
    %p139 = scmp.eq.s32.totalorder %s17, 1
    %p140 = por %p138, %p139
    %p141 = scmp.ne.s32.totalorder %s132, %s133
    %p142 = scmp.eq.s32.totalorder %s17, 0
    %p143 = por %p141, %p142
    %p144 = scmp.ne.s32.totalorder %s132, %s133
    %p145 = scmp.eq.s32.totalorder %s18, 1
    %p146 = por %p144, %p145
    %p148 = scmp.ne.s32.totalorder %s133, %s147
    %p149 = scmp.eq.s32.totalorder %s18, 0
    %p150 = por %p148, %p149
    %s151 = ssub.s32 %s12, %s19
    %p152 = scmp.eq.s32.totalorder %s151, 0
    %s154 = sadd.s32 %s153, 1
    %s155 = scalar_select %p152, %s153, %s154
    %p158 = pneg %p152
    %p159 = scmp.eq.s32.totalorder %s12, 1
    %p160 = por %p158, %p159
    %p161 = scmp.ne.s32.totalorder %s153, %s156
    %p162 = scmp.eq.s32.totalorder %s12, 0
    %p163 = por %p161, %p162
    %p164 = scmp.ne.s32.totalorder %s153, %s156
    %p165 = scmp.eq.s32.totalorder %s17, 1
    %p166 = por %p164, %p165
    %p167 = scmp.ne.s32.totalorder %s156, %s157
    %p168 = scmp.eq.s32.totalorder %s17, 0
    %p169 = por %p167, %p168
    %p170 = scmp.ne.s32.totalorder %s156, %s157
    %p171 = scmp.eq.s32.totalorder %s18, 1
    %p172 = por %p170, %p171
    %p174 = scmp.ne.s32.totalorder %s157, %s173
    %p175 = scmp.eq.s32.totalorder %s18, 0
    %p176 = por %p174, %p175
    %p177 = scmp.le.s32.totalorder 1, %s12
    %p178 = scmp.lt.s32.totalorder %s12, 3
    %p179 = pnand %p177, %p178
    %p180 = pneg %p179
    // Predicated region
    $region9: #{residual_block_pallas.2} parent=5 // pred_check
      _
    $region10: #{residual_block_pallas.2} parent=5 // pred_check_branch
      %182 = sbr.rel (%p179) target = $region12
    $region11: #{residual_block_pallas.2} parent=5 // pred_region
      %s183 = ssub.s32 %s12, 1
      // Predicated region
      $region13: #{residual_block_pallas.2} parent=11 // pred_check
        %p184 = pneg %p59
      $region14: #{residual_block_pallas.2} parent=11 // pred_check_branch
        %186 = sbr.rel (%p184) target = $region16
      $region15: #{residual_block_pallas.2} parent=11 // pred_region
        _
      $region16: #{residual_block_pallas.2} parent=11 // pred_fallthru
        _
      // Predicated region
      $region17: #{residual_block_pallas.2} parent=11 // pred_check
        %p187 = pneg %p80
      $region18: #{residual_block_pallas.2} parent=11 // pred_check_branch
        %189 = sbr.rel (%p187) target = $region20
      $region19: #{residual_block_pallas.2} parent=11 // pred_region
        _
      $region20: #{residual_block_pallas.2} parent=11 // pred_fallthru
        _
      // Predicated region
      $region21: #{residual_block_pallas.2} parent=11 // pred_check
        %p190 = pneg %p101
      $region22: #{residual_block_pallas.2} parent=11 // pred_check_branch
        %192 = sbr.rel (%p190) target = $region24
      $region23: #{residual_block_pallas.2} parent=11 // pred_region
        _
      $region24: #{residual_block_pallas.2} parent=11 // pred_fallthru
        _
      // Predicated region
      $region25: #{residual_block_pallas.2} parent=11 // pred_check
        %p193 = pneg %p122
      $region26: #{residual_block_pallas.2} parent=11 // pred_check_branch
        %195 = sbr.rel (%p193) target = $region28
      $region27: #{residual_block_pallas.2} parent=11 // pred_region
        _
      $region28: #{residual_block_pallas.2} parent=11 // pred_fallthru
        _
      // Predicated region
      $region29: #{residual_block_pallas.2} parent=11 // pred_check
        %p196 = pneg %p143
      $region30: #{residual_block_pallas.2} parent=11 // pred_check_branch
        %198 = sbr.rel (%p196) target = $region32
      $region31: #{residual_block_pallas.2} parent=11 // pred_region
        _
      $region32: #{residual_block_pallas.2} parent=11 // pred_fallthru
        _
    $region12: #{residual_block_pallas.2} parent=5 // pred_fallthru
      _
    %p199 = scmp.lt.s32.totalorder %s12, 2
    // Predicated region
    $region33: #{residual_block_pallas.2} parent=5 // pred_check
      %p200 = pneg %p199
    $region34: #{residual_block_pallas.2} parent=5 // pred_check_branch
      %202 = sbr.rel (%p200) target = $region36
    $region35: #{residual_block_pallas.2} parent=5 // pred_region
      // Predicated region
      $region37: #{residual_block_pallas.2} parent=35 // pred_check
        %p203 = pneg %p32
      $region38: #{residual_block_pallas.2} parent=35 // pred_check_branch
        %205 = sbr.rel (%p203) target = $region40
      $region39: #{residual_block_pallas.2} parent=35 // pred_region
        %p206 = scmp.lt.s32.totalorder %s12, 1
        %s207 = scalar_select %p206, %s12, 1
        %s208 = smul.addr %s207, 8
        %s209 = smul.addr %s208, 8
        %s210 = scalar_lea.vmem %s0, %s209
      $region40: #{residual_block_pallas.2} parent=35 // pred_fallthru
        _
    $region36: #{residual_block_pallas.2} parent=5 // pred_fallthru
      _
    %p211 = scmp.le.s32.totalorder 1, %s12
    %p212 = scmp.lt.s32.totalorder %s12, 3
    %p213 = pnand %p211, %p212
    %p214 = pneg %p213
    // Predicated region
    $region41: #{residual_block_pallas.2} parent=5 // pred_check
      _
    $region42: #{residual_block_pallas.2} parent=5 // pred_check_branch
      %216 = sbr.rel (%p213) target = $region44
    $region43: #{residual_block_pallas.2} parent=5 // pred_region
      %s217 = ssub.s32 %s12, 1
      %p218 = scmp.lt.s32.totalorder %s17, 1
      %s219 = scalar_select %p218, %s17, 1
      %s220 = smul.addr %s219, 8
      %s221 = smul.addr %s220, 8
      %s222 = scalar_lea.vmem %s0, %s221
      %p223 = pneg %p38
      %p224 = pneg %p35
      %p225 = pneg %p59
      %p226 = pneg %p56
      %p227 = pneg %p80
      %p228 = pneg %p77
      %p229 = pneg %p101
      %p230 = pneg %p98
      %p231 = pneg %p122
      %p232 = pneg %p119
      %p233 = pneg %p143
      %p234 = pneg %p140
      %p235 = pneg %p169
      %p236 = pneg %p166
      %p237 = scmp.lt.s32.totalorder %s17, 1
      %s238 = scalar_select %p237, %s17, 1
      %s239 = smul.addr %s238, 8
      %s240 = smul.addr %s239, 8
      %s241 = scalar_lea.vmem %s6, %s240
      %p242 = scmp.lt.s32.totalorder %s17, 1
      %s243 = scalar_select %p242, %s17, 1
      %s244 = smul.addr %s243, 8
      %s245 = smul.addr %s244, 8
      %s246 = scalar_lea.vmem %s0, %s245
      %p247 = scmp.lt.s32.totalorder %s17, 1
      %s248 = scalar_select %p247, %s17, 1
      %s249 = smul.addr %s248, 8
      %s250 = smul.addr %s249, 8
      %s251 = scalar_lea.vmem %s6, %s250
      %v253 = vld [vmem:[%s246] sm:$0xff]
      %v254 = vld [vmem:[%s246 + $0x8] sm:$0xff]
      %v255 = vld [vmem:[%s246 + $0x10] sm:$0xff]
      %v256 = vld [vmem:[%s246 + $0x18] sm:$0xff]
      %v257 = vld [vmem:[%s246 + $0x20] sm:$0xff]
      %v258 = vld [vmem:[%s246 + $0x28] sm:$0xff]
      %v259 = vld [vmem:[%s246 + $0x30] sm:$0xff]
      %v260 = vld [vmem:[%s246 + $0x38] sm:$0xff]
      %v261 = vld [vmem:[%s1] sm:$0x1]
      %v262 = vld [vmem:[%s2] sm:$0x1]
      %v263 = vld [vmem:[%s3] sm:$0xff]
      %v264 = vld [vmem:[%s3 + $0x8] sm:$0xff]
      %v265 = vld [vmem:[%s3 + $0x10] sm:$0xff]
      %v266 = vld [vmem:[%s3 + $0x18] sm:$0xff]
      %vm267 = vcmask 261120
      %v268 = vsel %vm267, %v253, 0.0
      %v269 = vsel %vm267, %v254, 0.0
      %v270 = vadd.f32 %v268, %v269
      %v271 = vsel %vm267, %v255, 0.0
      %v272 = vadd.f32 %v270, %v271
      %v273 = vsel %vm267, %v256, 0.0
      %v274 = vadd.f32 %v272, %v273
      %v275 = vsel %vm267, %v257, 0.0
      %v276 = vadd.f32 %v274, %v275
      %v277 = vsel %vm267, %v258, 0.0
      %v278 = vadd.f32 %v276, %v277
      %v279 = vsel %vm267, %v259, 0.0
      %v280 = vadd.f32 %v278, %v279
      %v281 = vsel %vm267, %v260, 0.0
      %v282 = vadd.f32 %v280, %v281
      %v283 = vrot.slane %v282, 4
      %v284 = vadd.f32 %v282, %v283
      %v285 = vrot.slane %v284, 2
      %v286 = vadd.f32 %v284, %v285
      %v287 = vrot.slane %v286, 1
      %v288 = vadd.f32 %v286, %v287
      %v289 = vrcp.pop 64.0
      %v290 = vmul.f32 %v288, %v289
      %v291 = vmul.f32 %v253, %v253
      %v292 = vmul.f32 %v254, %v254
      %v293 = vmul.f32 %v255, %v255
      %v294 = vmul.f32 %v256, %v256
      %v295 = vmul.f32 %v257, %v257
      %v296 = vmul.f32 %v258, %v258
      %v297 = vmul.f32 %v259, %v259
      %v298 = vmul.f32 %v260, %v260
      %v299 = vsel %vm267, %v291, 0.0
      %v300 = vsel %vm267, %v292, 0.0
      %v301 = vadd.f32 %v299, %v300
      %v302 = vsel %vm267, %v293, 0.0
      %v303 = vadd.f32 %v301, %v302
      %v304 = vsel %vm267, %v294, 0.0
      %v305 = vadd.f32 %v303, %v304
      %v306 = vsel %vm267, %v295, 0.0
      %v307 = vadd.f32 %v305, %v306
      %v308 = vsel %vm267, %v296, 0.0
      %v309 = vadd.f32 %v307, %v308
      %v310 = vsel %vm267, %v297, 0.0
      %v311 = vadd.f32 %v309, %v310
      %v312 = vsel %vm267, %v298, 0.0
      %v313 = vadd.f32 %v311, %v312
      %v314 = vrot.slane %v313, 4
      %v315 = vadd.f32 %v313, %v314
      %v316 = vrot.slane %v315, 2
      %v317 = vadd.f32 %v315, %v316
      %v318 = vrot.slane %v317, 1
      %v319 = vadd.f32 %v317, %v318
      %v320 = vmul.f32 %v319, %v289
      %vm321 = vcmask 1040384
      %v322 = vsel %vm321, %v290, %v320
      %v324 = vsel %vm267, %v322, 0
      %326 = vmatprep.subr.mxu0 0.0
      %327 = vmatpush1.msra.mxu0 %v263
      %328 = vmatprep.subr.mxu0 0.0
      %329 = vmatpush1.msra.mxu0 %v264
      %330 = vmatprep.subr.mxu0 0.0
      %331 = vmatpush1.msra.mxu0 %v265
      %332 = vmatprep.subr.mxu0 0.0
      %333 = vmatpush1.msra.mxu0 %v266
      %334 = vmatprep.subr.mxu0 0.0
      %335 = vmatpush1.msra.mxu0 0.0
      %336 = vmatprep.subr.mxu0 0.0
      %337 = vmatpush1.msra.mxu0 0.0
      %338 = vmatprep.subr.mxu0 0.0
      %339 = vmatpush1.msra.mxu0 0.0
      %340 = vmatprep.subr.mxu0 0.0
      %341 = vmatpush1.msra.mxu0 0.0
      %342 = vmatprep.subr.mxu0 0.0
      %343 = vmatpush1.msra.mxu0 0.0
      %344 = vmatprep.subr.mxu0 0.0
      %345 = vmatpush1.msra.mxu0 0.0
      %346 = vmatprep.subr.mxu0 0.0
      %347 = vmatpush1.msra.mxu0 0.0
      %348 = vmatprep.subr.mxu0 0.0
      %349 = vmatpush1.msra.mxu0 0.0
      %350 = vmatprep.subr.mxu0 0.0
      %351 = vmatpush1.msra.mxu0 0.0
      %352 = vmatprep.subr.mxu0 0.0
      %353 = vmatpush1.msra.mxu0 0.0
      %354 = vmatprep.subr.mxu0 0.0
      %355 = vmatpush1.msra.mxu0 0.0
      %356 = vmatprep.subr.mxu0 0.0
      %357 = vmatpush1.msra.mxu0 0.0
      %358 = vmatprep.subr.mxu0 0.0
      %359 = vmatpush1.msra.mxu0 0.0
      %360 = vmatprep.subr.mxu0 0.0
      %361 = vmatpush1.msra.mxu0 0.0
      %362 = vmatprep.subr.mxu0 0.0
      %363 = vmatpush1.msra.mxu0 0.0
      %364 = vmatprep.subr.mxu0 0.0
      %365 = vmatpush1.msra.mxu0 0.0
      %366 = vmatprep.subr.mxu0 0.0
      %367 = vmatpush1.msra.mxu0 0.0
      %368 = vmatprep.subr.mxu0 0.0
      %369 = vmatpush1.msra.mxu0 0.0
      %370 = vmatprep.subr.mxu0 0.0
      %371 = vmatpush1.msra.mxu0 0.0
      %372 = vmatprep.subr.mxu0 0.0
      %373 = vmatpush1.msra.mxu0 0.0
      %374 = vmatprep.subr.mxu0 0.0
      %375 = vmatpush1.msra.mxu0 0.0
      %376 = vmatprep.subr.mxu0 0.0
      %377 = vmatpush1.msra.mxu0 0.0
      %378 = vmatprep.subr.mxu0 0.0
      %379 = vmatpush1.msra.mxu0 0.0
      %380 = vmatprep.subr.mxu0 0.0
      %381 = vmatpush1.msra.mxu0 0.0
      %382 = vmatprep.subr.mxu0 0.0
      %383 = vmatpush1.msra.mxu0 0.0
      %384 = vmatprep.subr.mxu0 0.0
      %385 = vmatpush1.msra.mxu0 0.0
      %386 = vmatprep.subr.mxu0 0.0
      %387 = vmatpush1.msra.mxu0 0.0
      %388 = vmatprep.subr.mxu0 0.0
      %389 = vmatpush1.msra.mxu0 0.0
      %390 = vmatprep.mubr.f32.mxu0 0.0
      %391 = vmatmul.mubr.f32.gmra.mrb[0].mxu0 %v324
      %v392 = vpop.f32.mrb[0].mxu0
      %v393 = vadd.f32 0.0, %v392
      %v394 = vpop.f32.mrb[0].mxu0
      %395 = vdwg.mxu0
      %v396 = vmul.f32 %v393, %v393
      %v398 = vrot.slane %v396, 7
      %v400 = vsub.f32 %v393, %v398
      %v401 = vadd.f32 %v400, 1e-05
      %v402 = vrsqrt.pop %v401
      %v403 = vlaneseq
      %v404 = vshrl.u32 %v403, 7
      %v405 = vsub.s32 0, %v404
      %v406 = vrot.slane %v393, %v405
      %v407 = vsub.f32 %v253, %v406
      %v408 = vsub.f32 %v254, %v406
      %v409 = vsub.f32 %v255, %v406
      %v410 = vsub.f32 %v256, %v406
      %v411 = vsub.f32 %v257, %v406
      %v412 = vsub.f32 %v258, %v406
      %v413 = vsub.f32 %v259, %v406
      %v414 = vsub.f32 %v260, %v406
      %v416 = vlaneseq
      %v417 = vshrl.u32 %v416, 7
      %v418 = vsub.s32 0, %v417
      %v419 = vrot.slane %v261, %v418
      %v421 = vmul.f32 %v402, %v419
      %v422 = vlaneseq
      %v423 = vshrl.u32 %v422, 7
      %v424 = vsub.s32 1, %v423
      %v425 = vrot.slane %v421, %v424
      %v426 = vmul.f32 %v407, %v425
      %v427 = vmul.f32 %v408, %v425
      %v428 = vmul.f32 %v409, %v425
      %v429 = vmul.f32 %v410, %v425
      %v430 = vmul.f32 %v411, %v425
      %v431 = vmul.f32 %v412, %v425
      %v432 = vmul.f32 %v413, %v425
      %v433 = vmul.f32 %v414, %v425
      %v435 = vlaneseq
      %v436 = vshrl.u32 %v435, 7
      %v437 = vsub.s32 0, %v436
      %v438 = vrot.slane %v262, %v437
      %v440 = vadd.f32 %v426, %v438
      %v441 = vadd.f32 %v427, %v438
      %v442 = vadd.f32 %v428, %v438
      %v443 = vadd.f32 %v429, %v438
      %v444 = vadd.f32 %v430, %v438
      %v445 = vadd.f32 %v431, %v438
      %v446 = vadd.f32 %v432, %v438
      %v447 = vadd.f32 %v433, %v438
      %v448 = vxor.u32 %v440, 2147483648
      %v449 = vxor.u32 %v441, 2147483648
      %v450 = vxor.u32 %v442, 2147483648
      %v451 = vxor.u32 %v443, 2147483648
      %v452 = vxor.u32 %v444, 2147483648
      %v453 = vxor.u32 %v445, 2147483648
      %v454 = vxor.u32 %v446, 2147483648
      %v455 = vxor.u32 %v447, 2147483648
      %v456 = vmul.f32 %v448, 1.442695
      %v457 = vpow.pop %v456
      %v458 = vmul.f32 %v449, 1.442695
      %v459 = vpow.pop %v458
      %v460 = vmul.f32 %v450, 1.442695
      %v461 = vpow.pop %v460
      %v462 = vmul.f32 %v451, 1.442695
      %v463 = vpow.pop %v462
      %v464 = vmul.f32 %v452, 1.442695
      %v465 = vpow.pop %v464
      %v466 = vmul.f32 %v453, 1.442695
      %v467 = vpow.pop %v466
      %v468 = vmul.f32 %v454, 1.442695
      %v469 = vpow.pop %v468
      %v470 = vmul.f32 %v455, 1.442695
      %v471 = vpow.pop %v470
      %v472 = vadd.f32 %v457, 1.0
      %v473 = vadd.f32 %v459, 1.0
      %v474 = vadd.f32 %v461, 1.0
      %v475 = vadd.f32 %v463, 1.0
      %v476 = vadd.f32 %v465, 1.0
      %v477 = vadd.f32 %v467, 1.0
      %v478 = vadd.f32 %v469, 1.0
      %v479 = vadd.f32 %v471, 1.0
      %v480 = vrcp.pop %v472
      %v481 = vmul.f32 1.0, %v480
      %v482 = vrcp.pop %v473
      %v483 = vmul.f32 1.0, %v482
      %v484 = vrcp.pop %v474
      %v485 = vmul.f32 1.0, %v484
      %v486 = vrcp.pop %v475
      %v487 = vmul.f32 1.0, %v486
      %v488 = vrcp.pop %v476
      %v489 = vmul.f32 1.0, %v488
      %v490 = vrcp.pop %v477
      %v491 = vmul.f32 1.0, %v490
      %v492 = vrcp.pop %v478
      %v493 = vmul.f32 1.0, %v492
      %v494 = vrcp.pop %v479
      %v495 = vmul.f32 1.0, %v494
      %v496 = vmul.f32 %v440, %v481
      %v497 = vmul.f32 %v441, %v483
      %v498 = vmul.f32 %v442, %v485
      %v499 = vmul.f32 %v443, %v487
      %v500 = vmul.f32 %v444, %v489
      %v501 = vmul.f32 %v445, %v491
      %v502 = vmul.f32 %v446, %v493
      %v503 = vmul.f32 %v447, %v495
      %v504 = vlaneseq
      %v505 = vshrl.u32 %v504, 7
      %v506 = vadd.s32 %v505, 8
      %v507 = vadd.s32 %v505, 16
      %v508 = vadd.s32 %v505, 24
      %v509 = vadd.s32 %v505, 32
      %v510 = vadd.s32 %v505, 40
      %v511 = vadd.s32 %v505, 48
      %v512 = vadd.s32 %v505, 56
      %vm513 = vcmp.lt.s32.totalorder %v505, 0
      %v514 = vsub.s32 0, %v505
      %v515 = vsel %vm513, %v514, %v505
      %v516 = vshrl.u32 %v515, 3
      %v517 = vand.u32 %v515, 7
      %v518 = vsub.s32 0, %v517
      %v519 = vsel %vm513, %v518, %v517
      %vm520 = vcmp.lt.s32.totalorder %v506, 0
      %v521 = vsub.s32 0, %v506
      %v522 = vsel %vm520, %v521, %v506
      %v523 = vshrl.u32 %v522, 3
      %v524 = vand.u32 %v522, 7
      %v525 = vsub.s32 0, %v524
      %v526 = vsel %vm520, %v525, %v524
      %vm527 = vcmp.lt.s32.totalorder %v507, 0
      %v528 = vsub.s32 0, %v507
      %v529 = vsel %vm527, %v528, %v507
      %v530 = vshrl.u32 %v529, 3
      %v531 = vand.u32 %v529, 7
      %v532 = vsub.s32 0, %v531
      %v533 = vsel %vm527, %v532, %v531
      %vm534 = vcmp.lt.s32.totalorder %v508, 0
      %v535 = vsub.s32 0, %v508
      %v536 = vsel %vm534, %v535, %v508
      %v537 = vshrl.u32 %v536, 3
      %v538 = vand.u32 %v536, 7
      %v539 = vsub.s32 0, %v538
      %v540 = vsel %vm534, %v539, %v538
      %vm541 = vcmp.lt.s32.totalorder %v509, 0
      %v542 = vsub.s32 0, %v509
      %v543 = vsel %vm541, %v542, %v509
      %v544 = vshrl.u32 %v543, 3
      %v545 = vand.u32 %v543, 7
      %v546 = vsub.s32 0, %v545
      %v547 = vsel %vm541, %v546, %v545
      %vm548 = vcmp.lt.s32.totalorder %v510, 0
      %v549 = vsub.s32 0, %v510
      %v550 = vsel %vm548, %v549, %v510
      %v551 = vshrl.u32 %v550, 3
      %v552 = vand.u32 %v550, 7
      %v553 = vsub.s32 0, %v552
      %v554 = vsel %vm548, %v553, %v552
      %vm555 = vcmp.lt.s32.totalorder %v511, 0
      %v556 = vsub.s32 0, %v511
      %v557 = vsel %vm555, %v556, %v511
      %v558 = vshrl.u32 %v557, 3
      %v559 = vand.u32 %v557, 7
      %v560 = vsub.s32 0, %v559
      %v561 = vsel %vm555, %v560, %v559
      %vm562 = vcmp.lt.s32.totalorder %v512, 0
      %v563 = vsub.s32 0, %v512
      %v564 = vsel %vm562, %v563, %v512
      %v565 = vshrl.u32 %v564, 3
      %v566 = vand.u32 %v564, 7
      %v567 = vsub.s32 0, %v566
      %v568 = vsel %vm562, %v567, %v566
      %vm569 = vcmp.ne.s32.totalorder %v519, 0
      %vm570 = vcmp.ne.s32.totalorder %v526, 0
      %vm571 = vcmp.ne.s32.totalorder %v533, 0
      %vm572 = vcmp.ne.s32.totalorder %v540, 0
      %vm573 = vcmp.ne.s32.totalorder %v547, 0
      %vm574 = vcmp.ne.s32.totalorder %v554, 0
      %vm575 = vcmp.ne.s32.totalorder %v561, 0
      %vm576 = vcmp.ne.s32.totalorder %v568, 0
      %vm577 = vcmp.lt.s32.totalorder %v519, 0
      %vm578 = vcmp.lt.s32.totalorder %v526, 0
      %vm579 = vcmp.lt.s32.totalorder %v533, 0
      %vm580 = vcmp.lt.s32.totalorder %v540, 0
      %vm581 = vcmp.lt.s32.totalorder %v547, 0
      %vm582 = vcmp.lt.s32.totalorder %v554, 0
      %vm583 = vcmp.lt.s32.totalorder %v561, 0
      %vm584 = vcmp.lt.s32.totalorder %v568, 0
      %vm585 = vmand %vm577, %vm569
      %vm586 = vmand %vm578, %vm570
      %vm587 = vmand %vm579, %vm571
      %vm588 = vmand %vm580, %vm572
      %vm589 = vmand %vm581, %vm573
      %vm590 = vmand %vm582, %vm574
      %vm591 = vmand %vm583, %vm575
      %vm592 = vmand %vm584, %vm576
      %v593 = vadd.s32 %v519, 8
      %v594 = vadd.s32 %v526, 8
      %v595 = vadd.s32 %v533, 8
      %v596 = vadd.s32 %v540, 8
      %v597 = vadd.s32 %v547, 8
      %v598 = vadd.s32 %v554, 8
      %v599 = vadd.s32 %v561, 8
      %v600 = vadd.s32 %v568, 8
      %v601 = vsel %vm585, %v593, %v519
      %v602 = vsel %vm586, %v594, %v526
      %v603 = vsel %vm587, %v595, %v533
      %v604 = vsel %vm588, %v596, %v540
      %v605 = vsel %vm589, %v597, %v547
      %v606 = vsel %vm590, %v598, %v554
      %v607 = vsel %vm591, %v599, %v561
      %v608 = vsel %vm592, %v600, %v568
      %vm609 = vcmp.eq.s32.totalorder %v601, 7
      %vm610 = vcmp.eq.s32.totalorder %v602, 7
      %vm611 = vcmp.eq.s32.totalorder %v603, 7
      %vm612 = vcmp.eq.s32.totalorder %v604, 7
      %vm613 = vcmp.eq.s32.totalorder %v605, 7
      %vm614 = vcmp.eq.s32.totalorder %v606, 7
      %vm615 = vcmp.eq.s32.totalorder %v607, 7
      %vm616 = vcmp.eq.s32.totalorder %v608, 7
      %v617 = vsel %vm609, 1, 0
      %v618 = vsel %vm610, 1, 0
      %v619 = vsel %vm611, 1, 0
      %v620 = vsel %vm612, 1, 0
      %v621 = vsel %vm613, 1, 0
      %v622 = vsel %vm614, 1, 0
      %v623 = vsel %vm615, 1, 0
      %v624 = vsel %vm616, 1, 0
      %vm625 = vcmp.eq.s32.totalorder %v617, 1
      %vm626 = vcmp.eq.s32.totalorder %v618, 1
      %vm627 = vcmp.eq.s32.totalorder %v619, 1
      %vm628 = vcmp.eq.s32.totalorder %v620, 1
      %vm629 = vcmp.eq.s32.totalorder %v621, 1
      %vm630 = vcmp.eq.s32.totalorder %v622, 1
      %vm631 = vcmp.eq.s32.totalorder %v623, 1
      %vm632 = vcmp.eq.s32.totalorder %v624, 1
      %v633 = vsel %vm625, 0.0, %v496
      %v634 = vsel %vm626, 0.0, %v497
      %v635 = vsel %vm627, 0.0, %v498
      %v636 = vsel %vm628, 0.0, %v499
      %v637 = vsel %vm629, 0.0, %v500
      %v638 = vsel %vm630, 0.0, %v501
      %v639 = vsel %vm631, 0.0, %v502
      %v640 = vsel %vm632, 0.0, %v503
      %vm641 = vcmp.eq.s32.totalorder %v601, 0
      %vm642 = vcmp.eq.s32.totalorder %v602, 0
      %vm643 = vcmp.eq.s32.totalorder %v603, 0
      %vm644 = vcmp.eq.s32.totalorder %v604, 0
      %vm645 = vcmp.eq.s32.totalorder %v605, 0
      %vm646 = vcmp.eq.s32.totalorder %v606, 0
      %vm647 = vcmp.eq.s32.totalorder %v607, 0
      %vm648 = vcmp.eq.s32.totalorder %v608, 0
      %v649 = vsel %vm641, 1, 0
      %v650 = vsel %vm642, 1, 0
      %v651 = vsel %vm643, 1, 0
      %v652 = vsel %vm644, 1, 0
      %v653 = vsel %vm645, 1, 0
      %v654 = vsel %vm646, 1, 0
      %v655 = vsel %vm647, 1, 0
      %v656 = vsel %vm648, 1, 0
      %vm657 = vcmp.eq.s32.totalorder %v649, 1
      %vm658 = vcmp.eq.s32.totalorder %v650, 1
      %vm659 = vcmp.eq.s32.totalorder %v651, 1
      %vm660 = vcmp.eq.s32.totalorder %v652, 1
      %vm661 = vcmp.eq.s32.totalorder %v653, 1
      %vm662 = vcmp.eq.s32.totalorder %v654, 1
      %vm663 = vcmp.eq.s32.totalorder %v655, 1
      %vm664 = vcmp.eq.s32.totalorder %v656, 1
      %v665 = vsel %vm657, 0.0, %v496
      %v666 = vsel %vm658, 0.0, %v497
      %v667 = vsel %vm659, 0.0, %v498
      %v668 = vsel %vm660, 0.0, %v499
      %v669 = vsel %vm661, 0.0, %v500
      %v670 = vsel %vm662, 0.0, %v501
      %v671 = vsel %vm663, 0.0, %v502
      %v672 = vsel %vm664, 0.0, %v503
      %vm673 = vcmask 785408
      %674 = vst.msk [vmem:[#allocation2] sm:$0xff] %vm673, 0.0
      %675 = vst.msk [vmem:[#allocation2 + $0x8] sm:$0xff] %vm673, 0.0
      %676 = vst.msk [vmem:[#allocation2 + $0x10] sm:$0xff] %vm673, 0.0
      %677 = vst.msk [vmem:[#allocation2 + $0x18] sm:$0xff] %vm673, 0.0
      %678 = vst.msk [vmem:[#allocation2 + $0x20] sm:$0xff] %vm673, 0.0
      %679 = vst.msk [vmem:[#allocation2 + $0x28] sm:$0xff] %vm673, 0.0
      %680 = vst.msk [vmem:[#allocation2 + $0x30] sm:$0xff] %vm673, 0.0
      %681 = vst.msk [vmem:[#allocation2 + $0x38] sm:$0xff] %vm673, 0.0
      %682 = vst.msk [vmem:[#allocation2 + $0x40] sm:$0xff] %vm673, 0.0
      %683 = vst.msk [vmem:[#allocation2 + $0x48] sm:$0xff] %vm673, 0.0
      %684 = vst.msk [vmem:[#allocation2 + $0x9] sm:$0xff] %vm267, %v633
      %685 = vst.msk [vmem:[#allocation2 + $0x11] sm:$0xff] %vm267, %v634
      %686 = vst.msk [vmem:[#allocation2 + $0x19] sm:$0xff] %vm267, %v635
      %687 = vst.msk [vmem:[#allocation2 + $0x21] sm:$0xff] %vm267, %v636
      %688 = vst.msk [vmem:[#allocation2 + $0x29] sm:$0xff] %vm267, %v637
      %689 = vst.msk [vmem:[#allocation2 + $0x31] sm:$0xff] %vm267, %v638
      %690 = vst.msk [vmem:[#allocation2 + $0x39] sm:$0xff] %vm267, %v639
      %691 = vst.msk [vmem:[#allocation2 + $0x41] sm:$0xff] %vm267, %v640
      %700 = vrot.lane.b32.xlu0 %v496, 32
      %v701 = vpop.permute.xlu0 %700
      %702 = vrot.lane.b32.xlu0 %v497, 32
      %v703 = vpop.permute.xlu0 %702
      %704 = vrot.lane.b32.xlu0 %v498, 32
      %v705 = vpop.permute.xlu0 %704
      %706 = vrot.lane.b32.xlu0 %v499, 32
      %v707 = vpop.permute.xlu0 %706
      %708 = vrot.lane.b32.xlu0 %v500, 32
      %v709 = vpop.permute.xlu0 %708
      %710 = vrot.lane.b32.xlu0 %v501, 32
      %v711 = vpop.permute.xlu0 %710
      %712 = vrot.lane.b32.xlu0 %v502, 32
      %v713 = vpop.permute.xlu0 %712
      %714 = vrot.lane.b32.xlu0 %v503, 32
      %v715 = vpop.permute.xlu0 %714
      %vm724 = vcmask 523520
      %725 = vst.msk [vmem:[#allocation2 + $0x8] sm:$0xff] %vm724, %v701
      %726 = vst.msk [vmem:[#allocation2 + $0x10] sm:$0xff] %vm724, %v703
      %727 = vst.msk [vmem:[#allocation2 + $0x18] sm:$0xff] %vm724, %v705
      %728 = vst.msk [vmem:[#allocation2 + $0x20] sm:$0xff] %vm724, %v707
      %729 = vst.msk [vmem:[#allocation2 + $0x28] sm:$0xff] %vm724, %v709
      %730 = vst.msk [vmem:[#allocation2 + $0x30] sm:$0xff] %vm724, %v711
      %731 = vst.msk [vmem:[#allocation2 + $0x38] sm:$0xff] %vm724, %v713
      %732 = vst.msk [vmem:[#allocation2 + $0x40] sm:$0xff] %vm724, %v715
      %741 = vrot.lane.b32.xlu0 %v665, 64
      %v742 = vpop.permute.xlu0 %741
      %743 = vrot.lane.b32.xlu0 %v666, 64
      %v744 = vpop.permute.xlu0 %743
      %745 = vrot.lane.b32.xlu0 %v667, 64
      %v746 = vpop.permute.xlu0 %745
      %747 = vrot.lane.b32.xlu0 %v668, 64
      %v748 = vpop.permute.xlu0 %747
      %749 = vrot.lane.b32.xlu0 %v669, 64
      %v750 = vpop.permute.xlu0 %749
      %751 = vrot.lane.b32.xlu0 %v670, 64
      %v752 = vpop.permute.xlu0 %751
      %753 = vrot.lane.b32.xlu0 %v671, 64
      %v754 = vpop.permute.xlu0 %753
      %755 = vrot.lane.b32.xlu0 %v672, 64
      %v756 = vpop.permute.xlu0 %755
      %vm765 = vcmask 785920
      %766 = vst.msk [vmem:[#allocation2 + $0x7] sm:$0xff] %vm765, %v742
      %767 = vst.msk [vmem:[#allocation2 + $0xf] sm:$0xff] %vm765, %v744
      %768 = vst.msk [vmem:[#allocation2 + $0x17] sm:$0xff] %vm765, %v746
      %769 = vst.msk [vmem:[#allocation2 + $0x1f] sm:$0xff] %vm765, %v748
      %770 = vst.msk [vmem:[#allocation2 + $0x27] sm:$0xff] %vm765, %v750
      %771 = vst.msk [vmem:[#allocation2 + $0x2f] sm:$0xff] %vm765, %v752
      %772 = vst.msk [vmem:[#allocation2 + $0x37] sm:$0xff] %vm765, %v754
      %773 = vst.msk [vmem:[#allocation2 + $0x3f] sm:$0xff] %vm765, %v756
      %v774 = vld [vmem:[#allocation2] sm:$0xff]
      %v775 = vld [vmem:[#allocation2 + $0x8] sm:$0xff]
      %v776 = vld [vmem:[#allocation2 + $0x10] sm:$0xff]
      %v777 = vld [vmem:[#allocation2 + $0x18] sm:$0xff]
      %v778 = vld [vmem:[#allocation2 + $0x20] sm:$0xff]
      %v779 = vld [vmem:[#allocation2 + $0x28] sm:$0xff]
      %v780 = vld [vmem:[#allocation2 + $0x30] sm:$0xff]
      %v781 = vld [vmem:[#allocation2 + $0x38] sm:$0xff]
      %v782 = vpack.c.bf16 %v775, %v774
      %v783 = vpack.c.bf16 %v777, %v776
      %v784 = vpack.c.bf16 %v779, %v778
      %v785 = vpack.c.bf16 %v781, %v780
      %v786 = vld [vmem:[%s4] sm:$0xf]
      %v787 = vld [vmem:[%s4 + $0x4] sm:$0xf]
      %v788 = vld [vmem:[%s4 + $0x8] sm:$0xf]
      %v789 = vld [vmem:[%s4 + $0xc] sm:$0xf]
      %v790 = vld [vmem:[%s4 + $0x10] sm:$0xf]
      %v791 = vld [vmem:[%s4 + $0x14] sm:$0xf]
      %v792 = vld [vmem:[%s4 + $0x18] sm:$0xf]
      %v793 = vld [vmem:[%s4 + $0x1c] sm:$0xf]
      %v794 = vld [vmem:[%s4 + $0x20] sm:$0xf]
      %v795 = vld [vmem:[%s4 + $0x24] sm:$0xf]
      %v796 = vld [vmem:[%s4 + $0x28] sm:$0xf]
      %v797 = vld [vmem:[%s4 + $0x2c] sm:$0xf]
      %v798 = vld [vmem:[#allocation2 + $0x40] sm:$0xff]
      %v799 = vpack.c.bf16 %v776, %v775
      %v800 = vpack.c.bf16 %v778, %v777
      %v801 = vpack.c.bf16 %v780, %v779
      %v802 = vpack.c.bf16 %v798, %v781
      %s803 = scalar_lea.vmem %s4, 48
      %v804 = vld [vmem:[%s803] sm:$0xf]
      %v805 = vld [vmem:[%s803 + $0x4] sm:$0xf]
      %v806 = vld [vmem:[%s803 + $0x8] sm:$0xf]
      %v807 = vld [vmem:[%s803 + $0xc] sm:$0xf]
      %v808 = vld [vmem:[%s803 + $0x10] sm:$0xf]
      %v809 = vld [vmem:[%s803 + $0x14] sm:$0xf]
      %v810 = vld [vmem:[%s803 + $0x18] sm:$0xf]
      %v811 = vld [vmem:[%s803 + $0x1c] sm:$0xf]
      %v812 = vld [vmem:[%s803 + $0x20] sm:$0xf]
      %v813 = vld [vmem:[%s803 + $0x24] sm:$0xf]
      %v814 = vld [vmem:[%s803 + $0x28] sm:$0xf]
      %v815 = vld [vmem:[%s803 + $0x2c] sm:$0xf]
      %v828 = vunpack.c.l.b16 %v804
      %v829 = vunpack.c.l.b16 %v805
      %v830 = vunpack.c.l.b16 %v806
      %v831 = vunpack.c.l.b16 %v807
      %v832 = vunpack.c.l.b16 %v808
      %v833 = vunpack.c.l.b16 %v809
      %v834 = vunpack.c.l.b16 %v810
      %v835 = vunpack.c.l.b16 %v811
      %v836 = vunpack.c.l.b16 %v812
      %v837 = vunpack.c.l.b16 %v813
      %v838 = vunpack.c.l.b16 %v814
      %v839 = vunpack.c.l.b16 %v815
      %v840 = vpack.c.b16 %v829, %v828
      %v841 = vpack.c.b16 %v831, %v830
      %v842 = vpack.c.b16 %v833, %v832
      %v843 = vpack.c.b16 %v835, %v834
      %v844 = vpack.c.b16 %v837, %v836
      %v845 = vpack.c.b16 %v839, %v838
      %v853 = vsel %vm673, %v799, 0
      %v856 = vsel %vm673, %v800, 0
      %v859 = vsel %vm673, %v801, 0
      %v862 = vsel %vm673, %v802, 0
      %864 = vmatprep.subr.bf16.mxu0 0
      %865 = vmatpush1.bf16.msra.mxu0 %v840
      %866 = vmatprep.subr.bf16.mxu0 0
      %867 = vmatpush1.bf16.msra.mxu0 %v841
      %868 = vmatprep.subr.bf16.mxu0 0
      %869 = vmatpush1.bf16.msra.mxu0 %v842
      %870 = vmatprep.subr.bf16.mxu0 0
      %871 = vmatpush1.bf16.msra.mxu0 %v843
      %872 = vmatprep.subr.bf16.mxu0 0
      %873 = vmatpush1.bf16.msra.mxu0 %v844
      %874 = vmatprep.subr.bf16.mxu0 0
      %875 = vmatpush1.bf16.msra.mxu0 %v845
      %876 = vmatprep.subr.bf16.mxu0 0
      %877 = vmatpush1.bf16.msra.mxu0 0
      %878 = vmatprep.subr.bf16.mxu0 0
      %879 = vmatpush1.bf16.msra.mxu0 0
      %880 = vmatprep.subr.bf16.mxu0 0
      %881 = vmatpush1.bf16.msra.mxu0 0
      %882 = vmatprep.subr.bf16.mxu0 0
      %883 = vmatpush1.bf16.msra.mxu0 0
      %884 = vmatprep.subr.bf16.mxu0 0
      %885 = vmatpush1.bf16.msra.mxu0 0
      %886 = vmatprep.subr.bf16.mxu0 0
      %887 = vmatpush1.bf16.msra.mxu0 0
      %888 = vmatprep.subr.bf16.mxu0 0
      %889 = vmatpush1.bf16.msra.mxu0 0
      %890 = vmatprep.subr.bf16.mxu0 0
      %891 = vmatpush1.bf16.msra.mxu0 0
      %892 = vmatprep.subr.bf16.mxu0 0
      %893 = vmatpush1.bf16.msra.mxu0 0
      %894 = vmatprep.subr.bf16.mxu0 0
      %895 = vmatpush1.bf16.msra.mxu0 0
      %896 = vmatprep.mubr.bf16.mxu0 0
      %897 = vmatmul.mubr.bf16.gmra.mrb[0].mxu0 %v853
      %v898 = vpop.f32.mrb[0].mxu0
      %v899 = vadd.f32 0.0, %v898
      %v900 = vpop.f32.mrb[0].mxu0
      %v901 = vpop.f32.mrb[0].mxu0
      %v902 = vadd.f32 0.0, %v901
      %v903 = vpop.f32.mrb[0].mxu0
      %904 = vmatprep.mubr.bf16.mxu0 0
      %905 = vmatmul.mubr.bf16.gmra.mrb[0].mxu0 %v856
      %v906 = vpop.f32.mrb[0].mxu0
      %v907 = vadd.f32 0.0, %v906
      %v908 = vpop.f32.mrb[0].mxu0
      %v909 = vpop.f32.mrb[0].mxu0
      %v910 = vadd.f32 0.0, %v909
      %v911 = vpop.f32.mrb[0].mxu0
      %912 = vmatprep.mubr.bf16.mxu0 0
      %913 = vmatmul.mubr.bf16.gmra.mrb[0].mxu0 %v859
      %v914 = vpop.f32.mrb[0].mxu0
      %v915 = vadd.f32 0.0, %v914
      %v916 = vpop.f32.mrb[0].mxu0
      %v917 = vpop.f32.mrb[0].mxu0
      %v918 = vadd.f32 0.0, %v917
      %v919 = vpop.f32.mrb[0].mxu0
      %920 = vmatprep.mubr.bf16.mxu0 0
      %921 = vmatmul.mubr.bf16.gmra.mrb[0].mxu0 %v862
      %v922 = vpop.f32.mrb[0].mxu0
      %v923 = vadd.f32 0.0, %v922
      %v924 = vpop.f32.mrb[0].mxu0
      %v925 = vpop.f32.mrb[0].mxu0
      %v926 = vadd.f32 0.0, %v925
      %v927 = vpop.f32.mrb[0].mxu0
      %928 = vdwg.mxu0
      %v941 = vunpack.c.l.b16 %v786
      %v942 = vunpack.c.l.b16 %v787
      %v943 = vunpack.c.l.b16 %v788
      %v944 = vunpack.c.l.b16 %v789
      %v945 = vunpack.c.l.b16 %v790
      %v946 = vunpack.c.l.b16 %v791
      %v947 = vunpack.c.l.b16 %v792
      %v948 = vunpack.c.l.b16 %v793
      %v949 = vunpack.c.l.b16 %v794
      %v950 = vunpack.c.l.b16 %v795
      %v951 = vunpack.c.l.b16 %v796
      %v952 = vunpack.c.l.b16 %v797
      %v953 = vpack.c.b16 %v942, %v941
      %v954 = vpack.c.b16 %v944, %v943
      %v955 = vpack.c.b16 %v946, %v945
      %v956 = vpack.c.b16 %v948, %v947
      %v957 = vpack.c.b16 %v950, %v949
      %v958 = vpack.c.b16 %v952, %v951
      %v966 = vsel %vm673, %v782, 0
      %v969 = vsel %vm673, %v783, 0
      %v972 = vsel %vm673, %v784, 0
      %v975 = vsel %vm673, %v785, 0
      %977 = vmatprep.subr.bf16.mxu0 0
      %978 = vmatpush1.bf16.msra.mxu0 %v953
      %979 = vmatprep.subr.bf16.mxu0 0
      %980 = vmatpush1.bf16.msra.mxu0 %v954
      %981 = vmatprep.subr.bf16.mxu0 0
      %982 = vmatpush1.bf16.msra.mxu0 %v955
      %983 = vmatprep.subr.bf16.mxu0 0
      %984 = vmatpush1.bf16.msra.mxu0 %v956
      %985 = vmatprep.subr.bf16.mxu0 0
      %986 = vmatpush1.bf16.msra.mxu0 %v957
      %987 = vmatprep.subr.bf16.mxu0 0
      %988 = vmatpush1.bf16.msra.mxu0 %v958
      %989 = vmatprep.subr.bf16.mxu0 0
      %990 = vmatpush1.bf16.msra.mxu0 0
      %991 = vmatprep.subr.bf16.mxu0 0
      %992 = vmatpush1.bf16.msra.mxu0 0
      %993 = vmatprep.subr.bf16.mxu0 0
      %994 = vmatpush1.bf16.msra.mxu0 0
      %995 = vmatprep.subr.bf16.mxu0 0
      %996 = vmatpush1.bf16.msra.mxu0 0
      %997 = vmatprep.subr.bf16.mxu0 0
      %998 = vmatpush1.bf16.msra.mxu0 0
      %999 = vmatprep.subr.bf16.mxu0 0
      %1000 = vmatpush1.bf16.msra.mxu0 0
      %1001 = vmatprep.subr.bf16.mxu0 0
      %1002 = vmatpush1.bf16.msra.mxu0 0
      %1003 = vmatprep.subr.bf16.mxu0 0
      %1004 = vmatpush1.bf16.msra.mxu0 0
      %1005 = vmatprep.subr.bf16.mxu0 0
      %1006 = vmatpush1.bf16.msra.mxu0 0
      %1007 = vmatprep.subr.bf16.mxu0 0
      %1008 = vmatpush1.bf16.msra.mxu0 0
      %1009 = vmatprep.mubr.bf16.mxu0 0
      %1010 = vmatmul.mubr.bf16.gmra.mrb[0].mxu0 %v966
      %v1011 = vpop.f32.mrb[0].mxu0
      %v1012 = vadd.f32 %v899, %v1011
      %v1013 = vpop.f32.mrb[0].mxu0
      %v1014 = vpop.f32.mrb[0].mxu0
      %v1015 = vadd.f32 %v902, %v1014
      %v1016 = vpop.f32.mrb[0].mxu0
      %1017 = vmatprep.mubr.bf16.mxu0 0
      %1018 = vmatmul.mubr.bf16.gmra.mrb[0].mxu0 %v969
      %v1019 = vpop.f32.mrb[0].mxu0
      %v1020 = vadd.f32 %v907, %v1019
      %v1021 = vpop.f32.mrb[0].mxu0
      %v1022 = vpop.f32.mrb[0].mxu0
      %v1023 = vadd.f32 %v910, %v1022
      %v1024 = vpop.f32.mrb[0].mxu0
      %1025 = vmatprep.mubr.bf16.mxu0 0
      %1026 = vmatmul.mubr.bf16.gmra.mrb[0].mxu0 %v972
      %v1027 = vpop.f32.mrb[0].mxu0
      %v1028 = vadd.f32 %v915, %v1027
      %v1029 = vpop.f32.mrb[0].mxu0
      %v1030 = vpop.f32.mrb[0].mxu0
      %v1031 = vadd.f32 %v918, %v1030
      %v1032 = vpop.f32.mrb[0].mxu0
      %1033 = vmatprep.mubr.bf16.mxu0 0
      %1034 = vmatmul.mubr.bf16.gmra.mrb[0].mxu0 %v975
      %v1035 = vpop.f32.mrb[0].mxu0
      %v1036 = vadd.f32 %v923, %v1035
      %v1037 = vpop.f32.mrb[0].mxu0
      %v1038 = vpop.f32.mrb[0].mxu0
      %v1039 = vadd.f32 %v926, %v1038
      %v1040 = vpop.f32.mrb[0].mxu0
      %1041 = vdwg.mxu0
      %v1042 = vld [vmem:[#allocation2 + $0x10] sm:$0xff]
      %v1043 = vld [vmem:[#allocation2 + $0x18] sm:$0xff]
      %v1044 = vld [vmem:[#allocation2 + $0x20] sm:$0xff]
      %v1045 = vld [vmem:[#allocation2 + $0x28] sm:$0xff]
      %v1046 = vld [vmem:[#allocation2 + $0x30] sm:$0xff]
      %v1047 = vld [vmem:[#allocation2 + $0x38] sm:$0xff]
      %v1048 = vld [vmem:[#allocation2 + $0x40] sm:$0xff]
      %v1049 = vld [vmem:[#allocation2 + $0x48] sm:$0xff]
      %v1050 = vpack.c.bf16 %v1043, %v1042
      %v1051 = vpack.c.bf16 %v1045, %v1044
      %v1052 = vpack.c.bf16 %v1047, %v1046
      %v1053 = vpack.c.bf16 %v1049, %v1048
      %s1054 = scalar_lea.vmem %s4, 96
      %v1055 = vld [vmem:[%s1054] sm:$0xf]
      %v1056 = vld [vmem:[%s1054 + $0x4] sm:$0xf]
      %v1057 = vld [vmem:[%s1054 + $0x8] sm:$0xf]
      %v1058 = vld [vmem:[%s1054 + $0xc] sm:$0xf]
      %v1059 = vld [vmem:[%s1054 + $0x10] sm:$0xf]
      %v1060 = vld [vmem:[%s1054 + $0x14] sm:$0xf]
      %v1061 = vld [vmem:[%s1054 + $0x18] sm:$0xf]
      %v1062 = vld [vmem:[%s1054 + $0x1c] sm:$0xf]
      %v1063 = vld [vmem:[%s1054 + $0x20] sm:$0xf]
      %v1064 = vld [vmem:[%s1054 + $0x24] sm:$0xf]
      %v1065 = vld [vmem:[%s1054 + $0x28] sm:$0xf]
      %v1066 = vld [vmem:[%s1054 + $0x2c] sm:$0xf]
      %v1079 = vunpack.c.l.b16 %v1055
      %v1080 = vunpack.c.l.b16 %v1056
      %v1081 = vunpack.c.l.b16 %v1057
      %v1082 = vunpack.c.l.b16 %v1058
      %v1083 = vunpack.c.l.b16 %v1059
      %v1084 = vunpack.c.l.b16 %v1060
      %v1085 = vunpack.c.l.b16 %v1061
      %v1086 = vunpack.c.l.b16 %v1062
      %v1087 = vunpack.c.l.b16 %v1063
      %v1088 = vunpack.c.l.b16 %v1064
      %v1089 = vunpack.c.l.b16 %v1065
      %v1090 = vunpack.c.l.b16 %v1066
      %v1091 = vpack.c.b16 %v1080, %v1079
      %v1092 = vpack.c.b16 %v1082, %v1081
      %v1093 = vpack.c.b16 %v1084, %v1083
      %v1094 = vpack.c.b16 %v1086, %v1085
      %v1095 = vpack.c.b16 %v1088, %v1087
      %v1096 = vpack.c.b16 %v1090, %v1089
      %v1104 = vsel %vm673, %v1050, 0
      %v1107 = vsel %vm673, %v1051, 0
      %v1110 = vsel %vm673, %v1052, 0
      %v1113 = vsel %vm673, %v1053, 0
      %1115 = vmatprep.subr.bf16.mxu0 0
      %1116 = vmatpush1.bf16.msra.mxu0 %v1091
      %1117 = vmatprep.subr.bf16.mxu0 0
      %1118 = vmatpush1.bf16.msra.mxu0 %v1092
      %1119 = vmatprep.subr.bf16.mxu0 0
      %1120 = vmatpush1.bf16.msra.mxu0 %v1093
      %1121 = vmatprep.subr.bf16.mxu0 0
      %1122 = vmatpush1.bf16.msra.mxu0 %v1094
      %1123 = vmatprep.subr.bf16.mxu0 0
      %1124 = vmatpush1.bf16.msra.mxu0 %v1095
      %1125 = vmatprep.subr.bf16.mxu0 0
      %1126 = vmatpush1.bf16.msra.mxu0 %v1096
      %1127 = vmatprep.subr.bf16.mxu0 0
      %1128 = vmatpush1.bf16.msra.mxu0 0
      %1129 = vmatprep.subr.bf16.mxu0 0
      %1130 = vmatpush1.bf16.msra.mxu0 0
      %1131 = vmatprep.subr.bf16.mxu0 0
      %1132 = vmatpush1.bf16.msra.mxu0 0
      %1133 = vmatprep.subr.bf16.mxu0 0
      %1134 = vmatpush1.bf16.msra.mxu0 0
      %1135 = vmatprep.subr.bf16.mxu0 0
      %1136 = vmatpush1.bf16.msra.mxu0 0
      %1137 = vmatprep.subr.bf16.mxu0 0
      %1138 = vmatpush1.bf16.msra.mxu0 0
      %1139 = vmatprep.subr.bf16.mxu0 0
      %1140 = vmatpush1.bf16.msra.mxu0 0
      %1141 = vmatprep.subr.bf16.mxu0 0
      %1142 = vmatpush1.bf16.msra.mxu0 0
      %1143 = vmatprep.subr.bf16.mxu0 0
      %1144 = vmatpush1.bf16.msra.mxu0 0
      %1145 = vmatprep.subr.bf16.mxu0 0
      %1146 = vmatpush1.bf16.msra.mxu0 0
      %1147 = vmatprep.mubr.bf16.mxu0 0
      %1148 = vmatmul.mubr.bf16.gmra.mrb[0].mxu0 %v1104
      %v1149 = vpop.f32.mrb[0].mxu0
      %v1150 = vadd.f32 0.0, %v1149
      %v1151 = vpop.f32.mrb[0].mxu0
      %v1152 = vpop.f32.mrb[0].mxu0
      %v1153 = vadd.f32 0.0, %v1152
      %v1154 = vpop.f32.mrb[0].mxu0
      %1155 = vmatprep.mubr.bf16.mxu0 0
      %1156 = vmatmul.mubr.bf16.gmra.mrb[0].mxu0 %v1107
      %v1157 = vpop.f32.mrb[0].mxu0
      %v1158 = vadd.f32 0.0, %v1157
      %v1159 = vpop.f32.mrb[0].mxu0
      %v1160 = vpop.f32.mrb[0].mxu0
      %v1161 = vadd.f32 0.0, %v1160
      %v1162 = vpop.f32.mrb[0].mxu0
      %1163 = vmatprep.mubr.bf16.mxu0 0
      %1164 = vmatmul.mubr.bf16.gmra.mrb[0].mxu0 %v1110
      %v1165 = vpop.f32.mrb[0].mxu0
      %v1166 = vadd.f32 0.0, %v1165
      %v1167 = vpop.f32.mrb[0].mxu0
      %v1168 = vpop.f32.mrb[0].mxu0
      %v1169 = vadd.f32 0.0, %v1168
      %v1170 = vpop.f32.mrb[0].mxu0
      %1171 = vmatprep.mubr.bf16.mxu0 0
      %1172 = vmatmul.mubr.bf16.gmra.mrb[0].mxu0 %v1113
      %v1173 = vpop.f32.mrb[0].mxu0
      %v1174 = vadd.f32 0.0, %v1173
      %v1175 = vpop.f32.mrb[0].mxu0
      %v1176 = vpop.f32.mrb[0].mxu0
      %v1177 = vadd.f32 0.0, %v1176
      %v1178 = vpop.f32.mrb[0].mxu0
      %1179 = vdwg.mxu0
      %v1180 = vadd.f32 %v1012, %v1150
      %v1181 = vadd.f32 %v1015, %v1153
      %v1182 = vadd.f32 %v1020, %v1158
      %v1183 = vadd.f32 %v1023, %v1161
      %v1184 = vadd.f32 %v1028, %v1166
      %v1185 = vadd.f32 %v1031, %v1169
      %v1186 = vadd.f32 %v1036, %v1174
      %v1187 = vadd.f32 %v1039, %v1177
      %v1188 = vld [vmem:[%s5] sm:$0x1]
      %v1190 = vlaneseq
      %v1191 = vshrl.u32 %v1190, 7
      %v1192 = vsub.s32 0, %v1191
      %v1193 = vrot.slane %v1188, %v1192
      %v1195 = vadd.f32 %v1180, %v1193
      %v1196 = vadd.f32 %v1181, %v1193
      %v1197 = vadd.f32 %v1182, %v1193
      %v1198 = vadd.f32 %v1183, %v1193
      %v1199 = vadd.f32 %v1184, %v1193
      %v1200 = vadd.f32 %v1185, %v1193
      %v1201 = vadd.f32 %v1186, %v1193
      %v1202 = vadd.f32 %v1187, %v1193
      %vm1203 = vcmask 523264
      %1204 = vst.msk [vmem:[%s251] sm:$0xff] %vm1203, %v1195
      %1205 = vst.msk [vmem:[%s251 + $0x8] sm:$0xff] %vm1203, %v1196
      %1206 = vst.msk [vmem:[%s251 + $0x10] sm:$0xff] %vm1203, %v1197
      %1207 = vst.msk [vmem:[%s251 + $0x18] sm:$0xff] %vm1203, %v1198
      %1208 = vst.msk [vmem:[%s251 + $0x20] sm:$0xff] %vm1203, %v1199
      %1209 = vst.msk [vmem:[%s251 + $0x28] sm:$0xff] %vm1203, %v1200
      %1210 = vst.msk [vmem:[%s251 + $0x30] sm:$0xff] %vm1203, %v1201
      %1211 = vst.msk [vmem:[%s251 + $0x38] sm:$0xff] %vm1203, %v1202
      %p1212 = scmp.lt.s32.totalorder %s17, 1
      %s1213 = scalar_select %p1212, %s17, 1
      %s1214 = smul.addr %s1213, 8
      %s1215 = smul.addr %s1214, 8
      %s1216 = scalar_lea.vmem %s6, %s1215
      // Predicated region
      $region45: #{residual_block_pallas.2} parent=43 // pred_check
        %p1217 = pneg %p166
      $region46: #{residual_block_pallas.2} parent=43 // pred_check_branch
        %1219 = sbr.rel (%p1217) target = $region48
      $region47: #{residual_block_pallas.2} parent=43 // pred_region
        _
      $region48: #{residual_block_pallas.2} parent=43 // pred_fallthru
        _
    $region44: #{residual_block_pallas.2} parent=5 // pred_fallthru
      _
    %p1220 = scmp.le.s32.totalorder 2, %s12
    // Predicated region
    $region49: #{residual_block_pallas.2} parent=5 // pred_check
      %p1221 = pneg %p1220
    $region50: #{residual_block_pallas.2} parent=5 // pred_check_branch
      %1223 = sbr.rel (%p1221) target = $region52
    $region51: #{residual_block_pallas.2} parent=5 // pred_region
      %s1224 = ssub.s32 %s12, 2
      // Predicated region
      $region53: #{residual_block_pallas.2} parent=51 // pred_check
        %p1225 = pneg %p172
      $region54: #{residual_block_pallas.2} parent=51 // pred_check_branch
        %1227 = sbr.rel (%p1225) target = $region56
      $region55: #{residual_block_pallas.2} parent=51 // pred_region
        %p1228 = scmp.lt.s32.totalorder %s18, 1
        %s1229 = scalar_select %p1228, %s18, 1
        %s1230 = smul.addr %s1229, 8
        %s1231 = smul.addr %s1230, 8
        %s1232 = scalar_lea.vmem %s6, %s1231
      $region56: #{residual_block_pallas.2} parent=51 // pred_fallthru
        _
    $region52: #{residual_block_pallas.2} parent=5 // pred_fallthru
      _
  $region6: #{residual_block_pallas.2} parent=0 // loop_footer
    %s16 = sadd.s32 1, %s12
  $region7: #{residual_block_pallas.2} parent=0 // loop_footer_branch
    %11 = sbr.rel target = $region3
  $region8: #{residual_block_pallas.2} parent=0 // loop_exit
    _

// kernel: residual_block_pallas.3
$region0: #{residual_block_pallas.3}
  #allocation0 [shape = 'u32[]', space=smem, size = 0x4, offset = 0x4, fixed_abs, tag = 'smem constant byte address 0x4 - core index']
  #allocation1 [shape = 'u32[144,128]{1,0:T(1,128)}', space=vmem, size = 0x12000, scoped, tag = 'internal scratch']
  #allocation2 [shape = 'f32[80,192]{1,0:T(8,128)}', space=vmem, size = 0x14000, scoped, tag = 'scratch operand']
  %s0 = inlined_call_operand.vmem [shape: f32[2,64,64], index: 0, kind: input, shape index: {}]
  %s1 = inlined_call_operand.vmem [shape: f32[2,8,8,32], index: 1, kind: input, shape index: {}]
  %s2 = inlined_call_operand.vmem [shape: f32[1,64], index: 2, kind: input, shape index: {}]
  %s3 = inlined_call_operand.vmem [shape: f32[1,64], index: 3, kind: input, shape index: {}]
  %s4 = inlined_call_operand.vmem [shape: f32[64,64], index: 4, kind: input, shape index: {}]
  %s5 = inlined_call_operand.vmem [shape: bf16[3,192,64], index: 5, kind: input, shape index: {}]
  %s6 = inlined_call_operand.vmem [shape: f32[1,64], index: 6, kind: input, shape index: {}]
  %s7 = inlined_call_operand.vmem [shape: bf16[32,64], index: 7, kind: input, shape index: {}]
  %s8 = inlined_call_operand.vmem [shape: f32[1,64], index: 8, kind: input, shape index: {}]
  %s9 = inlined_call_operand.hbm [shape: f32[2,64,64], index: 9, kind: output, shape index: {}]
  %s10 = sld [smem:[#allocation0]]
  $region69: #{residual_block_pallas.3} parent=0
    _
  %s12 = ssub.s32 1, %s10
  %s13 = scalar_select 0, %s12, %s10
  $region1: #{residual_block_pallas.3} parent=0
    #allocation3 [shape = 'u8[65536]{0}', space=vmem, size = 0x10000, scoped, tag = 'output window, operand 0']
    #allocation4 [shape = 's32[2]{0}', space=sflag, size = 0x8, scoped, tag = 'scoped memory for residual_block_pallas.3']
    %14 = vsyncpa [#allocation4], 0
    %s15 = scalar_lea.sflag [#allocation4], 1
    %16 = vsyncpa %s15, 0
    loop: start=0, step=1, limit=4
    $region2: #{residual_block_pallas.3} parent=1 // loop_pre_header
      _
    $region3: #{residual_block_pallas.3} parent=1 // loop_header
      %s18 = sphi 0, %s22
      %p19 = scmp.ge.s32.totalorder %s18, 4
      %s28 = sphi 0, %s30
      %s31 = sphi 0, %s28
      %s32 = sphi 0, %s31
      %s48 = sphi 0, %s32
      %s54 = sphi 0, %s56
      %s57 = sphi 0, %s54
      %s58 = sphi 0, %s57
      %s74 = sphi 0, %s58
      %s78 = sphi 0, %s78
      %s80 = sphi 0, %s78
      %s81 = sphi 0, %s80
      %s95 = sphi 0, %s81
      %s99 = sphi 0, %s99
      %s101 = sphi 0, %s99
      %s102 = sphi 0, %s101
      %s116 = sphi 0, %s102
      %s120 = sphi 0, %s120
      %s122 = sphi 0, %s120
      %s123 = sphi 0, %s122
      %s137 = sphi 0, %s123
      %s141 = sphi 0, %s141
      %s143 = sphi 0, %s141
      %s144 = sphi 0, %s143
      %s158 = sphi 0, %s144
      %s162 = sphi 0, %s162
      %s164 = sphi 0, %s162
      %s165 = sphi 0, %s164
      %s179 = sphi 0, %s165
      %s183 = sphi 0, %s183
      %s185 = sphi 0, %s183
      %s186 = sphi 0, %s185
      %s200 = sphi 0, %s186
      %s204 = sphi 0, %s204
      %s206 = sphi 0, %s204
      %s207 = sphi 0, %s206
      %s221 = sphi 0, %s207
      %s227 = sphi 0, %s229
      %s230 = sphi 0, %s227
      %s231 = sphi 0, %s230
      %s247 = sphi 0, %s231
    $region4: #{residual_block_pallas.3} parent=1 // loop_header_branch
      %21 = sbr.rel (%p19) target = $region8
    $region5: #{residual_block_pallas.3} parent=1 // loop_body
      %s23 = ssub.s32 %s18, 1
      %s24 = ssub.s32 %s18, 2
      %s25 = sadd.s32 %s18, 1
      %s26 = ssub.s32 %s18, %s25
      %p27 = scmp.eq.s32.totalorder %s26, 0
      %s29 = sadd.s32 %s28, 1
      %s30 = scalar_select %p27, %s28, %s29
      %p33 = pneg %p27
      %p34 = scmp.eq.s32.totalorder %s18, 1
      %p35 = por %p33, %p34
      %p36 = scmp.ne.s32.totalorder %s28, %s31
      %p37 = scmp.eq.s32.totalorder %s18, 0
      %p38 = por %p36, %p37
      %p39 = scmp.ne.s32.totalorder %s28, %s31
      %p40 = scmp.eq.s32.totalorder %s23, 1
      %p41 = por %p39, %p40
      %p42 = scmp.ne.s32.totalorder %s31, %s32
      %p43 = scmp.eq.s32.totalorder %s23, 0
      %p44 = por %p42, %p43
      %p45 = scmp.ne.s32.totalorder %s31, %s32
      %p46 = scmp.eq.s32.totalorder %s24, 1
      %p47 = por %p45, %p46
      %p49 = scmp.ne.s32.totalorder %s32, %s48
      %p50 = scmp.eq.s32.totalorder %s24, 0
      %p51 = por %p49, %p50
      %s52 = ssub.s32 %s18, %s25
      %p53 = scmp.eq.s32.totalorder %s52, 0
      %s55 = sadd.s32 %s54, 1
      %s56 = scalar_select %p53, %s54, %s55
      %p59 = pneg %p53
      %p60 = scmp.eq.s32.totalorder %s18, 1
      %p61 = por %p59, %p60
      %p62 = scmp.ne.s32.totalorder %s54, %s57
      %p63 = scmp.eq.s32.totalorder %s18, 0
      %p64 = por %p62, %p63
      %p65 = scmp.ne.s32.totalorder %s54, %s57
      %p66 = scmp.eq.s32.totalorder %s23, 1
      %p67 = por %p65, %p66
      %p68 = scmp.ne.s32.totalorder %s57, %s58
      %p69 = scmp.eq.s32.totalorder %s23, 0
      %p70 = por %p68, %p69
      %p71 = scmp.ne.s32.totalorder %s57, %s58
      %p72 = scmp.eq.s32.totalorder %s24, 1
      %p73 = por %p71, %p72
      %p75 = scmp.ne.s32.totalorder %s58, %s74
      %p76 = scmp.eq.s32.totalorder %s24, 0
      %p77 = por %p75, %p76
      %s79 = sadd.s32 %s78, 1
      %p82 = scmp.eq.s32.totalorder %s18, 1
      %p83 = scmp.ne.s32.totalorder %s78, %s80
      %p84 = scmp.eq.s32.totalorder %s18, 0
      %p85 = por %p83, %p84
      %p86 = scmp.ne.s32.totalorder %s78, %s80
      %p87 = scmp.eq.s32.totalorder %s23, 1
      %p88 = por %p86, %p87
      %p89 = scmp.ne.s32.totalorder %s80, %s81
      %p90 = scmp.eq.s32.totalorder %s23, 0
      %p91 = por %p89, %p90
      %p92 = scmp.ne.s32.totalorder %s80, %s81
      %p93 = scmp.eq.s32.totalorder %s24, 1
      %p94 = por %p92, %p93
      %p96 = scmp.ne.s32.totalorder %s81, %s95
      %p97 = scmp.eq.s32.totalorder %s24, 0
      %p98 = por %p96, %p97
      %s100 = sadd.s32 %s99, 1
      %p103 = scmp.eq.s32.totalorder %s18, 1
      %p104 = scmp.ne.s32.totalorder %s99, %s101
      %p105 = scmp.eq.s32.totalorder %s18, 0
      %p106 = por %p104, %p105
      %p107 = scmp.ne.s32.totalorder %s99, %s101
      %p108 = scmp.eq.s32.totalorder %s23, 1
      %p109 = por %p107, %p108
      %p110 = scmp.ne.s32.totalorder %s101, %s102
      %p111 = scmp.eq.s32.totalorder %s23, 0
      %p112 = por %p110, %p111
      %p113 = scmp.ne.s32.totalorder %s101, %s102
      %p114 = scmp.eq.s32.totalorder %s24, 1
      %p115 = por %p113, %p114
      %p117 = scmp.ne.s32.totalorder %s102, %s116
      %p118 = scmp.eq.s32.totalorder %s24, 0
      %p119 = por %p117, %p118
      %s121 = sadd.s32 %s120, 1
      %p124 = scmp.eq.s32.totalorder %s18, 1
      %p125 = scmp.ne.s32.totalorder %s120, %s122
      %p126 = scmp.eq.s32.totalorder %s18, 0
      %p127 = por %p125, %p126
      %p128 = scmp.ne.s32.totalorder %s120, %s122
      %p129 = scmp.eq.s32.totalorder %s23, 1
      %p130 = por %p128, %p129
      %p131 = scmp.ne.s32.totalorder %s122, %s123
      %p132 = scmp.eq.s32.totalorder %s23, 0
      %p133 = por %p131, %p132
      %p134 = scmp.ne.s32.totalorder %s122, %s123
      %p135 = scmp.eq.s32.totalorder %s24, 1
      %p136 = por %p134, %p135
      %p138 = scmp.ne.s32.totalorder %s123, %s137
      %p139 = scmp.eq.s32.totalorder %s24, 0
      %p140 = por %p138, %p139
      %s142 = sadd.s32 %s141, 1
      %p145 = scmp.eq.s32.totalorder %s18, 1
      %p146 = scmp.ne.s32.totalorder %s141, %s143
      %p147 = scmp.eq.s32.totalorder %s18, 0
      %p148 = por %p146, %p147
      %p149 = scmp.ne.s32.totalorder %s141, %s143
      %p150 = scmp.eq.s32.totalorder %s23, 1
      %p151 = por %p149, %p150
      %p152 = scmp.ne.s32.totalorder %s143, %s144
      %p153 = scmp.eq.s32.totalorder %s23, 0
      %p154 = por %p152, %p153
      %p155 = scmp.ne.s32.totalorder %s143, %s144
      %p156 = scmp.eq.s32.totalorder %s24, 1
      %p157 = por %p155, %p156
      %p159 = scmp.ne.s32.totalorder %s144, %s158
      %p160 = scmp.eq.s32.totalorder %s24, 0
      %p161 = por %p159, %p160
      %s163 = sadd.s32 %s162, 1
      %p166 = scmp.eq.s32.totalorder %s18, 1
      %p167 = scmp.ne.s32.totalorder %s162, %s164
      %p168 = scmp.eq.s32.totalorder %s18, 0
      %p169 = por %p167, %p168
      %p170 = scmp.ne.s32.totalorder %s162, %s164
      %p171 = scmp.eq.s32.totalorder %s23, 1
      %p172 = por %p170, %p171
      %p173 = scmp.ne.s32.totalorder %s164, %s165
      %p174 = scmp.eq.s32.totalorder %s23, 0
      %p175 = por %p173, %p174
      %p176 = scmp.ne.s32.totalorder %s164, %s165
      %p177 = scmp.eq.s32.totalorder %s24, 1
      %p178 = por %p176, %p177
      %p180 = scmp.ne.s32.totalorder %s165, %s179
      %p181 = scmp.eq.s32.totalorder %s24, 0
      %p182 = por %p180, %p181
      %s184 = sadd.s32 %s183, 1
      %p187 = scmp.eq.s32.totalorder %s18, 1
      %p188 = scmp.ne.s32.totalorder %s183, %s185
      %p189 = scmp.eq.s32.totalorder %s18, 0
      %p190 = por %p188, %p189
      %p191 = scmp.ne.s32.totalorder %s183, %s185
      %p192 = scmp.eq.s32.totalorder %s23, 1
      %p193 = por %p191, %p192
      %p194 = scmp.ne.s32.totalorder %s185, %s186
      %p195 = scmp.eq.s32.totalorder %s23, 0
      %p196 = por %p194, %p195
      %p197 = scmp.ne.s32.totalorder %s185, %s186
      %p198 = scmp.eq.s32.totalorder %s24, 1
      %p199 = por %p197, %p198
      %p201 = scmp.ne.s32.totalorder %s186, %s200
      %p202 = scmp.eq.s32.totalorder %s24, 0
      %p203 = por %p201, %p202
      %s205 = sadd.s32 %s204, 1
      %p208 = scmp.eq.s32.totalorder %s18, 1
      %p209 = scmp.ne.s32.totalorder %s204, %s206
      %p210 = scmp.eq.s32.totalorder %s18, 0
      %p211 = por %p209, %p210
      %p212 = scmp.ne.s32.totalorder %s204, %s206
      %p213 = scmp.eq.s32.totalorder %s23, 1
      %p214 = por %p212, %p213
      %p215 = scmp.ne.s32.totalorder %s206, %s207
      %p216 = scmp.eq.s32.totalorder %s23, 0
      %p217 = por %p215, %p216
      %p218 = scmp.ne.s32.totalorder %s206, %s207
      %p219 = scmp.eq.s32.totalorder %s24, 1
      %p220 = por %p218, %p219
      %p222 = scmp.ne.s32.totalorder %s207, %s221
      %p223 = scmp.eq.s32.totalorder %s24, 0
      %p224 = por %p222, %p223
      %s225 = ssub.s32 %s18, %s25
      %p226 = scmp.eq.s32.totalorder %s225, 0
      %s228 = sadd.s32 %s227, 1
      %s229 = scalar_select %p226, %s227, %s228
      %p232 = pneg %p226
      %p233 = scmp.eq.s32.totalorder %s18, 1
      %p234 = por %p232, %p233
      %p235 = scmp.ne.s32.totalorder %s227, %s230
      %p236 = scmp.eq.s32.totalorder %s18, 0
      %p237 = por %p235, %p236
      %p238 = scmp.ne.s32.totalorder %s227, %s230
      %p239 = scmp.eq.s32.totalorder %s23, 1
      %p240 = por %p238, %p239
      %p241 = scmp.ne.s32.totalorder %s230, %s231
      %p242 = scmp.eq.s32.totalorder %s23, 0
      %p243 = por %p241, %p242
      %p244 = scmp.ne.s32.totalorder %s230, %s231
      %p245 = scmp.eq.s32.totalorder %s24, 1
      %p246 = por %p244, %p245
      %p248 = scmp.ne.s32.totalorder %s231, %s247
      %p249 = scmp.eq.s32.totalorder %s24, 0
      %p250 = por %p248, %p249
      %p251 = scmp.le.s32.totalorder 1, %s18
      %p252 = scmp.lt.s32.totalorder %s18, 3
      %p253 = pnand %p251, %p252
      %p254 = pneg %p253
      // Predicated region
      $region9: #{residual_block_pallas.3} parent=5 // pred_check
        _
      $region10: #{residual_block_pallas.3} parent=5 // pred_check_branch
        %256 = sbr.rel (%p253) target = $region12
      $region11: #{residual_block_pallas.3} parent=5 // pred_region
        %s257 = ssub.s32 %s18, 1
        // Predicated region
        $region13: #{residual_block_pallas.3} parent=11 // pred_check
          %p258 = pneg %p91
        $region14: #{residual_block_pallas.3} parent=11 // pred_check_branch
          %260 = sbr.rel (%p258) target = $region16
        $region15: #{residual_block_pallas.3} parent=11 // pred_region
          _
        $region16: #{residual_block_pallas.3} parent=11 // pred_fallthru
          _
        // Predicated region
        $region17: #{residual_block_pallas.3} parent=11 // pred_check
          %p261 = pneg %p112
        $region18: #{residual_block_pallas.3} parent=11 // pred_check_branch
          %263 = sbr.rel (%p261) target = $region20
        $region19: #{residual_block_pallas.3} parent=11 // pred_region
          _
        $region20: #{residual_block_pallas.3} parent=11 // pred_fallthru
          _
        // Predicated region
        $region21: #{residual_block_pallas.3} parent=11 // pred_check
          %p264 = pneg %p133
        $region22: #{residual_block_pallas.3} parent=11 // pred_check_branch
          %266 = sbr.rel (%p264) target = $region24
        $region23: #{residual_block_pallas.3} parent=11 // pred_region
          _
        $region24: #{residual_block_pallas.3} parent=11 // pred_fallthru
          _
        // Predicated region
        $region25: #{residual_block_pallas.3} parent=11 // pred_check
          %p267 = pneg %p154
        $region26: #{residual_block_pallas.3} parent=11 // pred_check_branch
          %269 = sbr.rel (%p267) target = $region28
        $region27: #{residual_block_pallas.3} parent=11 // pred_region
          _
        $region28: #{residual_block_pallas.3} parent=11 // pred_fallthru
          _
        // Predicated region
        $region29: #{residual_block_pallas.3} parent=11 // pred_check
          %p270 = pneg %p175
        $region30: #{residual_block_pallas.3} parent=11 // pred_check_branch
          %272 = sbr.rel (%p270) target = $region32
        $region31: #{residual_block_pallas.3} parent=11 // pred_region
          _
        $region32: #{residual_block_pallas.3} parent=11 // pred_fallthru
          _
        // Predicated region
        $region33: #{residual_block_pallas.3} parent=11 // pred_check
          %p273 = pneg %p196
        $region34: #{residual_block_pallas.3} parent=11 // pred_check_branch
          %275 = sbr.rel (%p273) target = $region36
        $region35: #{residual_block_pallas.3} parent=11 // pred_region
          _
        $region36: #{residual_block_pallas.3} parent=11 // pred_fallthru
          _
        // Predicated region
        $region37: #{residual_block_pallas.3} parent=11 // pred_check
          %p276 = pneg %p217
        $region38: #{residual_block_pallas.3} parent=11 // pred_check_branch
          %278 = sbr.rel (%p276) target = $region40
        $region39: #{residual_block_pallas.3} parent=11 // pred_region
          _
        $region40: #{residual_block_pallas.3} parent=11 // pred_fallthru
          _
      $region12: #{residual_block_pallas.3} parent=5 // pred_fallthru
        _
      %p279 = scmp.lt.s32.totalorder %s18, 2
      // Predicated region
      $region41: #{residual_block_pallas.3} parent=5 // pred_check
        %p280 = pneg %p279
      $region42: #{residual_block_pallas.3} parent=5 // pred_check_branch
        %282 = sbr.rel (%p280) target = $region44
      $region43: #{residual_block_pallas.3} parent=5 // pred_region
        // Predicated region
        $region45: #{residual_block_pallas.3} parent=43 // pred_check
          %p283 = pneg %p38
        $region46: #{residual_block_pallas.3} parent=43 // pred_check_branch
          %285 = sbr.rel (%p283) target = $region48
        $region47: #{residual_block_pallas.3} parent=43 // pred_region
          %p286 = scmp.lt.s32.totalorder %s18, 1
          %s287 = scalar_select %p286, %s18, 1
          %s288 = smul.addr %s287, 8
          %s289 = smul.addr %s288, 8
          %s290 = scalar_lea.vmem %s0, %s289
        $region48: #{residual_block_pallas.3} parent=43 // pred_fallthru
          _
        // Predicated region
        $region49: #{residual_block_pallas.3} parent=43 // pred_check
          %p291 = pneg %p64
        $region50: #{residual_block_pallas.3} parent=43 // pred_check_branch
          %293 = sbr.rel (%p291) target = $region52
        $region51: #{residual_block_pallas.3} parent=43 // pred_region
          %p294 = scmp.lt.s32.totalorder %s18, 1
          %s295 = scalar_select %p294, %s18, 1
          %s296 = smul.addr %s295, 8
          %s297 = smul.addr %s296, 8
          %s298 = scalar_lea.vmem %s1, %s297
        $region52: #{residual_block_pallas.3} parent=43 // pred_fallthru
          _
      $region44: #{residual_block_pallas.3} parent=5 // pred_fallthru
        _
      %p299 = scmp.le.s32.totalorder 1, %s18
      %p300 = scmp.lt.s32.totalorder %s18, 3
      %p301 = pnand %p299, %p300
      %p302 = pneg %p301
      // Predicated region
      $region53: #{residual_block_pallas.3} parent=5 // pred_check
        _
      $region54: #{residual_block_pallas.3} parent=5 // pred_check_branch
        %304 = sbr.rel (%p301) target = $region56
      $region55: #{residual_block_pallas.3} parent=5 // pred_region
        %s305 = ssub.s32 %s18, 1
        %p306 = scmp.lt.s32.totalorder %s23, 1
        %s307 = scalar_select %p306, %s23, 1
        %s308 = smul.addr %s307, 8
        %s309 = smul.addr %s308, 8
        %s310 = scalar_lea.vmem %s0, %s309
        %p311 = pneg %p44
        %p312 = pneg %p41
        %p313 = scmp.lt.s32.totalorder %s23, 1
        %s314 = scalar_select %p313, %s23, 1
        %s315 = smul.addr %s314, 8
        %s316 = smul.addr %s315, 8
        %s317 = scalar_lea.vmem %s1, %s316
        %p318 = pneg %p70
        %p319 = pneg %p67
        %p320 = pneg %p91
        %p321 = pneg %p88
        %p322 = pneg %p112
        %p323 = pneg %p109
        %p324 = pneg %p133
        %p325 = pneg %p130
        %p326 = pneg %p154
        %p327 = pneg %p151
        %p328 = pneg %p175
        %p329 = pneg %p172
        %p330 = pneg %p196
        %p331 = pneg %p193
        %p332 = pneg %p217
        %p333 = pneg %p214
        %p334 = pneg %p243
        %p335 = pneg %p240
        %s336 = sand.u32 %s230, 1
        %s337 = scalar_lea.sflag [#allocation4], %s336
        %s338 = sand.u32 %s230, 1
        %s339 = smul.addr %s338, 64
        %s340 = scalar_lea.vmem [#allocation3], %s339
        %p341 = scmp.lt.s32.totalorder %s23, 1
        %s342 = scalar_select %p341, %s23, 1
        %s343 = smul.addr %s342, 8
        %s344 = smul.addr %s343, 8
        %s345 = scalar_lea.vmem %s0, %s344
        %p346 = scmp.lt.s32.totalorder %s23, 1
        %s347 = scalar_select %p346, %s23, 1
        %s348 = smul.addr %s347, 8
        %s349 = smul.addr %s348, 8
        %s350 = scalar_lea.vmem %s1, %s349
        %v352 = vld [vmem:[%s345] sm:$0xff]
        %v353 = vld [vmem:[%s345 + $0x8] sm:$0xff]
        %v354 = vld [vmem:[%s345 + $0x10] sm:$0xff]
        %v355 = vld [vmem:[%s345 + $0x18] sm:$0xff]
        %v356 = vld [vmem:[%s345 + $0x20] sm:$0xff]
        %v357 = vld [vmem:[%s345 + $0x28] sm:$0xff]
        %v358 = vld [vmem:[%s345 + $0x30] sm:$0xff]
        %v359 = vld [vmem:[%s345 + $0x38] sm:$0xff]
        %v360 = vld [vmem:[%s2] sm:$0x1]
        %v361 = vld [vmem:[%s3] sm:$0x1]
        %v362 = vld [vmem:[%s4] sm:$0xff]
        %v363 = vld [vmem:[%s4 + $0x8] sm:$0xff]
        %v364 = vld [vmem:[%s4 + $0x10] sm:$0xff]
        %v365 = vld [vmem:[%s4 + $0x18] sm:$0xff]
        %v366 = vld [vmem:[%s4 + $0x20] sm:$0xff]
        %v367 = vld [vmem:[%s4 + $0x28] sm:$0xff]
        %v368 = vld [vmem:[%s4 + $0x30] sm:$0xff]
        %v369 = vld [vmem:[%s4 + $0x38] sm:$0xff]
        %vm370 = vcmask 523264
        %v371 = vsel %vm370, %v352, 0.0
        %v372 = vsel %vm370, %v353, 0.0
        %v373 = vadd.f32 %v371, %v372
        %v374 = vsel %vm370, %v354, 0.0
        %v375 = vadd.f32 %v373, %v374
        %v376 = vsel %vm370, %v355, 0.0
        %v377 = vadd.f32 %v375, %v376
        %v378 = vsel %vm370, %v356, 0.0
        %v379 = vadd.f32 %v377, %v378
        %v380 = vsel %vm370, %v357, 0.0
        %v381 = vadd.f32 %v379, %v380
        %v382 = vsel %vm370, %v358, 0.0
        %v383 = vadd.f32 %v381, %v382
        %v384 = vsel %vm370, %v359, 0.0
        %v385 = vadd.f32 %v383, %v384
        %v386 = vrot.slane %v385, 4
        %v387 = vadd.f32 %v385, %v386
        %v388 = vrot.slane %v387, 2
        %v389 = vadd.f32 %v387, %v388
        %v390 = vrot.slane %v389, 1
        %v391 = vadd.f32 %v389, %v390
        %v392 = vrcp.pop 64.0
        %v393 = vmul.f32 %v391, %v392
        %v394 = vmul.f32 %v352, %v352
        %v395 = vmul.f32 %v353, %v353
        %v396 = vmul.f32 %v354, %v354
        %v397 = vmul.f32 %v355, %v355
        %v398 = vmul.f32 %v356, %v356
        %v399 = vmul.f32 %v357, %v357
        %v400 = vmul.f32 %v358, %v358
        %v401 = vmul.f32 %v359, %v359
        %v402 = vsel %vm370, %v394, 0.0
        %v403 = vsel %vm370, %v395, 0.0
        %v404 = vadd.f32 %v402, %v403
        %v405 = vsel %vm370, %v396, 0.0
        %v406 = vadd.f32 %v404, %v405
        %v407 = vsel %vm370, %v397, 0.0
        %v408 = vadd.f32 %v406, %v407
        %v409 = vsel %vm370, %v398, 0.0
        %v410 = vadd.f32 %v408, %v409
        %v411 = vsel %vm370, %v399, 0.0
        %v412 = vadd.f32 %v410, %v411
        %v413 = vsel %vm370, %v400, 0.0
        %v414 = vadd.f32 %v412, %v413
        %v415 = vsel %vm370, %v401, 0.0
        %v416 = vadd.f32 %v414, %v415
        %v417 = vrot.slane %v416, 4
        %v418 = vadd.f32 %v416, %v417
        %v419 = vrot.slane %v418, 2
        %v420 = vadd.f32 %v418, %v419
        %v421 = vrot.slane %v420, 1
        %v422 = vadd.f32 %v420, %v421
        %v423 = vmul.f32 %v422, %v392
        %vm424 = vcmask 1040384
        %v425 = vsel %vm424, %v393, %v423
        %v427 = vsel %vm370, %v425, 0
        %429 = vmatprep.subr.mxu0 0.0
        %430 = vmatpush1.msra.mxu0 %v362
        %431 = vmatprep.subr.mxu0 0.0
        %432 = vmatpush1.msra.mxu0 %v363
        %433 = vmatprep.subr.mxu0 0.0
        %434 = vmatpush1.msra.mxu0 %v364
        %435 = vmatprep.subr.mxu0 0.0
        %436 = vmatpush1.msra.mxu0 %v365
        %437 = vmatprep.subr.mxu0 0.0
        %438 = vmatpush1.msra.mxu0 %v366
        %439 = vmatprep.subr.mxu0 0.0
        %440 = vmatpush1.msra.mxu0 %v367
        %441 = vmatprep.subr.mxu0 0.0
        %442 = vmatpush1.msra.mxu0 %v368
        %443 = vmatprep.subr.mxu0 0.0
        %444 = vmatpush1.msra.mxu0 %v369
        %445 = vmatprep.subr.mxu0 0.0
        %446 = vmatpush1.msra.mxu0 0.0
        %447 = vmatprep.subr.mxu0 0.0
        %448 = vmatpush1.msra.mxu0 0.0
        %449 = vmatprep.subr.mxu0 0.0
        %450 = vmatpush1.msra.mxu0 0.0
        %451 = vmatprep.subr.mxu0 0.0
        %452 = vmatpush1.msra.mxu0 0.0
        %453 = vmatprep.subr.mxu0 0.0
        %454 = vmatpush1.msra.mxu0 0.0
        %455 = vmatprep.subr.mxu0 0.0
        %456 = vmatpush1.msra.mxu0 0.0
        %457 = vmatprep.subr.mxu0 0.0
        %458 = vmatpush1.msra.mxu0 0.0
        %459 = vmatprep.subr.mxu0 0.0
        %460 = vmatpush1.msra.mxu0 0.0
        %461 = vmatprep.subr.mxu0 0.0
        %462 = vmatpush1.msra.mxu0 0.0
        %463 = vmatprep.subr.mxu0 0.0
        %464 = vmatpush1.msra.mxu0 0.0
        %465 = vmatprep.subr.mxu0 0.0
        %466 = vmatpush1.msra.mxu0 0.0
        %467 = vmatprep.subr.mxu0 0.0
        %468 = vmatpush1.msra.mxu0 0.0
        %469 = vmatprep.subr.mxu0 0.0
        %470 = vmatpush1.msra.mxu0 0.0
        %471 = vmatprep.subr.mxu0 0.0
        %472 = vmatpush1.msra.mxu0 0.0
        %473 = vmatprep.subr.mxu0 0.0
        %474 = vmatpush1.msra.mxu0 0.0
        %475 = vmatprep.subr.mxu0 0.0
        %476 = vmatpush1.msra.mxu0 0.0
        %477 = vmatprep.subr.mxu0 0.0
        %478 = vmatpush1.msra.mxu0 0.0
        %479 = vmatprep.subr.mxu0 0.0
        %480 = vmatpush1.msra.mxu0 0.0
        %481 = vmatprep.subr.mxu0 0.0
        %482 = vmatpush1.msra.mxu0 0.0
        %483 = vmatprep.subr.mxu0 0.0
        %484 = vmatpush1.msra.mxu0 0.0
        %485 = vmatprep.subr.mxu0 0.0
        %486 = vmatpush1.msra.mxu0 0.0
        %487 = vmatprep.subr.mxu0 0.0
        %488 = vmatpush1.msra.mxu0 0.0
        %489 = vmatprep.subr.mxu0 0.0
        %490 = vmatpush1.msra.mxu0 0.0
        %491 = vmatprep.subr.mxu0 0.0
        %492 = vmatpush1.msra.mxu0 0.0
        %493 = vmatprep.mubr.f32.mxu0 0.0
        %494 = vmatmul.mubr.f32.gmra.mrb[0].mxu0 %v427
        %v495 = vpop.f32.mrb[0].mxu0
        %v496 = vadd.f32 0.0, %v495
        %v497 = vpop.f32.mrb[0].mxu0
        %498 = vdwg.mxu0
        %v499 = vmul.f32 %v496, %v496
        %v501 = vrot.slane %v499, 7
        %v503 = vsub.f32 %v496, %v501
        %v504 = vadd.f32 %v503, 1e-05
        %v505 = vrsqrt.pop %v504
        %v506 = vlaneseq
        %v507 = vshrl.u32 %v506, 7
        %v508 = vsub.s32 0, %v507
        %v509 = vrot.slane %v496, %v508
        %v510 = vsub.f32 %v352, %v509
        %v511 = vsub.f32 %v353, %v509
        %v512 = vsub.f32 %v354, %v509
        %v513 = vsub.f32 %v355, %v509
        %v514 = vsub.f32 %v356, %v509
        %v515 = vsub.f32 %v357, %v509
        %v516 = vsub.f32 %v358, %v509
        %v517 = vsub.f32 %v359, %v509
        %v519 = vlaneseq
        %v520 = vshrl.u32 %v519, 7
        %v521 = vsub.s32 0, %v520
        %v522 = vrot.slane %v360, %v521
        %v524 = vmul.f32 %v505, %v522
        %v525 = vlaneseq
        %v526 = vshrl.u32 %v525, 7
        %v527 = vsub.s32 1, %v526
        %v528 = vrot.slane %v524, %v527
        %v529 = vmul.f32 %v510, %v528
        %v530 = vmul.f32 %v511, %v528
        %v531 = vmul.f32 %v512, %v528
        %v532 = vmul.f32 %v513, %v528
        %v533 = vmul.f32 %v514, %v528
        %v534 = vmul.f32 %v515, %v528
        %v535 = vmul.f32 %v516, %v528
        %v536 = vmul.f32 %v517, %v528
        %v538 = vlaneseq
        %v539 = vshrl.u32 %v538, 7
        %v540 = vsub.s32 0, %v539
        %v541 = vrot.slane %v361, %v540
        %v543 = vadd.f32 %v529, %v541
        %v544 = vadd.f32 %v530, %v541
        %v545 = vadd.f32 %v531, %v541
        %v546 = vadd.f32 %v532, %v541
        %v547 = vadd.f32 %v533, %v541
        %v548 = vadd.f32 %v534, %v541
        %v549 = vadd.f32 %v535, %v541
        %v550 = vadd.f32 %v536, %v541
        %v551 = vxor.u32 %v543, 2147483648
        %v552 = vxor.u32 %v544, 2147483648
        %v553 = vxor.u32 %v545, 2147483648
        %v554 = vxor.u32 %v546, 2147483648
        %v555 = vxor.u32 %v547, 2147483648
        %v556 = vxor.u32 %v548, 2147483648
        %v557 = vxor.u32 %v549, 2147483648
        %v558 = vxor.u32 %v550, 2147483648
        %v559 = vmul.f32 %v551, 1.442695
        %v560 = vpow.pop %v559
        %v561 = vmul.f32 %v552, 1.442695
        %v562 = vpow.pop %v561
        %v563 = vmul.f32 %v553, 1.442695
        %v564 = vpow.pop %v563
        %v565 = vmul.f32 %v554, 1.442695
        %v566 = vpow.pop %v565
        %v567 = vmul.f32 %v555, 1.442695
        %v568 = vpow.pop %v567
        %v569 = vmul.f32 %v556, 1.442695
        %v570 = vpow.pop %v569
        %v571 = vmul.f32 %v557, 1.442695
        %v572 = vpow.pop %v571
        %v573 = vmul.f32 %v558, 1.442695
        %v574 = vpow.pop %v573
        %v575 = vadd.f32 %v560, 1.0
        %v576 = vadd.f32 %v562, 1.0
        %v577 = vadd.f32 %v564, 1.0
        %v578 = vadd.f32 %v566, 1.0
        %v579 = vadd.f32 %v568, 1.0
        %v580 = vadd.f32 %v570, 1.0
        %v581 = vadd.f32 %v572, 1.0
        %v582 = vadd.f32 %v574, 1.0
        %v583 = vrcp.pop %v575
        %v584 = vmul.f32 1.0, %v583
        %v585 = vrcp.pop %v576
        %v586 = vmul.f32 1.0, %v585
        %v587 = vrcp.pop %v577
        %v588 = vmul.f32 1.0, %v587
        %v589 = vrcp.pop %v578
        %v590 = vmul.f32 1.0, %v589
        %v591 = vrcp.pop %v579
        %v592 = vmul.f32 1.0, %v591
        %v593 = vrcp.pop %v580
        %v594 = vmul.f32 1.0, %v593
        %v595 = vrcp.pop %v581
        %v596 = vmul.f32 1.0, %v595
        %v597 = vrcp.pop %v582
        %v598 = vmul.f32 1.0, %v597
        %v599 = vmul.f32 %v543, %v584
        %v600 = vmul.f32 %v544, %v586
        %v601 = vmul.f32 %v545, %v588
        %v602 = vmul.f32 %v546, %v590
        %v603 = vmul.f32 %v547, %v592
        %v604 = vmul.f32 %v548, %v594
        %v605 = vmul.f32 %v549, %v596
        %v606 = vmul.f32 %v550, %v598
        %v607 = vlaneseq
        %v608 = vshrl.u32 %v607, 7
        %v609 = vadd.s32 %v608, 8
        %v610 = vadd.s32 %v608, 16
        %v611 = vadd.s32 %v608, 24
        %v612 = vadd.s32 %v608, 32
        %v613 = vadd.s32 %v608, 40
        %v614 = vadd.s32 %v608, 48
        %v615 = vadd.s32 %v608, 56
        %vm616 = vcmp.lt.s32.totalorder %v608, 0
        %v617 = vsub.s32 0, %v608
        %v618 = vsel %vm616, %v617, %v608
        %v619 = vshrl.u32 %v618, 3
        %v620 = vand.u32 %v618, 7
        %v621 = vsub.s32 0, %v620
        %v622 = vsel %vm616, %v621, %v620
        %vm623 = vcmp.lt.s32.totalorder %v609, 0
        %v624 = vsub.s32 0, %v609
        %v625 = vsel %vm623, %v624, %v609
        %v626 = vshrl.u32 %v625, 3
        %v627 = vand.u32 %v625, 7
        %v628 = vsub.s32 0, %v627
        %v629 = vsel %vm623, %v628, %v627
        %vm630 = vcmp.lt.s32.totalorder %v610, 0
        %v631 = vsub.s32 0, %v610
        %v632 = vsel %vm630, %v631, %v610
        %v633 = vshrl.u32 %v632, 3
        %v634 = vand.u32 %v632, 7
        %v635 = vsub.s32 0, %v634
        %v636 = vsel %vm630, %v635, %v634
        %vm637 = vcmp.lt.s32.totalorder %v611, 0
        %v638 = vsub.s32 0, %v611
        %v639 = vsel %vm637, %v638, %v611
        %v640 = vshrl.u32 %v639, 3
        %v641 = vand.u32 %v639, 7
        %v642 = vsub.s32 0, %v641
        %v643 = vsel %vm637, %v642, %v641
        %vm644 = vcmp.lt.s32.totalorder %v612, 0
        %v645 = vsub.s32 0, %v612
        %v646 = vsel %vm644, %v645, %v612
        %v647 = vshrl.u32 %v646, 3
        %v648 = vand.u32 %v646, 7
        %v649 = vsub.s32 0, %v648
        %v650 = vsel %vm644, %v649, %v648
        %vm651 = vcmp.lt.s32.totalorder %v613, 0
        %v652 = vsub.s32 0, %v613
        %v653 = vsel %vm651, %v652, %v613
        %v654 = vshrl.u32 %v653, 3
        %v655 = vand.u32 %v653, 7
        %v656 = vsub.s32 0, %v655
        %v657 = vsel %vm651, %v656, %v655
        %vm658 = vcmp.lt.s32.totalorder %v614, 0
        %v659 = vsub.s32 0, %v614
        %v660 = vsel %vm658, %v659, %v614
        %v661 = vshrl.u32 %v660, 3
        %v662 = vand.u32 %v660, 7
        %v663 = vsub.s32 0, %v662
        %v664 = vsel %vm658, %v663, %v662
        %vm665 = vcmp.lt.s32.totalorder %v615, 0
        %v666 = vsub.s32 0, %v615
        %v667 = vsel %vm665, %v666, %v615
        %v668 = vshrl.u32 %v667, 3
        %v669 = vand.u32 %v667, 7
        %v670 = vsub.s32 0, %v669
        %v671 = vsel %vm665, %v670, %v669
        %vm672 = vcmp.ne.s32.totalorder %v622, 0
        %vm673 = vcmp.ne.s32.totalorder %v629, 0
        %vm674 = vcmp.ne.s32.totalorder %v636, 0
        %vm675 = vcmp.ne.s32.totalorder %v643, 0
        %vm676 = vcmp.ne.s32.totalorder %v650, 0
        %vm677 = vcmp.ne.s32.totalorder %v657, 0
        %vm678 = vcmp.ne.s32.totalorder %v664, 0
        %vm679 = vcmp.ne.s32.totalorder %v671, 0
        %vm680 = vcmp.lt.s32.totalorder %v622, 0
        %vm681 = vcmp.lt.s32.totalorder %v629, 0
        %vm682 = vcmp.lt.s32.totalorder %v636, 0
        %vm683 = vcmp.lt.s32.totalorder %v643, 0
        %vm684 = vcmp.lt.s32.totalorder %v650, 0
        %vm685 = vcmp.lt.s32.totalorder %v657, 0
        %vm686 = vcmp.lt.s32.totalorder %v664, 0
        %vm687 = vcmp.lt.s32.totalorder %v671, 0
        %vm688 = vmand %vm680, %vm672
        %vm689 = vmand %vm681, %vm673
        %vm690 = vmand %vm682, %vm674
        %vm691 = vmand %vm683, %vm675
        %vm692 = vmand %vm684, %vm676
        %vm693 = vmand %vm685, %vm677
        %vm694 = vmand %vm686, %vm678
        %vm695 = vmand %vm687, %vm679
        %v696 = vadd.s32 %v622, 8
        %v697 = vadd.s32 %v629, 8
        %v698 = vadd.s32 %v636, 8
        %v699 = vadd.s32 %v643, 8
        %v700 = vadd.s32 %v650, 8
        %v701 = vadd.s32 %v657, 8
        %v702 = vadd.s32 %v664, 8
        %v703 = vadd.s32 %v671, 8
        %v704 = vsel %vm688, %v696, %v622
        %v705 = vsel %vm689, %v697, %v629
        %v706 = vsel %vm690, %v698, %v636
        %v707 = vsel %vm691, %v699, %v643
        %v708 = vsel %vm692, %v700, %v650
        %v709 = vsel %vm693, %v701, %v657
        %v710 = vsel %vm694, %v702, %v664
        %v711 = vsel %vm695, %v703, %v671
        %vm712 = vcmp.eq.s32.totalorder %v704, 7
        %vm713 = vcmp.eq.s32.totalorder %v705, 7
        %vm714 = vcmp.eq.s32.totalorder %v706, 7
        %vm715 = vcmp.eq.s32.totalorder %v707, 7
        %vm716 = vcmp.eq.s32.totalorder %v708, 7
        %vm717 = vcmp.eq.s32.totalorder %v709, 7
        %vm718 = vcmp.eq.s32.totalorder %v710, 7
        %vm719 = vcmp.eq.s32.totalorder %v711, 7
        %v720 = vsel %vm712, 1, 0
        %v721 = vsel %vm713, 1, 0
        %v722 = vsel %vm714, 1, 0
        %v723 = vsel %vm715, 1, 0
        %v724 = vsel %vm716, 1, 0
        %v725 = vsel %vm717, 1, 0
        %v726 = vsel %vm718, 1, 0
        %v727 = vsel %vm719, 1, 0
        %vm728 = vcmp.eq.s32.totalorder %v720, 1
        %vm729 = vcmp.eq.s32.totalorder %v721, 1
        %vm730 = vcmp.eq.s32.totalorder %v722, 1
        %vm731 = vcmp.eq.s32.totalorder %v723, 1
        %vm732 = vcmp.eq.s32.totalorder %v724, 1
        %vm733 = vcmp.eq.s32.totalorder %v725, 1
        %vm734 = vcmp.eq.s32.totalorder %v726, 1
        %vm735 = vcmp.eq.s32.totalorder %v727, 1
        %v736 = vsel %vm728, 0.0, %v599
        %v737 = vsel %vm729, 0.0, %v600
        %v738 = vsel %vm730, 0.0, %v601
        %v739 = vsel %vm731, 0.0, %v602
        %v740 = vsel %vm732, 0.0, %v603
        %v741 = vsel %vm733, 0.0, %v604
        %v742 = vsel %vm734, 0.0, %v605
        %v743 = vsel %vm735, 0.0, %v606
        %vm744 = vcmp.eq.s32.totalorder %v704, 0
        %vm745 = vcmp.eq.s32.totalorder %v705, 0
        %vm746 = vcmp.eq.s32.totalorder %v706, 0
        %vm747 = vcmp.eq.s32.totalorder %v707, 0
        %vm748 = vcmp.eq.s32.totalorder %v708, 0
        %vm749 = vcmp.eq.s32.totalorder %v709, 0
        %vm750 = vcmp.eq.s32.totalorder %v710, 0
        %vm751 = vcmp.eq.s32.totalorder %v711, 0
        %v752 = vsel %vm744, 1, 0
        %v753 = vsel %vm745, 1, 0
        %v754 = vsel %vm746, 1, 0
        %v755 = vsel %vm747, 1, 0
        %v756 = vsel %vm748, 1, 0
        %v757 = vsel %vm749, 1, 0
        %v758 = vsel %vm750, 1, 0
        %v759 = vsel %vm751, 1, 0
        %vm760 = vcmp.eq.s32.totalorder %v752, 1
        %vm761 = vcmp.eq.s32.totalorder %v753, 1
        %vm762 = vcmp.eq.s32.totalorder %v754, 1
        %vm763 = vcmp.eq.s32.totalorder %v755, 1
        %vm764 = vcmp.eq.s32.totalorder %v756, 1
        %vm765 = vcmp.eq.s32.totalorder %v757, 1
        %vm766 = vcmp.eq.s32.totalorder %v758, 1
        %vm767 = vcmp.eq.s32.totalorder %v759, 1
        %v768 = vsel %vm760, 0.0, %v599
        %v769 = vsel %vm761, 0.0, %v600
        %v770 = vsel %vm762, 0.0, %v601
        %v771 = vsel %vm763, 0.0, %v602
        %v772 = vsel %vm764, 0.0, %v603
        %v773 = vsel %vm765, 0.0, %v604
        %v774 = vsel %vm766, 0.0, %v605
        %v775 = vsel %vm767, 0.0, %v606
        %776 = vst [vmem:[#allocation2] sm:$0xff] 0.0
        %777 = vst.msk [vmem:[#allocation2 + $0x8] sm:$0xff] %vm370, 0.0
        %778 = vst [vmem:[#allocation2 + $0x10] sm:$0xff] 0.0
        %779 = vst.msk [vmem:[#allocation2 + $0x18] sm:$0xff] %vm370, 0.0
        %780 = vst [vmem:[#allocation2 + $0x20] sm:$0xff] 0.0
        %781 = vst.msk [vmem:[#allocation2 + $0x28] sm:$0xff] %vm370, 0.0
        %782 = vst [vmem:[#allocation2 + $0x30] sm:$0xff] 0.0
        %783 = vst.msk [vmem:[#allocation2 + $0x38] sm:$0xff] %vm370, 0.0
        %784 = vst [vmem:[#allocation2 + $0x40] sm:$0xff] 0.0
        %785 = vst.msk [vmem:[#allocation2 + $0x48] sm:$0xff] %vm370, 0.0
        %786 = vst [vmem:[#allocation2 + $0x50] sm:$0xff] 0.0
        %787 = vst.msk [vmem:[#allocation2 + $0x58] sm:$0xff] %vm370, 0.0
        %788 = vst [vmem:[#allocation2 + $0x60] sm:$0xff] 0.0
        %789 = vst.msk [vmem:[#allocation2 + $0x68] sm:$0xff] %vm370, 0.0
        %790 = vst [vmem:[#allocation2 + $0x70] sm:$0xff] 0.0
        %791 = vst.msk [vmem:[#allocation2 + $0x78] sm:$0xff] %vm370, 0.0
        %792 = vst [vmem:[#allocation2 + $0x80] sm:$0xff] 0.0
        %793 = vst.msk [vmem:[#allocation2 + $0x88] sm:$0xff] %vm370, 0.0
        %794 = vst [vmem:[#allocation2 + $0x90] sm:$0xff] 0.0
        %795 = vst.msk [vmem:[#allocation2 + $0x98] sm:$0xff] %vm370, 0.0
        %v804 = vrot.slane %v736, 7
        %v805 = vrot.slane %v737, 7
        %v806 = vsel %vm424, %v804, %v805
        %v807 = vrot.slane %v738, 7
        %v808 = vsel %vm424, %v805, %v807
        %v809 = vrot.slane %v739, 7
        %v810 = vsel %vm424, %v807, %v809
        %v811 = vrot.slane %v740, 7
        %v812 = vsel %vm424, %v809, %v811
        %v813 = vrot.slane %v741, 7
        %v814 = vsel %vm424, %v811, %v813
        %v815 = vrot.slane %v742, 7
        %v816 = vsel %vm424, %v813, %v815
        %v817 = vrot.slane %v743, 7
        %v818 = vsel %vm424, %v815, %v817
        %vm828 = vcmask 523265
        %829 = vst.msk [vmem:[#allocation2 + $0x10] sm:$0xfe] %vm828, %v804
        %830 = vst.msk [vmem:[#allocation2 + $0x20] sm:$0xff] %vm370, %v806
        %831 = vst.msk [vmem:[#allocation2 + $0x30] sm:$0xff] %vm370, %v808
        %832 = vst.msk [vmem:[#allocation2 + $0x40] sm:$0xff] %vm370, %v810
        %833 = vst.msk [vmem:[#allocation2 + $0x50] sm:$0xff] %vm370, %v812
        %834 = vst.msk [vmem:[#allocation2 + $0x60] sm:$0xff] %vm370, %v814
        %835 = vst.msk [vmem:[#allocation2 + $0x70] sm:$0xff] %vm370, %v816
        %836 = vst.msk [vmem:[#allocation2 + $0x80] sm:$0xff] %vm370, %v818
        %vm837 = vcmask 516096
        %838 = vst.msk [vmem:[#allocation2 + $0x90] sm:$0x1] %vm837, %v817
        %847 = vrot.lane.b32.xlu0 %v599, 64
        %v848 = vpop.permute.xlu0 %847
        %849 = vrot.lane.b32.xlu0 %v600, 64
        %v850 = vpop.permute.xlu0 %849
        %851 = vrot.lane.b32.xlu0 %v601, 64
        %v852 = vpop.permute.xlu0 %851
        %853 = vrot.lane.b32.xlu0 %v602, 64
        %v854 = vpop.permute.xlu0 %853
        %855 = vrot.lane.b32.xlu0 %v603, 64
        %v856 = vpop.permute.xlu0 %855
        %857 = vrot.lane.b32.xlu0 %v604, 64
        %v858 = vpop.permute.xlu0 %857
        %859 = vrot.lane.b32.xlu0 %v605, 64
        %v860 = vpop.permute.xlu0 %859
        %861 = vrot.lane.b32.xlu0 %v606, 64
        %v862 = vpop.permute.xlu0 %861
        %vm871 = vcmask 1048064
        %872 = vst.msk [vmem:[#allocation2 + $0x10] sm:$0xff] %vm871, %v848
        %873 = vst.msk [vmem:[#allocation2 + $0x20] sm:$0xff] %vm871, %v850
        %874 = vst.msk [vmem:[#allocation2 + $0x30] sm:$0xff] %vm871, %v852
        %875 = vst.msk [vmem:[#allocation2 + $0x40] sm:$0xff] %vm871, %v854
        %876 = vst.msk [vmem:[#allocation2 + $0x50] sm:$0xff] %vm871, %v856
        %877 = vst.msk [vmem:[#allocation2 + $0x60] sm:$0xff] %vm871, %v858
        %878 = vst.msk [vmem:[#allocation2 + $0x70] sm:$0xff] %vm871, %v860
        %879 = vst.msk [vmem:[#allocation2 + $0x80] sm:$0xff] %vm871, %v862
        %vm888 = vcmask 1046528
        %v889 = vrot.slane %v768, 1
        %v890 = vrot.slane %v769, 1
        %v891 = vsel %vm888, %v889, %v890
        %v892 = vrot.slane %v770, 1
        %v893 = vsel %vm888, %v890, %v892
        %v894 = vrot.slane %v771, 1
        %v895 = vsel %vm888, %v892, %v894
        %v896 = vrot.slane %v772, 1
        %v897 = vsel %vm888, %v894, %v896
        %v898 = vrot.slane %v773, 1
        %v899 = vsel %vm888, %v896, %v898
        %v900 = vrot.slane %v774, 1
        %v901 = vsel %vm888, %v898, %v900
        %v902 = vrot.slane %v775, 1
        %v903 = vsel %vm888, %v900, %v902
        %vm913 = vcmask 523271
        %914 = vst.msk [vmem:[#allocation2 + $0x8] sm:$0x80] %vm913, %v889
        %915 = vst.msk [vmem:[#allocation2 + $0x18] sm:$0xff] %vm370, %v891
        %916 = vst.msk [vmem:[#allocation2 + $0x28] sm:$0xff] %vm370, %v893
        %917 = vst.msk [vmem:[#allocation2 + $0x38] sm:$0xff] %vm370, %v895
        %918 = vst.msk [vmem:[#allocation2 + $0x48] sm:$0xff] %vm370, %v897
        %919 = vst.msk [vmem:[#allocation2 + $0x58] sm:$0xff] %vm370, %v899
        %920 = vst.msk [vmem:[#allocation2 + $0x68] sm:$0xff] %vm370, %v901
        %921 = vst.msk [vmem:[#allocation2 + $0x78] sm:$0xff] %vm370, %v903
        %vm922 = vcmask 522240
        %923 = vst.msk [vmem:[#allocation2 + $0x88] sm:$0x7f] %vm922, %v902
        %v924 = vld [vmem:[#allocation2] sm:$0xff]
        %v925 = vld [vmem:[#allocation2 + $0x8] sm:$0xff]
        %v926 = vld [vmem:[#allocation2 + $0x10] sm:$0xff]
        %v927 = vld [vmem:[#allocation2 + $0x18] sm:$0xff]
        %v928 = vld [vmem:[#allocation2 + $0x20] sm:$0xff]
        %v929 = vld [vmem:[#allocation2 + $0x28] sm:$0xff]
        %v930 = vld [vmem:[#allocation2 + $0x30] sm:$0xff]
        %v931 = vld [vmem:[#allocation2 + $0x38] sm:$0xff]
        %v932 = vld [vmem:[#allocation2 + $0x40] sm:$0xff]
        %v933 = vld [vmem:[#allocation2 + $0x48] sm:$0xff]
        %v934 = vld [vmem:[#allocation2 + $0x50] sm:$0xff]
        %v935 = vld [vmem:[#allocation2 + $0x58] sm:$0xff]
        %v936 = vld [vmem:[#allocation2 + $0x60] sm:$0xff]
        %v937 = vld [vmem:[#allocation2 + $0x68] sm:$0xff]
        %v938 = vld [vmem:[#allocation2 + $0x70] sm:$0xff]
        %v939 = vld [vmem:[#allocation2 + $0x78] sm:$0xff]
        %v940 = vpack.c.bf16 %v926, %v924
        %v941 = vpack.c.bf16 %v927, %v925
        %v942 = vpack.c.bf16 %v930, %v928
        %v943 = vpack.c.bf16 %v931, %v929
        %v944 = vpack.c.bf16 %v934, %v932
        %v945 = vpack.c.bf16 %v935, %v933
        %v946 = vpack.c.bf16 %v938, %v936
        %v947 = vpack.c.bf16 %v939, %v937
        %v948 = vld [vmem:[%s5] sm:$0xf]
        %v949 = vld [vmem:[%s5 + $0x4] sm:$0xf]
        %v950 = vld [vmem:[%s5 + $0x8] sm:$0xf]
        %v951 = vld [vmem:[%s5 + $0xc] sm:$0xf]
        %v952 = vld [vmem:[%s5 + $0x10] sm:$0xf]
        %v953 = vld [vmem:[%s5 + $0x14] sm:$0xf]
        %v954 = vld [vmem:[%s5 + $0x18] sm:$0xf]
        %v955 = vld [vmem:[%s5 + $0x1c] sm:$0xf]
        %v956 = vld [vmem:[%s5 + $0x20] sm:$0xf]
        %v957 = vld [vmem:[%s5 + $0x24] sm:$0xf]
        %v958 = vld [vmem:[%s5 + $0x28] sm:$0xf]
        %v959 = vld [vmem:[%s5 + $0x2c] sm:$0xf]
        %v960 = vld [vmem:[%s5 + $0x30] sm:$0xf]
        %v961 = vld [vmem:[%s5 + $0x34] sm:$0xf]
        %v962 = vld [vmem:[%s5 + $0x38] sm:$0xf]
        %v963 = vld [vmem:[%s5 + $0x3c] sm:$0xf]
        %v964 = vld [vmem:[%s5 + $0x40] sm:$0xf]
        %v965 = vld [vmem:[%s5 + $0x44] sm:$0xf]
        %v966 = vld [vmem:[%s5 + $0x48] sm:$0xf]
        %v967 = vld [vmem:[%s5 + $0x4c] sm:$0xf]
        %v968 = vld [vmem:[%s5 + $0x50] sm:$0xf]
        %v969 = vld [vmem:[%s5 + $0x54] sm:$0xf]
        %v970 = vld [vmem:[%s5 + $0x58] sm:$0xf]
        %v971 = vld [vmem:[%s5 + $0x5c] sm:$0xf]
        %v972 = vld [vmem:[#allocation2 + $0x80] sm:$0xff]
        %v973 = vld [vmem:[#allocation2 + $0x88] sm:$0xff]
        %v974 = vpack.c.bf16 %v928, %v926
        %v975 = vpack.c.bf16 %v929, %v927
        %v976 = vpack.c.bf16 %v932, %v930
        %v977 = vpack.c.bf16 %v933, %v931
        %v978 = vpack.c.bf16 %v936, %v934
        %v979 = vpack.c.bf16 %v937, %v935
        %v980 = vpack.c.bf16 %v972, %v938
        %v981 = vpack.c.bf16 %v973, %v939
        %s982 = scalar_lea.vmem %s5, 96
        %v983 = vld [vmem:[%s982] sm:$0xf]
        %v984 = vld [vmem:[%s982 + $0x4] sm:$0xf]
        %v985 = vld [vmem:[%s982 + $0x8] sm:$0xf]
        %v986 = vld [vmem:[%s982 + $0xc] sm:$0xf]
        %v987 = vld [vmem:[%s982 + $0x10] sm:$0xf]
        %v988 = vld [vmem:[%s982 + $0x14] sm:$0xf]
        %v989 = vld [vmem:[%s982 + $0x18] sm:$0xf]
        %v990 = vld [vmem:[%s982 + $0x1c] sm:$0xf]
        %v991 = vld [vmem:[%s982 + $0x20] sm:$0xf]
        %v992 = vld [vmem:[%s982 + $0x24] sm:$0xf]
        %v993 = vld [vmem:[%s982 + $0x28] sm:$0xf]
        %v994 = vld [vmem:[%s982 + $0x2c] sm:$0xf]
        %v995 = vld [vmem:[%s982 + $0x30] sm:$0xf]
        %v996 = vld [vmem:[%s982 + $0x34] sm:$0xf]
        %v997 = vld [vmem:[%s982 + $0x38] sm:$0xf]
        %v998 = vld [vmem:[%s982 + $0x3c] sm:$0xf]
        %v999 = vld [vmem:[%s982 + $0x40] sm:$0xf]
        %v1000 = vld [vmem:[%s982 + $0x44] sm:$0xf]
        %v1001 = vld [vmem:[%s982 + $0x48] sm:$0xf]
        %v1002 = vld [vmem:[%s982 + $0x4c] sm:$0xf]
        %v1003 = vld [vmem:[%s982 + $0x50] sm:$0xf]
        %v1004 = vld [vmem:[%s982 + $0x54] sm:$0xf]
        %v1005 = vld [vmem:[%s982 + $0x58] sm:$0xf]
        %v1006 = vld [vmem:[%s982 + $0x5c] sm:$0xf]
        %v1031 = vunpack.c.l.b16 %v983
        %v1032 = vunpack.c.l.b16 %v984
        %v1033 = vunpack.c.l.b16 %v985
        %v1034 = vunpack.c.l.b16 %v986
        %v1035 = vunpack.c.l.b16 %v987
        %v1036 = vunpack.c.l.b16 %v988
        %v1037 = vunpack.c.l.b16 %v989
        %v1038 = vunpack.c.l.b16 %v990
        %v1039 = vunpack.c.l.b16 %v991
        %v1040 = vunpack.c.l.b16 %v992
        %v1041 = vunpack.c.l.b16 %v993
        %v1042 = vunpack.c.l.b16 %v994
        %v1043 = vunpack.c.l.b16 %v995
        %v1044 = vunpack.c.l.b16 %v996
        %v1045 = vunpack.c.l.b16 %v997
        %v1046 = vunpack.c.l.b16 %v998
        %v1047 = vunpack.c.l.b16 %v999
        %v1048 = vunpack.c.l.b16 %v1000
        %v1049 = vunpack.c.l.b16 %v1001
        %v1050 = vunpack.c.l.b16 %v1002
        %v1051 = vunpack.c.l.b16 %v1003
        %v1052 = vunpack.c.l.b16 %v1004
        %v1053 = vunpack.c.l.b16 %v1005
        %v1054 = vunpack.c.l.b16 %v1006
        %v1055 = vpack.c.b16 %v1032, %v1031
        %v1056 = vpack.c.b16 %v1034, %v1033
        %v1057 = vpack.c.b16 %v1036, %v1035
        %v1058 = vpack.c.b16 %v1038, %v1037
        %v1059 = vpack.c.b16 %v1040, %v1039
        %v1060 = vpack.c.b16 %v1042, %v1041
        %v1061 = vpack.c.b16 %v1044, %v1043
        %v1062 = vpack.c.b16 %v1046, %v1045
        %v1063 = vpack.c.b16 %v1048, %v1047
        %v1064 = vpack.c.b16 %v1050, %v1049
        %v1065 = vpack.c.b16 %v1052, %v1051
        %v1066 = vpack.c.b16 %v1054, %v1053
        %v1080 = vsel %vm370, %v975, 0
        %v1083 = vsel %vm370, %v977, 0
        %v1086 = vsel %vm370, %v979, 0
        %v1089 = vsel %vm370, %v981, 0
        %1091 = vmatprep.subr.bf16.mxu0 0
        %1092 = vmatpush1.bf16.msra.mxu0 %v1055
        %1093 = vmatprep.subr.bf16.mxu0 0
        %1094 = vmatpush1.bf16.msra.mxu0 %v1056
        %1095 = vmatprep.subr.bf16.mxu0 0
        %1096 = vmatpush1.bf16.msra.mxu0 %v1057
        %1097 = vmatprep.subr.bf16.mxu0 0
        %1098 = vmatpush1.bf16.msra.mxu0 %v1058
        %1099 = vmatprep.subr.bf16.mxu0 0
        %1100 = vmatpush1.bf16.msra.mxu0 %v1059
        %1101 = vmatprep.subr.bf16.mxu0 0
        %1102 = vmatpush1.bf16.msra.mxu0 %v1060
        %1103 = vmatprep.subr.bf16.mxu0 0
        %1104 = vmatpush1.bf16.msra.mxu0 %v1061
        %1105 = vmatprep.subr.bf16.mxu0 0
        %1106 = vmatpush1.bf16.msra.mxu0 %v1062
        %1107 = vmatprep.subr.bf16.mxu0 0
        %1108 = vmatpush1.bf16.msra.mxu0 %v1063
        %1109 = vmatprep.subr.bf16.mxu0 0
        %1110 = vmatpush1.bf16.msra.mxu0 %v1064
        %1111 = vmatprep.subr.bf16.mxu0 0
        %1112 = vmatpush1.bf16.msra.mxu0 %v1065
        %1113 = vmatprep.subr.bf16.mxu0 0
        %1114 = vmatpush1.bf16.msra.mxu0 %v1066
        %1115 = vmatprep.subr.bf16.mxu0 0
        %1116 = vmatpush1.bf16.msra.mxu0 0
        %1117 = vmatprep.subr.bf16.mxu0 0
        %1118 = vmatpush1.bf16.msra.mxu0 0
        %1119 = vmatprep.subr.bf16.mxu0 0
        %1120 = vmatpush1.bf16.msra.mxu0 0
        %1121 = vmatprep.subr.bf16.mxu0 0
        %1122 = vmatpush1.bf16.msra.mxu0 0
        %1123 = vmatprep.mubr.bf16.mxu0 %v1080
        %1124 = vmatmul.mubr.bf16.gmra.mrb[0].mxu0 %v974
        %v1125 = vpop.f32.mrb[0].mxu0
        %v1126 = vadd.f32 0.0, %v1125
        %v1127 = vpop.f32.mrb[0].mxu0
        %v1128 = vpop.f32.mrb[0].mxu0
        %v1129 = vadd.f32 0.0, %v1128
        %v1130 = vpop.f32.mrb[0].mxu0
        %1131 = vmatprep.mubr.bf16.mxu0 %v1083
        %1132 = vmatmul.mubr.bf16.gmra.mrb[0].mxu0 %v976
        %v1133 = vpop.f32.mrb[0].mxu0
        %v1134 = vadd.f32 0.0, %v1133
        %v1135 = vpop.f32.mrb[0].mxu0
        %v1136 = vpop.f32.mrb[0].mxu0
        %v1137 = vadd.f32 0.0, %v1136
        %v1138 = vpop.f32.mrb[0].mxu0
        %1139 = vmatprep.mubr.bf16.mxu0 %v1086
        %1140 = vmatmul.mubr.bf16.gmra.mrb[0].mxu0 %v978
        %v1141 = vpop.f32.mrb[0].mxu0
        %v1142 = vadd.f32 0.0, %v1141
        %v1143 = vpop.f32.mrb[0].mxu0
        %v1144 = vpop.f32.mrb[0].mxu0
        %v1145 = vadd.f32 0.0, %v1144
        %v1146 = vpop.f32.mrb[0].mxu0
        %1147 = vmatprep.mubr.bf16.mxu0 %v1089
        %1148 = vmatmul.mubr.bf16.gmra.mrb[0].mxu0 %v980
        %v1149 = vpop.f32.mrb[0].mxu0
        %v1150 = vadd.f32 0.0, %v1149
        %v1151 = vpop.f32.mrb[0].mxu0
        %v1152 = vpop.f32.mrb[0].mxu0
        %v1153 = vadd.f32 0.0, %v1152
        %v1154 = vpop.f32.mrb[0].mxu0
        %1155 = vdwg.mxu0
        %v1180 = vunpack.c.l.b16 %v948
        %v1181 = vunpack.c.l.b16 %v949
        %v1182 = vunpack.c.l.b16 %v950
        %v1183 = vunpack.c.l.b16 %v951
        %v1184 = vunpack.c.l.b16 %v952
        %v1185 = vunpack.c.l.b16 %v953
        %v1186 = vunpack.c.l.b16 %v954
        %v1187 = vunpack.c.l.b16 %v955
        %v1188 = vunpack.c.l.b16 %v956
        %v1189 = vunpack.c.l.b16 %v957
        %v1190 = vunpack.c.l.b16 %v958
        %v1191 = vunpack.c.l.b16 %v959
        %v1192 = vunpack.c.l.b16 %v960
        %v1193 = vunpack.c.l.b16 %v961
        %v1194 = vunpack.c.l.b16 %v962
        %v1195 = vunpack.c.l.b16 %v963
        %v1196 = vunpack.c.l.b16 %v964
        %v1197 = vunpack.c.l.b16 %v965
        %v1198 = vunpack.c.l.b16 %v966
        %v1199 = vunpack.c.l.b16 %v967
        %v1200 = vunpack.c.l.b16 %v968
        %v1201 = vunpack.c.l.b16 %v969
        %v1202 = vunpack.c.l.b16 %v970
        %v1203 = vunpack.c.l.b16 %v971
        %v1204 = vpack.c.b16 %v1181, %v1180
        %v1205 = vpack.c.b16 %v1183, %v1182
        %v1206 = vpack.c.b16 %v1185, %v1184
        %v1207 = vpack.c.b16 %v1187, %v1186
        %v1208 = vpack.c.b16 %v1189, %v1188
        %v1209 = vpack.c.b16 %v1191, %v1190
        %v1210 = vpack.c.b16 %v1193, %v1192
        %v1211 = vpack.c.b16 %v1195, %v1194
        %v1212 = vpack.c.b16 %v1197, %v1196
        %v1213 = vpack.c.b16 %v1199, %v1198
        %v1214 = vpack.c.b16 %v1201, %v1200
        %v1215 = vpack.c.b16 %v1203, %v1202
        %v1229 = vsel %vm370, %v941, 0
        %v1232 = vsel %vm370, %v943, 0
        %v1235 = vsel %vm370, %v945, 0
        %v1238 = vsel %vm370, %v947, 0
        %1240 = vmatprep.subr.bf16.mxu0 0
        %1241 = vmatpush1.bf16.msra.mxu0 %v1204
        %1242 = vmatprep.subr.bf16.mxu0 0
        %1243 = vmatpush1.bf16.msra.mxu0 %v1205
        %1244 = vmatprep.subr.bf16.mxu0 0
        %1245 = vmatpush1.bf16.msra.mxu0 %v1206
        %1246 = vmatprep.subr.bf16.mxu0 0
        %1247 = vmatpush1.bf16.msra.mxu0 %v1207
        %1248 = vmatprep.subr.bf16.mxu0 0
        %1249 = vmatpush1.bf16.msra.mxu0 %v1208
        %1250 = vmatprep.subr.bf16.mxu0 0
        %1251 = vmatpush1.bf16.msra.mxu0 %v1209
        %1252 = vmatprep.subr.bf16.mxu0 0
        %1253 = vmatpush1.bf16.msra.mxu0 %v1210
        %1254 = vmatprep.subr.bf16.mxu0 0
        %1255 = vmatpush1.bf16.msra.mxu0 %v1211
        %1256 = vmatprep.subr.bf16.mxu0 0
        %1257 = vmatpush1.bf16.msra.mxu0 %v1212
        %1258 = vmatprep.subr.bf16.mxu0 0
        %1259 = vmatpush1.bf16.msra.mxu0 %v1213
        %1260 = vmatprep.subr.bf16.mxu0 0
        %1261 = vmatpush1.bf16.msra.mxu0 %v1214
        %1262 = vmatprep.subr.bf16.mxu0 0
        %1263 = vmatpush1.bf16.msra.mxu0 %v1215
        %1264 = vmatprep.subr.bf16.mxu0 0
        %1265 = vmatpush1.bf16.msra.mxu0 0
        %1266 = vmatprep.subr.bf16.mxu0 0
        %1267 = vmatpush1.bf16.msra.mxu0 0
        %1268 = vmatprep.subr.bf16.mxu0 0
        %1269 = vmatpush1.bf16.msra.mxu0 0
        %1270 = vmatprep.subr.bf16.mxu0 0
        %1271 = vmatpush1.bf16.msra.mxu0 0
        %1272 = vmatprep.mubr.bf16.mxu0 %v1229
        %1273 = vmatmul.mubr.bf16.gmra.mrb[0].mxu0 %v940
        %v1274 = vpop.f32.mrb[0].mxu0
        %v1275 = vadd.f32 %v1126, %v1274
        %v1276 = vpop.f32.mrb[0].mxu0
        %v1277 = vpop.f32.mrb[0].mxu0
        %v1278 = vadd.f32 %v1129, %v1277
        %v1279 = vpop.f32.mrb[0].mxu0
        %1280 = vmatprep.mubr.bf16.mxu0 %v1232
        %1281 = vmatmul.mubr.bf16.gmra.mrb[0].mxu0 %v942
        %v1282 = vpop.f32.mrb[0].mxu0
        %v1283 = vadd.f32 %v1134, %v1282
        %v1284 = vpop.f32.mrb[0].mxu0
        %v1285 = vpop.f32.mrb[0].mxu0
        %v1286 = vadd.f32 %v1137, %v1285
        %v1287 = vpop.f32.mrb[0].mxu0
        %1288 = vmatprep.mubr.bf16.mxu0 %v1235
        %1289 = vmatmul.mubr.bf16.gmra.mrb[0].mxu0 %v944
        %v1290 = vpop.f32.mrb[0].mxu0
        %v1291 = vadd.f32 %v1142, %v1290
        %v1292 = vpop.f32.mrb[0].mxu0
        %v1293 = vpop.f32.mrb[0].mxu0
        %v1294 = vadd.f32 %v1145, %v1293
        %v1295 = vpop.f32.mrb[0].mxu0
        %1296 = vmatprep.mubr.bf16.mxu0 %v1238
        %1297 = vmatmul.mubr.bf16.gmra.mrb[0].mxu0 %v946
        %v1298 = vpop.f32.mrb[0].mxu0
        %v1299 = vadd.f32 %v1150, %v1298
        %v1300 = vpop.f32.mrb[0].mxu0
        %v1301 = vpop.f32.mrb[0].mxu0
        %v1302 = vadd.f32 %v1153, %v1301
        %v1303 = vpop.f32.mrb[0].mxu0
        %1304 = vdwg.mxu0
        %v1305 = vld [vmem:[#allocation2 + $0x20] sm:$0xff]
        %v1306 = vld [vmem:[#allocation2 + $0x28] sm:$0xff]
        %v1307 = vld [vmem:[#allocation2 + $0x30] sm:$0xff]
        %v1308 = vld [vmem:[#allocation2 + $0x38] sm:$0xff]
        %v1309 = vld [vmem:[#allocation2 + $0x40] sm:$0xff]
        %v1310 = vld [vmem:[#allocation2 + $0x48] sm:$0xff]
        %v1311 = vld [vmem:[#allocation2 + $0x50] sm:$0xff]
        %v1312 = vld [vmem:[#allocation2 + $0x58] sm:$0xff]
        %v1313 = vld [vmem:[#allocation2 + $0x60] sm:$0xff]
        %v1314 = vld [vmem:[#allocation2 + $0x68] sm:$0xff]
        %v1315 = vld [vmem:[#allocation2 + $0x70] sm:$0xff]
        %v1316 = vld [vmem:[#allocation2 + $0x78] sm:$0xff]
        %v1317 = vld [vmem:[#allocation2 + $0x80] sm:$0xff]
        %v1318 = vld [vmem:[#allocation2 + $0x88] sm:$0xff]
        %v1319 = vld [vmem:[#allocation2 + $0x90] sm:$0xff]
        %v1320 = vld [vmem:[#allocation2 + $0x98] sm:$0xff]
        %v1321 = vpack.c.bf16 %v1307, %v1305
        %v1322 = vpack.c.bf16 %v1308, %v1306
        %v1323 = vpack.c.bf16 %v1311, %v1309
        %v1324 = vpack.c.bf16 %v1312, %v1310
        %v1325 = vpack.c.bf16 %v1315, %v1313
        %v1326 = vpack.c.bf16 %v1316, %v1314
        %v1327 = vpack.c.bf16 %v1319, %v1317
        %v1328 = vpack.c.bf16 %v1320, %v1318
        %s1329 = scalar_lea.vmem %s5, 192
        %v1330 = vld [vmem:[%s1329] sm:$0xf]
        %v1331 = vld [vmem:[%s1329 + $0x4] sm:$0xf]
        %v1332 = vld [vmem:[%s1329 + $0x8] sm:$0xf]
        %v1333 = vld [vmem:[%s1329 + $0xc] sm:$0xf]
        %v1334 = vld [vmem:[%s1329 + $0x10] sm:$0xf]
        %v1335 = vld [vmem:[%s1329 + $0x14] sm:$0xf]
        %v1336 = vld [vmem:[%s1329 + $0x18] sm:$0xf]
        %v1337 = vld [vmem:[%s1329 + $0x1c] sm:$0xf]
        %v1338 = vld [vmem:[%s1329 + $0x20] sm:$0xf]
        %v1339 = vld [vmem:[%s1329 + $0x24] sm:$0xf]
        %v1340 = vld [vmem:[%s1329 + $0x28] sm:$0xf]
        %v1341 = vld [vmem:[%s1329 + $0x2c] sm:$0xf]
        %v1342 = vld [vmem:[%s1329 + $0x30] sm:$0xf]
        %v1343 = vld [vmem:[%s1329 + $0x34] sm:$0xf]
        %v1344 = vld [vmem:[%s1329 + $0x38] sm:$0xf]
        %v1345 = vld [vmem:[%s1329 + $0x3c] sm:$0xf]
        %v1346 = vld [vmem:[%s1329 + $0x40] sm:$0xf]
        %v1347 = vld [vmem:[%s1329 + $0x44] sm:$0xf]
        %v1348 = vld [vmem:[%s1329 + $0x48] sm:$0xf]
        %v1349 = vld [vmem:[%s1329 + $0x4c] sm:$0xf]
        %v1350 = vld [vmem:[%s1329 + $0x50] sm:$0xf]
        %v1351 = vld [vmem:[%s1329 + $0x54] sm:$0xf]
        %v1352 = vld [vmem:[%s1329 + $0x58] sm:$0xf]
        %v1353 = vld [vmem:[%s1329 + $0x5c] sm:$0xf]
        %v1378 = vunpack.c.l.b16 %v1330
        %v1379 = vunpack.c.l.b16 %v1331
        %v1380 = vunpack.c.l.b16 %v1332
        %v1381 = vunpack.c.l.b16 %v1333
        %v1382 = vunpack.c.l.b16 %v1334
        %v1383 = vunpack.c.l.b16 %v1335
        %v1384 = vunpack.c.l.b16 %v1336
        %v1385 = vunpack.c.l.b16 %v1337
        %v1386 = vunpack.c.l.b16 %v1338
        %v1387 = vunpack.c.l.b16 %v1339
        %v1388 = vunpack.c.l.b16 %v1340
        %v1389 = vunpack.c.l.b16 %v1341
        %v1390 = vunpack.c.l.b16 %v1342
        %v1391 = vunpack.c.l.b16 %v1343
        %v1392 = vunpack.c.l.b16 %v1344
        %v1393 = vunpack.c.l.b16 %v1345
        %v1394 = vunpack.c.l.b16 %v1346
        %v1395 = vunpack.c.l.b16 %v1347
        %v1396 = vunpack.c.l.b16 %v1348
        %v1397 = vunpack.c.l.b16 %v1349
        %v1398 = vunpack.c.l.b16 %v1350
        %v1399 = vunpack.c.l.b16 %v1351
        %v1400 = vunpack.c.l.b16 %v1352
        %v1401 = vunpack.c.l.b16 %v1353
        %v1402 = vpack.c.b16 %v1379, %v1378
        %v1403 = vpack.c.b16 %v1381, %v1380
        %v1404 = vpack.c.b16 %v1383, %v1382
        %v1405 = vpack.c.b16 %v1385, %v1384
        %v1406 = vpack.c.b16 %v1387, %v1386
        %v1407 = vpack.c.b16 %v1389, %v1388
        %v1408 = vpack.c.b16 %v1391, %v1390
        %v1409 = vpack.c.b16 %v1393, %v1392
        %v1410 = vpack.c.b16 %v1395, %v1394
        %v1411 = vpack.c.b16 %v1397, %v1396
        %v1412 = vpack.c.b16 %v1399, %v1398
        %v1413 = vpack.c.b16 %v1401, %v1400
        %v1427 = vsel %vm370, %v1322, 0
        %v1430 = vsel %vm370, %v1324, 0
        %v1433 = vsel %vm370, %v1326, 0
        %v1436 = vsel %vm370, %v1328, 0
        %1438 = vmatprep.subr.bf16.mxu0 0
        %1439 = vmatpush1.bf16.msra.mxu0 %v1402
        %1440 = vmatprep.subr.bf16.mxu0 0
        %1441 = vmatpush1.bf16.msra.mxu0 %v1403
        %1442 = vmatprep.subr.bf16.mxu0 0
        %1443 = vmatpush1.bf16.msra.mxu0 %v1404
        %1444 = vmatprep.subr.bf16.mxu0 0
        %1445 = vmatpush1.bf16.msra.mxu0 %v1405
        %1446 = vmatprep.subr.bf16.mxu0 0
        %1447 = vmatpush1.bf16.msra.mxu0 %v1406
        %1448 = vmatprep.subr.bf16.mxu0 0
        %1449 = vmatpush1.bf16.msra.mxu0 %v1407
        %1450 = vmatprep.subr.bf16.mxu0 0
        %1451 = vmatpush1.bf16.msra.mxu0 %v1408
        %1452 = vmatprep.subr.bf16.mxu0 0
        %1453 = vmatpush1.bf16.msra.mxu0 %v1409
        %1454 = vmatprep.subr.bf16.mxu0 0
        %1455 = vmatpush1.bf16.msra.mxu0 %v1410
        %1456 = vmatprep.subr.bf16.mxu0 0
        %1457 = vmatpush1.bf16.msra.mxu0 %v1411
        %1458 = vmatprep.subr.bf16.mxu0 0
        %1459 = vmatpush1.bf16.msra.mxu0 %v1412
        %1460 = vmatprep.subr.bf16.mxu0 0
        %1461 = vmatpush1.bf16.msra.mxu0 %v1413
        %1462 = vmatprep.subr.bf16.mxu0 0
        %1463 = vmatpush1.bf16.msra.mxu0 0
        %1464 = vmatprep.subr.bf16.mxu0 0
        %1465 = vmatpush1.bf16.msra.mxu0 0
        %1466 = vmatprep.subr.bf16.mxu0 0
        %1467 = vmatpush1.bf16.msra.mxu0 0
        %1468 = vmatprep.subr.bf16.mxu0 0
        %1469 = vmatpush1.bf16.msra.mxu0 0
        %1470 = vmatprep.mubr.bf16.mxu0 %v1427
        %1471 = vmatmul.mubr.bf16.gmra.mrb[0].mxu0 %v1321
        %v1472 = vpop.f32.mrb[0].mxu0
        %v1473 = vadd.f32 0.0, %v1472
        %v1474 = vpop.f32.mrb[0].mxu0
        %v1475 = vpop.f32.mrb[0].mxu0
        %v1476 = vadd.f32 0.0, %v1475
        %v1477 = vpop.f32.mrb[0].mxu0
        %1478 = vmatprep.mubr.bf16.mxu0 %v1430
        %1479 = vmatmul.mubr.bf16.gmra.mrb[0].mxu0 %v1323
        %v1480 = vpop.f32.mrb[0].mxu0
        %v1481 = vadd.f32 0.0, %v1480
        %v1482 = vpop.f32.mrb[0].mxu0
        %v1483 = vpop.f32.mrb[0].mxu0
        %v1484 = vadd.f32 0.0, %v1483
        %v1485 = vpop.f32.mrb[0].mxu0
        %1486 = vmatprep.mubr.bf16.mxu0 %v1433
        %1487 = vmatmul.mubr.bf16.gmra.mrb[0].mxu0 %v1325
        %v1488 = vpop.f32.mrb[0].mxu0
        %v1489 = vadd.f32 0.0, %v1488
        %v1490 = vpop.f32.mrb[0].mxu0
        %v1491 = vpop.f32.mrb[0].mxu0
        %v1492 = vadd.f32 0.0, %v1491
        %v1493 = vpop.f32.mrb[0].mxu0
        %1494 = vmatprep.mubr.bf16.mxu0 %v1436
        %1495 = vmatmul.mubr.bf16.gmra.mrb[0].mxu0 %v1327
        %v1496 = vpop.f32.mrb[0].mxu0
        %v1497 = vadd.f32 0.0, %v1496
        %v1498 = vpop.f32.mrb[0].mxu0
        %v1499 = vpop.f32.mrb[0].mxu0
        %v1500 = vadd.f32 0.0, %v1499
        %v1501 = vpop.f32.mrb[0].mxu0
        %1502 = vdwg.mxu0
        %v1503 = vadd.f32 %v1275, %v1473
        %v1504 = vadd.f32 %v1278, %v1476
        %v1505 = vadd.f32 %v1283, %v1481
        %v1506 = vadd.f32 %v1286, %v1484
        %v1507 = vadd.f32 %v1291, %v1489
        %v1508 = vadd.f32 %v1294, %v1492
        %v1509 = vadd.f32 %v1299, %v1497
        %v1510 = vadd.f32 %v1302, %v1500
        %v1511 = vld [vmem:[%s6] sm:$0x1]
        %v1513 = vlaneseq
        %v1514 = vshrl.u32 %v1513, 7
        %v1515 = vsub.s32 0, %v1514
        %v1516 = vrot.slane %v1511, %v1515
        %v1518 = vadd.f32 %v1503, %v1516
        %v1519 = vadd.f32 %v1504, %v1516
        %v1520 = vadd.f32 %v1505, %v1516
        %v1521 = vadd.f32 %v1506, %v1516
        %v1522 = vadd.f32 %v1507, %v1516
        %v1523 = vadd.f32 %v1508, %v1516
        %v1524 = vadd.f32 %v1509, %v1516
        %v1525 = vadd.f32 %v1510, %v1516
        %v1526 = vld [vmem:[%s350] sm:$0xff]
        %v1527 = vld [vmem:[%s350 + $0x8] sm:$0xff]
        %v1528 = vld [vmem:[%s350 + $0x10] sm:$0xff]
        %v1529 = vld [vmem:[%s350 + $0x18] sm:$0xff]
        %v1530 = vld [vmem:[%s350 + $0x20] sm:$0xff]
        %v1531 = vld [vmem:[%s350 + $0x28] sm:$0xff]
        %v1532 = vld [vmem:[%s350 + $0x30] sm:$0xff]
        %v1533 = vld [vmem:[%s350 + $0x38] sm:$0xff]
        %v1534 = vpack.c.bf16 %v1527, %v1526
        %v1535 = vpack.c.bf16 %v1529, %v1528
        %v1536 = vpack.c.bf16 %v1531, %v1530
        %v1537 = vpack.c.bf16 %v1533, %v1532
        %v1538 = vld [vmem:[%s7] sm:$0xf]
        %v1539 = vld [vmem:[%s7 + $0x4] sm:$0xf]
        %v1540 = vld [vmem:[%s7 + $0x8] sm:$0xf]
        %v1541 = vld [vmem:[%s7 + $0xc] sm:$0xf]
        %v1546 = vunpack.c.l.b16 %v1538
        %v1547 = vunpack.c.l.b16 %v1539
        %v1548 = vunpack.c.l.b16 %v1540
        %v1549 = vunpack.c.l.b16 %v1541
        %v1550 = vpack.c.b16 %v1547, %v1546
        %v1551 = vpack.c.b16 %v1549, %v1548
        %vm1554 = vcmask 261120
        %v1556 = vsel %vm1554, %v1534, 0
        %v1559 = vsel %vm1554, %v1535, 0
        %v1562 = vsel %vm1554, %v1536, 0
        %v1565 = vsel %vm1554, %v1537, 0
        %1567 = vmatprep.subr.bf16.mxu0 0
        %1568 = vmatpush1.bf16.msra.mxu0 %v1550
        %1569 = vmatprep.subr.bf16.mxu0 0
        %1570 = vmatpush1.bf16.msra.mxu0 %v1551
        %1571 = vmatprep.subr.bf16.mxu0 0
        %1572 = vmatpush1.bf16.msra.mxu0 0
        %1573 = vmatprep.subr.bf16.mxu0 0
        %1574 = vmatpush1.bf16.msra.mxu0 0
        %1575 = vmatprep.subr.bf16.mxu0 0
        %1576 = vmatpush1.bf16.msra.mxu0 0
        %1577 = vmatprep.subr.bf16.mxu0 0
        %1578 = vmatpush1.bf16.msra.mxu0 0
        %1579 = vmatprep.subr.bf16.mxu0 0
        %1580 = vmatpush1.bf16.msra.mxu0 0
        %1581 = vmatprep.subr.bf16.mxu0 0
        %1582 = vmatpush1.bf16.msra.mxu0 0
        %1583 = vmatprep.subr.bf16.mxu0 0
        %1584 = vmatpush1.bf16.msra.mxu0 0
        %1585 = vmatprep.subr.bf16.mxu0 0
        %1586 = vmatpush1.bf16.msra.mxu0 0
        %1587 = vmatprep.subr.bf16.mxu0 0
        %1588 = vmatpush1.bf16.msra.mxu0 0
        %1589 = vmatprep.subr.bf16.mxu0 0
        %1590 = vmatpush1.bf16.msra.mxu0 0
        %1591 = vmatprep.subr.bf16.mxu0 0
        %1592 = vmatpush1.bf16.msra.mxu0 0
        %1593 = vmatprep.subr.bf16.mxu0 0
        %1594 = vmatpush1.bf16.msra.mxu0 0
        %1595 = vmatprep.subr.bf16.mxu0 0
        %1596 = vmatpush1.bf16.msra.mxu0 0
        %1597 = vmatprep.subr.bf16.mxu0 0
        %1598 = vmatpush1.bf16.msra.mxu0 0
        %1599 = vmatprep.mubr.bf16.mxu0 0
        %1600 = vmatmul.mubr.bf16.gmra.mrb[0].mxu0 %v1556
        %v1601 = vpop.f32.mrb[0].mxu0
        %v1602 = vadd.f32 0.0, %v1601
        %v1603 = vpop.f32.mrb[0].mxu0
        %v1604 = vpop.f32.mrb[0].mxu0
        %v1605 = vadd.f32 0.0, %v1604
        %v1606 = vpop.f32.mrb[0].mxu0
        %1607 = vmatprep.mubr.bf16.mxu0 0
        %1608 = vmatmul.mubr.bf16.gmra.mrb[0].mxu0 %v1559
        %v1609 = vpop.f32.mrb[0].mxu0
        %v1610 = vadd.f32 0.0, %v1609
        %v1611 = vpop.f32.mrb[0].mxu0
        %v1612 = vpop.f32.mrb[0].mxu0
        %v1613 = vadd.f32 0.0, %v1612
        %v1614 = vpop.f32.mrb[0].mxu0
        %1615 = vmatprep.mubr.bf16.mxu0 0
        %1616 = vmatmul.mubr.bf16.gmra.mrb[0].mxu0 %v1562
        %v1617 = vpop.f32.mrb[0].mxu0
        %v1618 = vadd.f32 0.0, %v1617
        %v1619 = vpop.f32.mrb[0].mxu0
        %v1620 = vpop.f32.mrb[0].mxu0
        %v1621 = vadd.f32 0.0, %v1620
        %v1622 = vpop.f32.mrb[0].mxu0
        %1623 = vmatprep.mubr.bf16.mxu0 0
        %1624 = vmatmul.mubr.bf16.gmra.mrb[0].mxu0 %v1565
        %v1625 = vpop.f32.mrb[0].mxu0
        %v1626 = vadd.f32 0.0, %v1625
        %v1627 = vpop.f32.mrb[0].mxu0
        %v1628 = vpop.f32.mrb[0].mxu0
        %v1629 = vadd.f32 0.0, %v1628
        %v1630 = vpop.f32.mrb[0].mxu0
        %1631 = vdwg.mxu0
        %v1632 = vadd.f32 %v1518, %v1602
        %v1633 = vadd.f32 %v1519, %v1605
        %v1634 = vadd.f32 %v1520, %v1610
        %v1635 = vadd.f32 %v1521, %v1613
        %v1636 = vadd.f32 %v1522, %v1618
        %v1637 = vadd.f32 %v1523, %v1621
        %v1638 = vadd.f32 %v1524, %v1626
        %v1639 = vadd.f32 %v1525, %v1629
        %v1640 = vld [vmem:[%s8] sm:$0x1]
        %v1642 = vlaneseq
        %v1643 = vshrl.u32 %v1642, 7
        %v1644 = vsub.s32 0, %v1643
        %v1645 = vrot.slane %v1640, %v1644
        %v1647 = vadd.f32 %v1632, %v1645
        %v1648 = vadd.f32 %v1633, %v1645
        %v1649 = vadd.f32 %v1634, %v1645
        %v1650 = vadd.f32 %v1635, %v1645
        %v1651 = vadd.f32 %v1636, %v1645
        %v1652 = vadd.f32 %v1637, %v1645
        %v1653 = vadd.f32 %v1638, %v1645
        %v1654 = vadd.f32 %v1639, %v1645
        %1655 = vst.msk [vmem:[%s340] sm:$0xff] %vm370, %v1647
        %1656 = vst.msk [vmem:[%s340 + $0x8] sm:$0xff] %vm370, %v1648
        %1657 = vst.msk [vmem:[%s340 + $0x10] sm:$0xff] %vm370, %v1649
        %1658 = vst.msk [vmem:[%s340 + $0x18] sm:$0xff] %vm370, %v1650
        %1659 = vst.msk [vmem:[%s340 + $0x20] sm:$0xff] %vm370, %v1651
        %1660 = vst.msk [vmem:[%s340 + $0x28] sm:$0xff] %vm370, %v1652
        %1661 = vst.msk [vmem:[%s340 + $0x30] sm:$0xff] %vm370, %v1653
        %1662 = vst.msk [vmem:[%s340 + $0x38] sm:$0xff] %vm370, %v1654
        %s1663 = sand.u32 %s230, 1
        %s1664 = scalar_lea.sflag [#allocation4], %s1663
        %s1665 = sand.u32 %s230, 1
        %s1666 = smul.addr %s1665, 64
        %s1667 = scalar_lea.vmem [#allocation3], %s1666
        // Predicated region
        $region57: #{residual_block_pallas.3} parent=55 // pred_check
          %p1668 = pneg %p240
        $region58: #{residual_block_pallas.3} parent=55 // pred_check_branch
          %1670 = sbr.rel (%p1668) target = $region60
        $region59: #{residual_block_pallas.3} parent=55 // pred_region
          %s1672 = ssub.s32 1024, 1024
          %1673 = vsyncadd %s1664, %s1672
          %s1674 = smul.addr %s23, 8
          %s1675 = smul.addr %s1674, 128
          %s1676 = scalar_lea.hbm %s9, %s1675
          %s1677 = sshll.u32 %s1667, 4
          %s1678 = int_to_ptr.vmem [resolvable:$true] %s1677
          %1683 = dma.vmem_to_hbm [thread:$0]  %s1678, 1024, %s1676, %s1664, 128, 128, 8
        $region60: #{residual_block_pallas.3} parent=55 // pred_fallthru
          _
      $region56: #{residual_block_pallas.3} parent=5 // pred_fallthru
        _
      %p1684 = scmp.le.s32.totalorder 2, %s18
      // Predicated region
      $region61: #{residual_block_pallas.3} parent=5 // pred_check
        %p1685 = pneg %p1684
      $region62: #{residual_block_pallas.3} parent=5 // pred_check_branch
        %1687 = sbr.rel (%p1685) target = $region64
      $region63: #{residual_block_pallas.3} parent=5 // pred_region
        %s1688 = ssub.s32 %s18, 2
        // Predicated region
        $region65: #{residual_block_pallas.3} parent=63 // pred_check
          %p1689 = pneg %p246
        $region66: #{residual_block_pallas.3} parent=63 // pred_check_branch
          %1691 = sbr.rel (%p1689) target = $region68
        $region67: #{residual_block_pallas.3} parent=63 // pred_region
          %s1692 = sand.u32 %s231, 1
          %s1693 = scalar_lea.sflag [#allocation4], %s1692
          %s1694 = sand.u32 %s231, 1
          %s1695 = smul.addr %s1694, 64
          %s1696 = scalar_lea.vmem [#allocation3], %s1695
          %1697 = dma.done %s1693, 1024
        $region68: #{residual_block_pallas.3} parent=63 // pred_fallthru
          _
      $region64: #{residual_block_pallas.3} parent=5 // pred_fallthru
        _
    $region6: #{residual_block_pallas.3} parent=1 // loop_footer
      %s22 = sadd.s32 1, %s18
    $region7: #{residual_block_pallas.3} parent=1 // loop_footer_branch
      %17 = sbr.rel target = $region3
    $region8: #{residual_block_pallas.3} parent=1 // loop_exit
      _
    %1698 = vsyncpa [#allocation4], 1
    %s1699 = scalar_lea.sflag [#allocation4], 1
    %1700 = vsyncpa %s1699, 1

</llo_original>
